<compile_context>
chip_gen: v7x
topology: tpu7x:2x2x1
jax: 0.10.0
libtpu: 0.0.40
codegen_flags: <defaults>
</compile_context>

<pallas_src>
import functools

import jax
import jax.numpy as jnp
from jax.experimental import pallas as pl
from jax.experimental.pallas import tpu as pltpu

# ---------------- small, Mixtral-consistent config ----------------
HIDDEN = 32
NUM_HEADS = 4
NUM_KV_HEADS = 2
HEAD_DIM = HIDDEN // NUM_HEADS            # 8
HALF = HEAD_DIM // 2                      # 4 (neox rotary half)
N_REP = NUM_HEADS // NUM_KV_HEADS         # 2 (GQA group size)
Q_SIZE = NUM_HEADS * HEAD_DIM             # 32
KV_SIZE = NUM_KV_HEADS * HEAD_DIM         # 16
INTERMEDIATE = 64
NUM_EXPERTS = 4
TOP_K = 2
RMS_EPS = 1e-5
ROPE_THETA = 10000.0
SM_SCALE = HEAD_DIM ** -0.5
COMPUTE_DTYPE = jnp.bfloat16              # MXU operand dtype; accumulation stays f32


# ================= Kernel 1: RMSNorm (+residual) + QKV + RoPE =================
def _norm_qkv_rope_kernel(x_ref, res_ref, ln_ref, wqkv_ref, cos_ref, sin_ref,
                          res_out_ref, q_ref, k_ref, v_ref, *, add_residual):
    x = x_ref[...]                                            # (S, H) f32
    if add_residual:
        x = x + res_ref[...]
    res_out_ref[...] = x

    # RMSNorm in f32, then bf16 operand for the MXU.
    var = jnp.mean(x * x, axis=-1, keepdims=True)
    xn = (x * jax.lax.rsqrt(var + RMS_EPS) * ln_ref[...]).astype(COMPUTE_DTYPE)

    qkv = jnp.dot(xn, wqkv_ref[...],
                  preferred_element_type=jnp.float32)         # (S, Q+2KV) f32

    cos = cos_ref[...]                                        # (S, HALF) f32
    sin = sin_ref[...]

    # Neox-style RoPE, written per head with static lane-slice stores
    # (softmax scale folded into q here, so attention does not rescale).
    for h in range(NUM_HEADS):
        off = h * HEAD_DIM
        x1 = qkv[:, off:off + HALF]
        x2 = qkv[:, off + HALF:off + HEAD_DIM]
        q_ref[h, :, :HALF] = ((x1 * cos - x2 * sin) * SM_SCALE).astype(q_ref.dtype)
        q_ref[h, :, HALF:] = ((x2 * cos + x1 * sin) * SM_SCALE).astype(q_ref.dtype)
    for h in range(NUM_KV_HEADS):
        koff = Q_SIZE + h * HEAD_DIM
        x1 = qkv[:, koff:koff + HALF]
        x2 = qkv[:, koff + HALF:koff + HEAD_DIM]
        k_ref[h, :, :HALF] = (x1 * cos - x2 * sin).astype(k_ref.dtype)
        k_ref[h, :, HALF:] = (x2 * cos + x1 * sin).astype(k_ref.dtype)
        voff = Q_SIZE + KV_SIZE + h * HEAD_DIM
        v_ref[h] = qkv[:, voff:voff + HEAD_DIM].astype(v_ref.dtype)


def norm_qkv_rope(x, residual, ln_w, w_qkv, cos, sin):
    B, S, H = x.shape
    add_residual = residual is not None
    res_in = residual if add_residual else x                  # dummy read when None
    kernel = functools.partial(_norm_qkv_rope_kernel, add_residual=add_residual)

    row = pl.BlockSpec((None, S, H), lambda b: (b, 0, 0))
    half = pl.BlockSpec((None, S, HALF), lambda b: (b, 0, 0))
    return pl.pallas_call(
        kernel,
        out_shape=(
            jax.ShapeDtypeStruct((B, S, H), jnp.float32),                       # residual
            jax.ShapeDtypeStruct((B, NUM_HEADS, S, HEAD_DIM), COMPUTE_DTYPE),    # q
            jax.ShapeDtypeStruct((B, NUM_KV_HEADS, S, HEAD_DIM), COMPUTE_DTYPE), # k
            jax.ShapeDtypeStruct((B, NUM_KV_HEADS, S, HEAD_DIM), COMPUTE_DTYPE), # v
        ),
        grid=(B,),
        in_specs=[
            row, row,
            pl.BlockSpec((1, H), lambda b: (0, 0)),
            pl.BlockSpec(w_qkv.shape, lambda b: (0, 0)),
            half, half,
        ],
        out_specs=(
            row,
            pl.BlockSpec((None, NUM_HEADS, S, HEAD_DIM), lambda b: (b, 0, 0, 0)),
            pl.BlockSpec((None, NUM_KV_HEADS, S, HEAD_DIM), lambda b: (b, 0, 0, 0)),
            pl.BlockSpec((None, NUM_KV_HEADS, S, HEAD_DIM), lambda b: (b, 0, 0, 0)),
        ),
        compiler_params=pltpu.CompilerParams(dimension_semantics=("parallel",)),
    )(x, res_in, ln_w, w_qkv, cos, sin)


# ================= Kernel 2: causal GQA attention =================
def _attention_kernel(q_ref, k_ref, v_ref, o_ref):
    # q_ref: (N_REP, S, D) bf16 (pre-scaled); k_ref/v_ref: (1, S, D) bf16
    S = q_ref.shape[1]
    row = jax.lax.broadcasted_iota(jnp.int32, (S, S), 0)
    col = jax.lax.broadcasted_iota(jnp.int32, (S, S), 1)
    causal = col <= row
    k = k_ref[0]
    v = v_ref[0]
    for r in range(N_REP):                                    # shared KV head group
        q = q_ref[r]
        s = jax.lax.dot_general(q, k, (((1,), (1,)), ((), ())),
                                preferred_element_type=jnp.float32)   # (S, S)
        s = jnp.where(causal, s, -1e30)
        m = jnp.max(s, axis=-1, keepdims=True)
        p = jnp.exp(s - m)
        inv_l = pl.reciprocal(jnp.sum(p, axis=-1, keepdims=True), approx=True)
        ctx = jnp.dot(p.astype(v.dtype), v, preferred_element_type=jnp.float32)
        o_ref[r] = (ctx * inv_l).astype(o_ref.dtype)


def attention(q, k, v):
    # q: (B, NUM_HEADS, S, D); k/v: (B, NUM_KV_HEADS, S, D)
    B, _, S, D = q.shape
    # TODO(synk): for long S switch to flash-style online softmax over KV tiles
    #             with causal tile skipping; at S=8 the full S x S block is fine.
    return pl.pallas_call(
        _attention_kernel,
        out_shape=jax.ShapeDtypeStruct((B, NUM_HEADS, S, D), COMPUTE_DTYPE),
        grid=(B, NUM_KV_HEADS),
        in_specs=[
            pl.BlockSpec((None, N_REP, S, D), lambda b, h: (b, h, 0, 0)),
            pl.BlockSpec((None, 1, S, D), lambda b, h: (b, h, 0, 0)),
            pl.BlockSpec((None, 1, S, D), lambda b, h: (b, h, 0, 0)),
        ],
        out_specs=pl.BlockSpec((None, N_REP, S, D), lambda b, h: (b, h, 0, 0)),
        compiler_params=pltpu.CompilerParams(
            dimension_semantics=("parallel", "parallel")),
    )(q, k, v)


# ========== Kernel 3: o_proj + residual add + post-attn RMSNorm + gate ==========
def _oproj_norm_gate_kernel(ctx_ref, res_ref, wo_ref, ln_ref, wg_ref,
                            xn_ref, res_out_ref, logits_ref):
    S = res_ref.shape[0]
    acc = jnp.zeros((S, HIDDEN), jnp.float32)
    for h in range(NUM_HEADS):                               # o_proj, per-head accumulate
        acc = acc + jnp.dot(ctx_ref[h], wo_ref[h],
                            preferred_element_type=jnp.float32)
    x = acc + res_ref[...]
    res_out_ref[...] = x
    var = jnp.mean(x * x, axis=-1, keepdims=True)
    xn = x * jax.lax.rsqrt(var + RMS_EPS) * ln_ref[...]
    xn_ref[...] = xn.astype(xn_ref.dtype)
    logits_ref[...] = jnp.dot(xn.astype(COMPUTE_DTYPE), wg_ref[...],
                              preferred_element_type=jnp.float32)


def oproj_norm_gate(ctx, residual, w_o_heads, ln_w, w_gate):
    B, _, S, _ = ctx.shape
    H = HIDDEN
    row = pl.BlockSpec((None, S, H), lambda b: (b, 0, 0))
    return pl.pallas_call(
        _oproj_norm_gate_kernel,
        out_shape=(
            jax.ShapeDtypeStruct((B, S, H), COMPUTE_DTYPE),           # normed -> MoE
            jax.ShapeDtypeStruct((B, S, H), jnp.float32),             # new residual
            jax.ShapeDtypeStruct((B, S, NUM_EXPERTS), jnp.float32),   # router logits
        ),
        grid=(B,),
        in_specs=[
            pl.BlockSpec((None, NUM_HEADS, S, HEAD_DIM), lambda b: (b, 0, 0, 0)),
            row,
            pl.BlockSpec(w_o_heads.shape, lambda b: (0, 0, 0)),
            pl.BlockSpec((1, H), lambda b: (0, 0)),
            pl.BlockSpec(w_gate.shape, lambda b: (0, 0)),
        ],
        out_specs=(
            row,
            row,
            pl.BlockSpec((None, S, NUM_EXPERTS), lambda b: (b, 0, 0)),
        ),
        compiler_params=pltpu.CompilerParams(dimension_semantics=("parallel",)),
    )(ctx, residual, w_o_heads, ln_w, w_gate)


# ================= Kernel 4: MoE expert MLP (w1/SiLU * w3 -> w2) =================
def _moe_kernel(counts_ref, x_ref, w1_ref, w3_ref, w2_ref, gw_ref, o_ref):
    e = pl.program_id(1)

    @pl.when(e == 0)
    def _():
        o_ref[...] = jnp.zeros_like(o_ref)

    @pl.when(counts_ref[e] > 0)                  # skip experts with no routed tokens
    def _():
        x = x_ref[...]                                           # (tm, H) bf16
        h1 = jnp.dot(x, w1_ref[...], preferred_element_type=jnp.float32)
        h1 = h1 * jax.nn.sigmoid(h1)                             # SiLU
        h3 = jnp.dot(x, w3_ref[...], preferred_element_type=jnp.float32)
        y = jnp.dot((h1 * h3).astype(x.dtype), w2_ref[...],
                    preferred_element_type=jnp.float32)
        o_ref[...] += y * gw_ref[...]                            # per-token routing weight


def moe(x, w1, w3, w2, gw, counts):
    # x: (T, H) bf16; w1/w3: (E, H, F); w2: (E, F, H); gw: (E, T, 1); counts: (E,) int32
    T, H = x.shape
    E, _, F = w1.shape
    tm = T  # single token tile at toy scale
    # TODO(synk): at real Mixtral sizes tile tokens (~256) and the F dim of the
    #             expert weights, and sort tokens by expert (scalar-prefetch group
    #             offsets) so only routed tokens are computed.
    gs = pltpu.PrefetchScalarGridSpec(
        num_scalar_prefetch=1,
        grid=(T // tm, E),
        in_specs=[
            pl.BlockSpec((tm, H), lambda t, e, c: (t, 0)),
            pl.BlockSpec((None, H, F), lambda t, e, c: (e, 0, 0)),
            pl.BlockSpec((None, H, F), lambda t, e, c: (e, 0, 0)),
            pl.BlockSpec((None, F, H), lambda t, e, c: (e, 0, 0)),
            pl.BlockSpec((None, tm, 1), lambda t, e, c: (e, t, 0)),
        ],
        out_specs=pl.BlockSpec((tm, H), lambda t, e, c: (t, 0)),
    )
    return pl.pallas_call(
        _moe_kernel,
        out_shape=jax.ShapeDtypeStruct((T, H), jnp.float32),
        grid_spec=gs,
        compiler_params=pltpu.CompilerParams(
            dimension_semantics=("parallel", "arbitrary")),
    )(counts, x, w1, w3, w2, gw)


# ---------------- decoder-layer forward (glue + kernels) ----------------
def mixtral_decoder_layer(positions, hidden_states, params, residual=None):
    B, S, H = hidden_states.shape
    T = B * S

    # rotary tables (neox), tiny glue in JAX
    inv_freq = 1.0 / (ROPE_THETA ** (
        jnp.arange(0, HEAD_DIM, 2, dtype=jnp.float32) / HEAD_DIM))
    freqs = positions.astype(jnp.float32)[..., None] * inv_freq   # (B, S, HALF)
    cos, sin = jnp.cos(freqs), jnp.sin(freqs)

    # K1: (residual add +) input RMSNorm + QKV + RoPE (+ q scaling)
    residual3d, q, k, v = norm_qkv_rope(
        hidden_states, residual, params["input_layernorm"], params["w_qkv"],
        cos, sin)

    # K2: causal GQA attention (prefill only)
    # TODO(synk): paged KV-cache read/write (kv_cache, input_metadata) not modeled.
    ctx = attention(q, k, v)                      # (B, NUM_HEADS, S, D) bf16

    # K3: o_proj + residual add + post-attention RMSNorm + router gate
    xn, residual3d, logits = oproj_norm_gate(
        ctx, residual3d, params["w_o"], params["post_attention_layernorm"],
        params["w_gate"])

    # routing glue (softmax / top-k) in JAX, f32
    probs = jax.nn.softmax(logits.reshape(T, NUM_EXPERTS), axis=-1)
    topv, topi = jax.lax.top_k(probs, TOP_K)
    topv = topv / jnp.sum(topv, axis=-1, keepdims=True)
    dense_w = jnp.sum(
        topv[:, :, None]
        * (topi[:, :, None] == jnp.arange(NUM_EXPERTS)[None, None, :]
           ).astype(jnp.float32),
        axis=1)                                   # (T, E) dense routing weights
    gw = jnp.transpose(dense_w)[:, :, None]       # (E, T, 1)
    counts = jnp.sum((dense_w > 0.0).astype(jnp.int32), axis=0)   # (E,) routed-token counts

    # K4: MoE
    moe_out = moe(xn.reshape(T, H), params["w1"], params["w3"], params["w2"],
                  gw, counts)

    # TODO(synk): tensor_model_parallel_all_reduce omitted (single device, tp=1).
    return moe_out.reshape(B, S, H), residual3d


# ---------------- deterministic parameter init ----------------
def init_params(key):
    ks = jax.random.split(key, 6)
    scale = 0.05
    w_o = scale * jax.random.normal(ks[1], (Q_SIZE, HIDDEN), jnp.float32)
    return {
        "input_layernorm": jnp.ones((1, HIDDEN), jnp.float32),
        "post_attention_layernorm": jnp.ones((1, HIDDEN), jnp.float32),
        "w_qkv": (scale * jax.random.normal(
            ks[0], (HIDDEN, Q_SIZE + 2 * KV_SIZE), jnp.float32)
        ).astype(COMPUTE_DTYPE),
        # o_proj weight stored per attention head: (num_heads, head_dim, hidden)
        "w_o": w_o.reshape(NUM_HEADS, HEAD_DIM, HIDDEN).astype(COMPUTE_DTYPE),
        "w_gate": (scale * jax.random.normal(
            ks[2], (HIDDEN, NUM_EXPERTS), jnp.float32)).astype(COMPUTE_DTYPE),
        "w1": (scale * jax.random.normal(
            ks[3], (NUM_EXPERTS, HIDDEN, INTERMEDIATE), jnp.float32)
        ).astype(COMPUTE_DTYPE),
        "w3": (scale * jax.random.normal(
            ks[4], (NUM_EXPERTS, HIDDEN, INTERMEDIATE), jnp.float32)
        ).astype(COMPUTE_DTYPE),
        "w2": (scale * jax.random.normal(
            ks[5], (NUM_EXPERTS, INTERMEDIATE, HIDDEN), jnp.float32)
        ).astype(COMPUTE_DTYPE),
    }


if __name__ == "__main__":
    key = jax.random.PRNGKey(0)
    kp, kx = jax.random.split(key)
    params = init_params(kp)

    B, S = 2, 8
    hidden_states = jax.random.normal(kx, (B, S, HIDDEN), jnp.float32)
    positions = jnp.broadcast_to(jnp.arange(S, dtype=jnp.int32), (B, S))

    fwd = jax.jit(mixtral_decoder_layer)

    # first layer call (residual is None)
    out, res = fwd(positions, hidden_states, params)
    # second call exercises the fused residual-add path
    out2, res2 = fwd(positions, out, params, res)
    jax.block_until_ready((out, res, out2, res2))

    assert out.shape == (B, S, HIDDEN) and res.shape == (B, S, HIDDEN)
    assert out2.shape == (B, S, HIDDEN) and res2.shape == (B, S, HIDDEN)
    assert bool(jnp.all(jnp.isfinite(out))) and bool(jnp.all(jnp.isfinite(out2)))
    print("KERNEL_OK")
</pallas_src>

<mosaic_0001>
module attributes {stable_mosaic.version = 11 : i64} {
  func.func @_oproj_norm_gate_kernel(%arg0: i32, %arg1: memref<1x4x8x8xbf16, #tpu.memory_space<vmem>>, %arg2: memref<1x8x32xf32, #tpu.memory_space<vmem>>, %arg3: memref<4x8x32xbf16, #tpu.memory_space<vmem>>, %arg4: memref<1x32xf32, #tpu.memory_space<vmem>>, %arg5: memref<32x4xbf16, #tpu.memory_space<vmem>>, %arg6: memref<1x8x32xbf16, #tpu.memory_space<vmem>>, %arg7: memref<1x8x32xf32, #tpu.memory_space<vmem>>, %arg8: memref<1x8x4xf32, #tpu.memory_space<vmem>>) attributes {dimension_semantics = [#tpu.dimension_semantics<parallel>], iteration_bounds = array<i64: 2>, scalar_prefetch = 0 : i64, scratch_operands = 0 : i64, tpu.core_type = #tpu.core_type<tc>, window_params = [{transform_indices = @transform_0, window_bounds = array<i64: 1, 4, 8, 8>}, {transform_indices = @transform_1, window_bounds = array<i64: 1, 8, 32>}, {pipeline_mode = #tpu.pipeline_mode<synchronous>, transform_indices = @transform_2, window_bounds = array<i64: 4, 8, 32>}, {pipeline_mode = #tpu.pipeline_mode<synchronous>, transform_indices = @transform_3, window_bounds = array<i64: 1, 32>}, {pipeline_mode = #tpu.pipeline_mode<synchronous>, transform_indices = @transform_4, window_bounds = array<i64: 32, 4>}, {transform_indices = @transform_5, window_bounds = array<i64: 1, 8, 32>}, {transform_indices = @transform_6, window_bounds = array<i64: 1, 8, 32>}, {transform_indices = @transform_7, window_bounds = array<i64: 1, 8, 4>}]} {
    %cst = arith.constant 0.000000e+00 : f32
    %0 = vector.broadcast %cst : f32 to vector<8x32xf32>
    %c0 = arith.constant 0 : index
    %c0_0 = arith.constant 0 : index
    %c0_1 = arith.constant 0 : index
    %c0_2 = arith.constant 0 : index
    %1 = vector.load %arg1[%c0, %c0_0, %c0_1, %c0_2] : memref<1x4x8x8xbf16, #tpu.memory_space<vmem>>, vector<1x1x8x8xbf16>
    %2 = vector.shape_cast %1 : vector<1x1x8x8xbf16> to vector<8x8xbf16>
    %c0_3 = arith.constant 0 : index
    %c0_4 = arith.constant 0 : index
    %c0_5 = arith.constant 0 : index
    %3 = vector.load %arg3[%c0_3, %c0_4, %c0_5] : memref<4x8x32xbf16, #tpu.memory_space<vmem>>, vector<1x8x32xbf16>
    %4 = vector.shape_cast %3 : vector<1x8x32xbf16> to vector<8x32xbf16>
    %cst_6 = arith.constant dense<0.000000e+00> : vector<8x32xf32>
    %5 = tpu.matmul %2, %4, %cst_6 {dimension_numbers = #tpu.dot_dimension_numbers<[1], [0], [0], [1], [0, 0, 1, 1], [], []>} : vector<8x8xbf16>, vector<8x32xbf16>, vector<8x32xf32> -> vector<8x32xf32>
    %6 = arith.addf %0, %5 : vector<8x32xf32>
    %c0_7 = arith.constant 0 : index
    %c1 = arith.constant 1 : index
    %c0_8 = arith.constant 0 : index
    %c0_9 = arith.constant 0 : index
    %7 = vector.load %arg1[%c0_7, %c1, %c0_8, %c0_9] : memref<1x4x8x8xbf16, #tpu.memory_space<vmem>>, vector<1x1x8x8xbf16>
    %8 = vector.shape_cast %7 : vector<1x1x8x8xbf16> to vector<8x8xbf16>
    %c1_10 = arith.constant 1 : index
    %c0_11 = arith.constant 0 : index
    %c0_12 = arith.constant 0 : index
    %9 = vector.load %arg3[%c1_10, %c0_11, %c0_12] : memref<4x8x32xbf16, #tpu.memory_space<vmem>>, vector<1x8x32xbf16>
    %10 = vector.shape_cast %9 : vector<1x8x32xbf16> to vector<8x32xbf16>
    %cst_13 = arith.constant dense<0.000000e+00> : vector<8x32xf32>
    %11 = tpu.matmul %8, %10, %cst_13 {dimension_numbers = #tpu.dot_dimension_numbers<[1], [0], [0], [1], [0, 0, 1, 1], [], []>} : vector<8x8xbf16>, vector<8x32xbf16>, vector<8x32xf32> -> vector<8x32xf32>
    %12 = arith.addf %6, %11 : vector<8x32xf32>
    %c0_14 = arith.constant 0 : index
    %c2 = arith.constant 2 : index
    %c0_15 = arith.constant 0 : index
    %c0_16 = arith.constant 0 : index
    %13 = vector.load %arg1[%c0_14, %c2, %c0_15, %c0_16] : memref<1x4x8x8xbf16, #tpu.memory_space<vmem>>, vector<1x1x8x8xbf16>
    %14 = vector.shape_cast %13 : vector<1x1x8x8xbf16> to vector<8x8xbf16>
    %c2_17 = arith.constant 2 : index
    %c0_18 = arith.constant 0 : index
    %c0_19 = arith.constant 0 : index
    %15 = vector.load %arg3[%c2_17, %c0_18, %c0_19] : memref<4x8x32xbf16, #tpu.memory_space<vmem>>, vector<1x8x32xbf16>
    %16 = vector.shape_cast %15 : vector<1x8x32xbf16> to vector<8x32xbf16>
    %cst_20 = arith.constant dense<0.000000e+00> : vector<8x32xf32>
    %17 = tpu.matmul %14, %16, %cst_20 {dimension_numbers = #tpu.dot_dimension_numbers<[1], [0], [0], [1], [0, 0, 1, 1], [], []>} : vector<8x8xbf16>, vector<8x32xbf16>, vector<8x32xf32> -> vector<8x32xf32>
    %18 = arith.addf %12, %17 : vector<8x32xf32>
    %c0_21 = arith.constant 0 : index
    %c3 = arith.constant 3 : index
    %c0_22 = arith.constant 0 : index
    %c0_23 = arith.constant 0 : index
    %19 = vector.load %arg1[%c0_21, %c3, %c0_22, %c0_23] : memref<1x4x8x8xbf16, #tpu.memory_space<vmem>>, vector<1x1x8x8xbf16>
    %20 = vector.shape_cast %19 : vector<1x1x8x8xbf16> to vector<8x8xbf16>
    %c3_24 = arith.constant 3 : index
    %c0_25 = arith.constant 0 : index
    %c0_26 = arith.constant 0 : index
    %21 = vector.load %arg3[%c3_24, %c0_25, %c0_26] : memref<4x8x32xbf16, #tpu.memory_space<vmem>>, vector<1x8x32xbf16>
    %22 = vector.shape_cast %21 : vector<1x8x32xbf16> to vector<8x32xbf16>
    %cst_27 = arith.constant dense<0.000000e+00> : vector<8x32xf32>
    %23 = tpu.matmul %20, %22, %cst_27 {dimension_numbers = #tpu.dot_dimension_numbers<[1], [0], [0], [1], [0, 0, 1, 1], [], []>} : vector<8x8xbf16>, vector<8x32xbf16>, vector<8x32xf32> -> vector<8x32xf32>
    %24 = arith.addf %18, %23 : vector<8x32xf32>
    %c0_28 = arith.constant 0 : index
    %c0_29 = arith.constant 0 : index
    %c0_30 = arith.constant 0 : index
    %25 = vector.load %arg2[%c0_28, %c0_29, %c0_30] : memref<1x8x32xf32, #tpu.memory_space<vmem>>, vector<1x8x32xf32>
    %26 = vector.shape_cast %25 : vector<1x8x32xf32> to vector<8x32xf32>
    %27 = arith.addf %24, %26 : vector<8x32xf32>
    %c0_31 = arith.constant 0 : index
    %c0_32 = arith.constant 0 : index
    %c0_33 = arith.constant 0 : index
    %28 = vector.load %arg7[%c0_31, %c0_32, %c0_33] : memref<1x8x32xf32, #tpu.memory_space<vmem>>, vector<1x8x32xf32>
    %29 = vector.shape_cast %28 : vector<1x8x32xf32> to vector<8x32xf32>
    %30 = vector.shape_cast %27 : vector<8x32xf32> to vector<1x8x32xf32>
    tpu.vector_store %arg7[%c0_31, %c0_32, %c0_33], %30 {strides = array<i32>} : memref<1x8x32xf32, #tpu.memory_space<vmem>>, vector<1x8x32xf32>,
    %31 = arith.mulf %27, %27 : vector<8x32xf32>
    %cst_34 = arith.constant dense<0.000000e+00> : vector<8xf32>
    %32 = vector.multi_reduction <add>, %31, %cst_34 [1] : vector<8x32xf32> to vector<8xf32>
    %33 = vector.shape_cast %32 : vector<8xf32> to vector<8x1xf32>
    %cst_35 = arith.constant 3.200000e+01 : f32
    %34 = vector.broadcast %cst_35 : f32 to vector<8x1xf32>
    %35 = arith.divf %33, %34 : vector<8x1xf32>
    %cst_36 = arith.constant 9.99999974E-6 : f32
    %36 = vector.broadcast %cst_36 : f32 to vector<8x1xf32>
    %37 = arith.addf %35, %36 : vector<8x1xf32>
    %38 = math.rsqrt %37 : vector<8x1xf32>
    %39 = vector.broadcast %38 : vector<8x1xf32> to vector<8x32xf32>
    %40 = arith.mulf %27, %39 : vector<8x32xf32>
    %c0_37 = arith.constant 0 : index
    %c0_38 = arith.constant 0 : index
    %41 = vector.load %arg4[%c0_37, %c0_38] : memref<1x32xf32, #tpu.memory_space<vmem>>, vector<1x32xf32>
    %42 = vector.broadcast %41 : vector<1x32xf32> to vector<8x32xf32>
    %43 = arith.mulf %40, %42 : vector<8x32xf32>
    %44 = arith.truncf %43 : vector<8x32xf32> to vector<8x32xbf16>
    %c0_39 = arith.constant 0 : index
    %c0_40 = arith.constant 0 : index
    %c0_41 = arith.constant 0 : index
    %45 = vector.load %arg6[%c0_39, %c0_40, %c0_41] : memref<1x8x32xbf16, #tpu.memory_space<vmem>>, vector<1x8x32xbf16>
    %46 = vector.shape_cast %45 : vector<1x8x32xbf16> to vector<8x32xbf16>
    %47 = vector.shape_cast %44 : vector<8x32xbf16> to vector<1x8x32xbf16>
    tpu.vector_store %arg6[%c0_39, %c0_40, %c0_41], %47 {strides = array<i32>} : memref<1x8x32xbf16, #tpu.memory_space<vmem>>, vector<1x8x32xbf16>,
    %48 = arith.truncf %43 : vector<8x32xf32> to vector<8x32xbf16>
    %c0_42 = arith.constant 0 : index
    %c0_43 = arith.constant 0 : index
    %49 = vector.load %arg5[%c0_42, %c0_43] : memref<32x4xbf16, #tpu.memory_space<vmem>>, vector<32x4xbf16>
    %cst_44 = arith.constant dense<0.000000e+00> : vector<8x4xf32>
    %50 = tpu.matmul %48, %49, %cst_44 {dimension_numbers = #tpu.dot_dimension_numbers<[1], [0], [0], [1], [0, 0, 1, 1], [], []>} : vector<8x32xbf16>, vector<32x4xbf16>, vector<8x4xf32> -> vector<8x4xf32>
    %c0_45 = arith.constant 0 : index
    %c0_46 = arith.constant 0 : index
    %c0_47 = arith.constant 0 : index
    %51 = vector.load %arg8[%c0_45, %c0_46, %c0_47] : memref<1x8x4xf32, #tpu.memory_space<vmem>>, vector<1x8x4xf32>
    %52 = vector.shape_cast %51 : vector<1x8x4xf32> to vector<8x4xf32>
    %53 = vector.shape_cast %50 : vector<8x4xf32> to vector<1x8x4xf32>
    tpu.vector_store %arg8[%c0_45, %c0_46, %c0_47], %53 {strides = array<i32>} : memref<1x8x4xf32, #tpu.memory_space<vmem>>, vector<1x8x4xf32>,
    return
  }
  func.func @transform_0(%arg0: i32) -> (i32, i32, i32, i32) {
    %c0_i32 = arith.constant 0 : i32
    %c0_i32_0 = arith.constant 0 : i32
    %c0_i32_1 = arith.constant 0 : i32
    %c0_i32_2 = arith.constant 0 : i32
    return %arg0, %c0_i32, %c0_i32_0, %c0_i32_1 : i32, i32, i32, i32
  }
  func.func @transform_1(%arg0: i32) -> (i32, i32, i32) {
    %c0_i32 = arith.constant 0 : i32
    %c0_i32_0 = arith.constant 0 : i32
    %c0_i32_1 = arith.constant 0 : i32
    return %arg0, %c0_i32, %c0_i32_0 : i32, i32, i32
  }
  func.func @transform_2(%arg0: i32) -> (i32, i32, i32) {
    %c0_i32 = arith.constant 0 : i32
    %c0_i32_0 = arith.constant 0 : i32
    %c0_i32_1 = arith.constant 0 : i32
    %c0_i32_2 = arith.constant 0 : i32
    return %c0_i32, %c0_i32_0, %c0_i32_1 : i32, i32, i32
  }
  func.func @transform_3(%arg0: i32) -> (i32, i32) {
    %c0_i32 = arith.constant 0 : i32
    %c0_i32_0 = arith.constant 0 : i32
    %c0_i32_1 = arith.constant 0 : i32
    return %c0_i32, %c0_i32_0 : i32, i32
  }
  func.func @transform_4(%arg0: i32) -> (i32, i32) {
    %c0_i32 = arith.constant 0 : i32
    %c0_i32_0 = arith.constant 0 : i32
    %c0_i32_1 = arith.constant 0 : i32
    return %c0_i32, %c0_i32_0 : i32, i32
  }
  func.func @transform_5(%arg0: i32) -> (i32, i32, i32) {
    %c0_i32 = arith.constant 0 : i32
    %c0_i32_0 = arith.constant 0 : i32
    %c0_i32_1 = arith.constant 0 : i32
    return %arg0, %c0_i32, %c0_i32_0 : i32, i32, i32
  }
  func.func @transform_6(%arg0: i32) -> (i32, i32, i32) {
    %c0_i32 = arith.constant 0 : i32
    %c0_i32_0 = arith.constant 0 : i32
    %c0_i32_1 = arith.constant 0 : i32
    return %arg0, %c0_i32, %c0_i32_0 : i32, i32, i32
  }
  func.func @transform_7(%arg0: i32) -> (i32, i32, i32) {
    %c0_i32 = arith.constant 0 : i32
    %c0_i32_0 = arith.constant 0 : i32
    %c0_i32_1 = arith.constant 0 : i32
    return %arg0, %c0_i32, %c0_i32_0 : i32, i32, i32
  }
}

module attributes {stable_mosaic.version = 11 : i64} {
  func.func @_attention_kernel(%arg0: i32, %arg1: i32, %arg2: memref<1x2x8x8xbf16, #tpu.memory_space<vmem>>, %arg3: memref<1x1x8x8xbf16, #tpu.memory_space<vmem>>, %arg4: memref<1x1x8x8xbf16, #tpu.memory_space<vmem>>, %arg5: memref<1x2x8x8xbf16, #tpu.memory_space<vmem>>) attributes {dimension_semantics = [#tpu.dimension_semantics<parallel>, #tpu.dimension_semantics<parallel>], iteration_bounds = array<i64: 2, 2>, scalar_prefetch = 0 : i64, scratch_operands = 0 : i64, tpu.core_type = #tpu.core_type<tc>, window_params = [{transform_indices = @transform_0, window_bounds = array<i64: 1, 2, 8, 8>}, {transform_indices = @transform_1, window_bounds = array<i64: 1, 1, 8, 8>}, {transform_indices = @transform_2, window_bounds = array<i64: 1, 1, 8, 8>}, {transform_indices = @transform_3, window_bounds = array<i64: 1, 2, 8, 8>}]} {
    %0 = tpu.iota {dimensions = array<i32: 0>} : vector<8x8xi32>
    %1 = tpu.iota {dimensions = array<i32: 1>} : vector<8x8xi32>
    %2 = arith.cmpi sle, %1, %0 : vector<8x8xi32>
    %c0 = arith.constant 0 : index
    %c0_0 = arith.constant 0 : index
    %c0_1 = arith.constant 0 : index
    %c0_2 = arith.constant 0 : index
    %3 = vector.load %arg3[%c0, %c0_0, %c0_1, %c0_2] : memref<1x1x8x8xbf16, #tpu.memory_space<vmem>>, vector<1x1x8x8xbf16>
    %4 = vector.shape_cast %3 : vector<1x1x8x8xbf16> to vector<8x8xbf16>
    %c0_3 = arith.constant 0 : index
    %c0_4 = arith.constant 0 : index
    %c0_5 = arith.constant 0 : index
    %c0_6 = arith.constant 0 : index
    %5 = vector.load %arg4[%c0_3, %c0_4, %c0_5, %c0_6] : memref<1x1x8x8xbf16, #tpu.memory_space<vmem>>, vector<1x1x8x8xbf16>
    %6 = vector.shape_cast %5 : vector<1x1x8x8xbf16> to vector<8x8xbf16>
    %c0_7 = arith.constant 0 : index
    %c0_8 = arith.constant 0 : index
    %c0_9 = arith.constant 0 : index
    %c0_10 = arith.constant 0 : index
    %7 = vector.load %arg2[%c0_7, %c0_8, %c0_9, %c0_10] : memref<1x2x8x8xbf16, #tpu.memory_space<vmem>>, vector<1x1x8x8xbf16>
    %8 = vector.shape_cast %7 : vector<1x1x8x8xbf16> to vector<8x8xbf16>
    %cst = arith.constant dense<0.000000e+00> : vector<8x8xf32>
    %9 = tpu.matmul %8, %4, %cst {dimension_numbers = #tpu.dot_dimension_numbers<[1], [1], [0], [0], [0, 0, 1, 0], [], []>} : vector<8x8xbf16>, vector<8x8xbf16>, vector<8x8xf32> -> vector<8x8xf32>
    %cst_11 = arith.constant -1.000000e+30 : f32
    %10 = vector.broadcast %cst_11 : f32 to vector<8x8xf32>
    %11 = arith.select %2, %9, %10 : vector<8x8xi1>, vector<8x8xf32>
    %cst_12 = arith.constant dense<0xFF800000> : vector<8xf32>
    %12 = vector.multi_reduction <maximumf>, %11, %cst_12 [1] : vector<8x8xf32> to vector<8xf32>
    %13 = vector.shape_cast %12 : vector<8xf32> to vector<8x1xf32>
    %14 = vector.broadcast %13 : vector<8x1xf32> to vector<8x8xf32>
    %15 = arith.subf %11, %14 : vector<8x8xf32>
    %16 = math.exp %15 : vector<8x8xf32>
    %cst_13 = arith.constant dense<0.000000e+00> : vector<8xf32>
    %17 = vector.multi_reduction <add>, %16, %cst_13 [1] : vector<8x8xf32> to vector<8xf32>
    %18 = vector.shape_cast %17 : vector<8xf32> to vector<8x1xf32>
    %19 = tpu.reciprocal %18 {approx = true} : vector<8x1xf32> -> vector<8x1xf32>
    %20 = arith.truncf %16 : vector<8x8xf32> to vector<8x8xbf16>
    %cst_14 = arith.constant dense<0.000000e+00> : vector<8x8xf32>
    %21 = tpu.matmul %20, %6, %cst_14 {dimension_numbers = #tpu.dot_dimension_numbers<[1], [0], [0], [1], [0, 0, 1, 1], [], []>} : vector<8x8xbf16>, vector<8x8xbf16>, vector<8x8xf32> -> vector<8x8xf32>
    %22 = vector.broadcast %19 : vector<8x1xf32> to vector<8x8xf32>
    %23 = arith.mulf %21, %22 : vector<8x8xf32>
    %24 = arith.truncf %23 : vector<8x8xf32> to vector<8x8xbf16>
    %c0_15 = arith.constant 0 : index
    %c0_16 = arith.constant 0 : index
    %c0_17 = arith.constant 0 : index
    %c0_18 = arith.constant 0 : index
    %25 = vector.load %arg5[%c0_15, %c0_16, %c0_17, %c0_18] : memref<1x2x8x8xbf16, #tpu.memory_space<vmem>>, vector<1x1x8x8xbf16>
    %26 = vector.shape_cast %25 : vector<1x1x8x8xbf16> to vector<8x8xbf16>
    %27 = vector.shape_cast %24 : vector<8x8xbf16> to vector<1x1x8x8xbf16>
    tpu.vector_store %arg5[%c0_15, %c0_16, %c0_17, %c0_18], %27 {strides = array<i32>} : memref<1x2x8x8xbf16, #tpu.memory_space<vmem>>, vector<1x1x8x8xbf16>,
    %c0_19 = arith.constant 0 : index
    %c1 = arith.constant 1 : index
    %c0_20 = arith.constant 0 : index
    %c0_21 = arith.constant 0 : index
    %28 = vector.load %arg2[%c0_19, %c1, %c0_20, %c0_21] : memref<1x2x8x8xbf16, #tpu.memory_space<vmem>>, vector<1x1x8x8xbf16>
    %29 = vector.shape_cast %28 : vector<1x1x8x8xbf16> to vector<8x8xbf16>
    %cst_22 = arith.constant dense<0.000000e+00> : vector<8x8xf32>
    %30 = tpu.matmul %29, %4, %cst_22 {dimension_numbers = #tpu.dot_dimension_numbers<[1], [1], [0], [0], [0, 0, 1, 0], [], []>} : vector<8x8xbf16>, vector<8x8xbf16>, vector<8x8xf32> -> vector<8x8xf32>
    %cst_23 = arith.constant -1.000000e+30 : f32
    %31 = vector.broadcast %cst_23 : f32 to vector<8x8xf32>
    %32 = arith.select %2, %30, %31 : vector<8x8xi1>, vector<8x8xf32>
    %cst_24 = arith.constant dense<0xFF800000> : vector<8xf32>
    %33 = vector.multi_reduction <maximumf>, %32, %cst_24 [1] : vector<8x8xf32> to vector<8xf32>
    %34 = vector.shape_cast %33 : vector<8xf32> to vector<8x1xf32>
    %35 = vector.broadcast %34 : vector<8x1xf32> to vector<8x8xf32>
    %36 = arith.subf %32, %35 : vector<8x8xf32>
    %37 = math.exp %36 : vector<8x8xf32>
    %cst_25 = arith.constant dense<0.000000e+00> : vector<8xf32>
    %38 = vector.multi_reduction <add>, %37, %cst_25 [1] : vector<8x8xf32> to vector<8xf32>
    %39 = vector.shape_cast %38 : vector<8xf32> to vector<8x1xf32>
    %40 = tpu.reciprocal %39 {approx = true} : vector<8x1xf32> -> vector<8x1xf32>
    %41 = arith.truncf %37 : vector<8x8xf32> to vector<8x8xbf16>
    %cst_26 = arith.constant dense<0.000000e+00> : vector<8x8xf32>
    %42 = tpu.matmul %41, %6, %cst_26 {dimension_numbers = #tpu.dot_dimension_numbers<[1], [0], [0], [1], [0, 0, 1, 1], [], []>} : vector<8x8xbf16>, vector<8x8xbf16>, vector<8x8xf32> -> vector<8x8xf32>
    %43 = vector.broadcast %40 : vector<8x1xf32> to vector<8x8xf32>
    %44 = arith.mulf %42, %43 : vector<8x8xf32>
    %45 = arith.truncf %44 : vector<8x8xf32> to vector<8x8xbf16>
    %c0_27 = arith.constant 0 : index
    %c1_28 = arith.constant 1 : index
    %c0_29 = arith.constant 0 : index
    %c0_30 = arith.constant 0 : index
    %46 = vector.load %arg5[%c0_27, %c1_28, %c0_29, %c0_30] : memref<1x2x8x8xbf16, #tpu.memory_space<vmem>>, vector<1x1x8x8xbf16>
    %47 = vector.shape_cast %46 : vector<1x1x8x8xbf16> to vector<8x8xbf16>
    %48 = vector.shape_cast %45 : vector<8x8xbf16> to vector<1x1x8x8xbf16>
    tpu.vector_store %arg5[%c0_27, %c1_28, %c0_29, %c0_30], %48 {strides = array<i32>} : memref<1x2x8x8xbf16, #tpu.memory_space<vmem>>, vector<1x1x8x8xbf16>,
    return
  }
  func.func @transform_0(%arg0: i32, %arg1: i32) -> (i32, i32, i32, i32) {
    %c0_i32 = arith.constant 0 : i32
    %c0_i32_0 = arith.constant 0 : i32
    %c0_i32_1 = arith.constant 0 : i32
    return %arg0, %arg1, %c0_i32, %c0_i32_0 : i32, i32, i32, i32
  }
  func.func @transform_1(%arg0: i32, %arg1: i32) -> (i32, i32, i32, i32) {
    %c0_i32 = arith.constant 0 : i32
    %c0_i32_0 = arith.constant 0 : i32
    %c0_i32_1 = arith.constant 0 : i32
    return %arg0, %arg1, %c0_i32, %c0_i32_0 : i32, i32, i32, i32
  }
  func.func @transform_2(%arg0: i32, %arg1: i32) -> (i32, i32, i32, i32) {
    %c0_i32 = arith.constant 0 : i32
    %c0_i32_0 = arith.constant 0 : i32
    %c0_i32_1 = arith.constant 0 : i32
    return %arg0, %arg1, %c0_i32, %c0_i32_0 : i32, i32, i32, i32
  }
  func.func @transform_3(%arg0: i32, %arg1: i32) -> (i32, i32, i32, i32) {
    %c0_i32 = arith.constant 0 : i32
    %c0_i32_0 = arith.constant 0 : i32
    %c0_i32_1 = arith.constant 0 : i32
    return %arg0, %arg1, %c0_i32, %c0_i32_0 : i32, i32, i32, i32
  }
}

module attributes {stable_mosaic.version = 11 : i64} {
  func.func @_norm_qkv_rope_kernel(%arg0: i32, %arg1: memref<1x8x32xf32, #tpu.memory_space<vmem>>, %arg2: memref<1x8x32xf32, #tpu.memory_space<vmem>>, %arg3: memref<1x32xf32, #tpu.memory_space<vmem>>, %arg4: memref<32x64xbf16, #tpu.memory_space<vmem>>, %arg5: memref<1x8x4xf32, #tpu.memory_space<vmem>>, %arg6: memref<1x8x4xf32, #tpu.memory_space<vmem>>, %arg7: memref<1x8x32xf32, #tpu.memory_space<vmem>>, %arg8: memref<1x4x8x8xbf16, #tpu.memory_space<vmem>>, %arg9: memref<1x2x8x8xbf16, #tpu.memory_space<vmem>>, %arg10: memref<1x2x8x8xbf16, #tpu.memory_space<vmem>>) attributes {dimension_semantics = [#tpu.dimension_semantics<parallel>], iteration_bounds = array<i64: 2>, scalar_prefetch = 0 : i64, scratch_operands = 0 : i64, tpu.core_type = #tpu.core_type<tc>, window_params = [{transform_indices = @transform_0, window_bounds = array<i64: 1, 8, 32>}, {transform_indices = @transform_1, window_bounds = array<i64: 1, 8, 32>}, {pipeline_mode = #tpu.pipeline_mode<synchronous>, transform_indices = @transform_2, window_bounds = array<i64: 1, 32>}, {pipeline_mode = #tpu.pipeline_mode<synchronous>, transform_indices = @transform_3, window_bounds = array<i64: 32, 64>}, {transform_indices = @transform_4, window_bounds = array<i64: 1, 8, 4>}, {transform_indices = @transform_5, window_bounds = array<i64: 1, 8, 4>}, {transform_indices = @transform_6, window_bounds = array<i64: 1, 8, 32>}, {transform_indices = @transform_7, window_bounds = array<i64: 1, 4, 8, 8>}, {transform_indices = @transform_8, window_bounds = array<i64: 1, 2, 8, 8>}, {transform_indices = @transform_9, window_bounds = array<i64: 1, 2, 8, 8>}]} {
    %c0 = arith.constant 0 : index
    %c0_0 = arith.constant 0 : index
    %c0_1 = arith.constant 0 : index
    %0 = vector.load %arg1[%c0, %c0_0, %c0_1] : memref<1x8x32xf32, #tpu.memory_space<vmem>>, vector<1x8x32xf32>
    %1 = vector.shape_cast %0 : vector<1x8x32xf32> to vector<8x32xf32>
    %c0_2 = arith.constant 0 : index
    %c0_3 = arith.constant 0 : index
    %c0_4 = arith.constant 0 : index
    %2 = vector.load %arg7[%c0_2, %c0_3, %c0_4] : memref<1x8x32xf32, #tpu.memory_space<vmem>>, vector<1x8x32xf32>
    %3 = vector.shape_cast %2 : vector<1x8x32xf32> to vector<8x32xf32>
    %4 = vector.shape_cast %1 : vector<8x32xf32> to vector<1x8x32xf32>
    tpu.vector_store %arg7[%c0_2, %c0_3, %c0_4], %4 {strides = array<i32>} : memref<1x8x32xf32, #tpu.memory_space<vmem>>, vector<1x8x32xf32>,
    %5 = arith.mulf %1, %1 : vector<8x32xf32>
    %cst = arith.constant dense<0.000000e+00> : vector<8xf32>
    %6 = vector.multi_reduction <add>, %5, %cst [1] : vector<8x32xf32> to vector<8xf32>
    %7 = vector.shape_cast %6 : vector<8xf32> to vector<8x1xf32>
    %cst_5 = arith.constant 3.200000e+01 : f32
    %8 = vector.broadcast %cst_5 : f32 to vector<8x1xf32>
    %9 = arith.divf %7, %8 : vector<8x1xf32>
    %cst_6 = arith.constant 9.99999974E-6 : f32
    %10 = vector.broadcast %cst_6 : f32 to vector<8x1xf32>
    %11 = arith.addf %9, %10 : vector<8x1xf32>
    %12 = math.rsqrt %11 : vector<8x1xf32>
    %13 = vector.broadcast %12 : vector<8x1xf32> to vector<8x32xf32>
    %14 = arith.mulf %1, %13 : vector<8x32xf32>
    %c0_7 = arith.constant 0 : index
    %c0_8 = arith.constant 0 : index
    %15 = vector.load %arg3[%c0_7, %c0_8] : memref<1x32xf32, #tpu.memory_space<vmem>>, vector<1x32xf32>
    %16 = vector.broadcast %15 : vector<1x32xf32> to vector<8x32xf32>
    %17 = arith.mulf %14, %16 : vector<8x32xf32>
    %18 = arith.truncf %17 : vector<8x32xf32> to vector<8x32xbf16>
    %c0_9 = arith.constant 0 : index
    %c0_10 = arith.constant 0 : index
    %19 = vector.load %arg4[%c0_9, %c0_10] : memref<32x64xbf16, #tpu.memory_space<vmem>>, vector<32x64xbf16>
    %cst_11 = arith.constant dense<0.000000e+00> : vector<8x64xf32>
    %20 = tpu.matmul %18, %19, %cst_11 {dimension_numbers = #tpu.dot_dimension_numbers<[1], [0], [0], [1], [0, 0, 1, 1], [], []>} : vector<8x32xbf16>, vector<32x64xbf16>, vector<8x64xf32> -> vector<8x64xf32>
    %c0_12 = arith.constant 0 : index
    %c0_13 = arith.constant 0 : index
    %c0_14 = arith.constant 0 : index
    %21 = vector.load %arg5[%c0_12, %c0_13, %c0_14] : memref<1x8x4xf32, #tpu.memory_space<vmem>>, vector<1x8x4xf32>
    %22 = vector.shape_cast %21 : vector<1x8x4xf32> to vector<8x4xf32>
    %c0_15 = arith.constant 0 : index
    %c0_16 = arith.constant 0 : index
    %c0_17 = arith.constant 0 : index
    %23 = vector.load %arg6[%c0_15, %c0_16, %c0_17] : memref<1x8x4xf32, #tpu.memory_space<vmem>>, vector<1x8x4xf32>
    %24 = vector.shape_cast %23 : vector<1x8x4xf32> to vector<8x4xf32>
    %25 = vector.extract_strided_slice %20 {offsets = [0, 0], sizes = [8, 4], strides = [1, 1]} : vector<8x64xf32> to vector<8x4xf32>
    %26 = vector.extract_strided_slice %20 {offsets = [0, 4], sizes = [8, 4], strides = [1, 1]} : vector<8x64xf32> to vector<8x4xf32>
    %27 = arith.mulf %25, %22 : vector<8x4xf32>
    %28 = arith.mulf %26, %24 : vector<8x4xf32>
    %29 = arith.subf %27, %28 : vector<8x4xf32>
    %cst_18 = arith.constant 0.353553385 : f32
    %30 = vector.broadcast %cst_18 : f32 to vector<8x4xf32>
    %31 = arith.mulf %29, %30 : vector<8x4xf32>
    %32 = arith.truncf %31 : vector<8x4xf32> to vector<8x4xbf16>
    %c0_19 = arith.constant 0 : index
    %c0_20 = arith.constant 0 : index
    %c0_21 = arith.constant 0 : index
    %c0_22 = arith.constant 0 : index
    %33 = vector.load %arg8[%c0_19, %c0_20, %c0_21, %c0_22] : memref<1x4x8x8xbf16, #tpu.memory_space<vmem>>, vector<1x1x8x4xbf16>
    %34 = vector.shape_cast %33 : vector<1x1x8x4xbf16> to vector<8x4xbf16>
    %35 = vector.shape_cast %32 : vector<8x4xbf16> to vector<1x1x8x4xbf16>
    tpu.vector_store %arg8[%c0_19, %c0_20, %c0_21, %c0_22], %35 {strides = array<i32>} : memref<1x4x8x8xbf16, #tpu.memory_space<vmem>>, vector<1x1x8x4xbf16>,
    %36 = arith.mulf %26, %22 : vector<8x4xf32>
    %37 = arith.mulf %25, %24 : vector<8x4xf32>
    %38 = arith.addf %36, %37 : vector<8x4xf32>
    %cst_23 = arith.constant 0.353553385 : f32
    %39 = vector.broadcast %cst_23 : f32 to vector<8x4xf32>
    %40 = arith.mulf %38, %39 : vector<8x4xf32>
    %41 = arith.truncf %40 : vector<8x4xf32> to vector<8x4xbf16>
    %c0_24 = arith.constant 0 : index
    %c0_25 = arith.constant 0 : index
    %c0_26 = arith.constant 0 : index
    %c4 = arith.constant 4 : index
    %42 = vector.load %arg8[%c0_24, %c0_25, %c0_26, %c4] : memref<1x4x8x8xbf16, #tpu.memory_space<vmem>>, vector<1x1x8x4xbf16>
    %43 = vector.shape_cast %42 : vector<1x1x8x4xbf16> to vector<8x4xbf16>
    %44 = vector.shape_cast %41 : vector<8x4xbf16> to vector<1x1x8x4xbf16>
    tpu.vector_store %arg8[%c0_24, %c0_25, %c0_26, %c4], %44 {strides = array<i32>} : memref<1x4x8x8xbf16, #tpu.memory_space<vmem>>, vector<1x1x8x4xbf16>,
    %45 = vector.extract_strided_slice %20 {offsets = [0, 8], sizes = [8, 4], strides = [1, 1]} : vector<8x64xf32> to vector<8x4xf32>
    %46 = vector.extract_strided_slice %20 {offsets = [0, 12], sizes = [8, 4], strides = [1, 1]} : vector<8x64xf32> to vector<8x4xf32>
    %47 = arith.mulf %45, %22 : vector<8x4xf32>
    %48 = arith.mulf %46, %24 : vector<8x4xf32>
    %49 = arith.subf %47, %48 : vector<8x4xf32>
    %cst_27 = arith.constant 0.353553385 : f32
    %50 = vector.broadcast %cst_27 : f32 to vector<8x4xf32>
    %51 = arith.mulf %49, %50 : vector<8x4xf32>
    %52 = arith.truncf %51 : vector<8x4xf32> to vector<8x4xbf16>
    %c0_28 = arith.constant 0 : index
    %c1 = arith.constant 1 : index
    %c0_29 = arith.constant 0 : index
    %c0_30 = arith.constant 0 : index
    %53 = vector.load %arg8[%c0_28, %c1, %c0_29, %c0_30] : memref<1x4x8x8xbf16, #tpu.memory_space<vmem>>, vector<1x1x8x4xbf16>
    %54 = vector.shape_cast %53 : vector<1x1x8x4xbf16> to vector<8x4xbf16>
    %55 = vector.shape_cast %52 : vector<8x4xbf16> to vector<1x1x8x4xbf16>
    tpu.vector_store %arg8[%c0_28, %c1, %c0_29, %c0_30], %55 {strides = array<i32>} : memref<1x4x8x8xbf16, #tpu.memory_space<vmem>>, vector<1x1x8x4xbf16>,
    %56 = arith.mulf %46, %22 : vector<8x4xf32>
    %57 = arith.mulf %45, %24 : vector<8x4xf32>
    %58 = arith.addf %56, %57 : vector<8x4xf32>
    %cst_31 = arith.constant 0.353553385 : f32
    %59 = vector.broadcast %cst_31 : f32 to vector<8x4xf32>
    %60 = arith.mulf %58, %59 : vector<8x4xf32>
    %61 = arith.truncf %60 : vector<8x4xf32> to vector<8x4xbf16>
    %c0_32 = arith.constant 0 : index
    %c1_33 = arith.constant 1 : index
    %c0_34 = arith.constant 0 : index
    %c4_35 = arith.constant 4 : index
    %62 = vector.load %arg8[%c0_32, %c1_33, %c0_34, %c4_35] : memref<1x4x8x8xbf16, #tpu.memory_space<vmem>>, vector<1x1x8x4xbf16>
    %63 = vector.shape_cast %62 : vector<1x1x8x4xbf16> to vector<8x4xbf16>
    %64 = vector.shape_cast %61 : vector<8x4xbf16> to vector<1x1x8x4xbf16>
    tpu.vector_store %arg8[%c0_32, %c1_33, %c0_34, %c4_35], %64 {strides = array<i32>} : memref<1x4x8x8xbf16, #tpu.memory_space<vmem>>, vector<1x1x8x4xbf16>,
    %65 = vector.extract_strided_slice %20 {offsets = [0, 16], sizes = [8, 4], strides = [1, 1]} : vector<8x64xf32> to vector<8x4xf32>
    %66 = vector.extract_strided_slice %20 {offsets = [0, 20], sizes = [8, 4], strides = [1, 1]} : vector<8x64xf32> to vector<8x4xf32>
    %67 = arith.mulf %65, %22 : vector<8x4xf32>
    %68 = arith.mulf %66, %24 : vector<8x4xf32>
    %69 = arith.subf %67, %68 : vector<8x4xf32>
    %cst_36 = arith.constant 0.353553385 : f32
    %70 = vector.broadcast %cst_36 : f32 to vector<8x4xf32>
    %71 = arith.mulf %69, %70 : vector<8x4xf32>
    %72 = arith.truncf %71 : vector<8x4xf32> to vector<8x4xbf16>
    %c0_37 = arith.constant 0 : index
    %c2 = arith.constant 2 : index
    %c0_38 = arith.constant 0 : index
    %c0_39 = arith.constant 0 : index
    %73 = vector.load %arg8[%c0_37, %c2, %c0_38, %c0_39] : memref<1x4x8x8xbf16, #tpu.memory_space<vmem>>, vector<1x1x8x4xbf16>
    %74 = vector.shape_cast %73 : vector<1x1x8x4xbf16> to vector<8x4xbf16>
    %75 = vector.shape_cast %72 : vector<8x4xbf16> to vector<1x1x8x4xbf16>
    tpu.vector_store %arg8[%c0_37, %c2, %c0_38, %c0_39], %75 {strides = array<i32>} : memref<1x4x8x8xbf16, #tpu.memory_space<vmem>>, vector<1x1x8x4xbf16>,
    %76 = arith.mulf %66, %22 : vector<8x4xf32>
    %77 = arith.mulf %65, %24 : vector<8x4xf32>
    %78 = arith.addf %76, %77 : vector<8x4xf32>
    %cst_40 = arith.constant 0.353553385 : f32
    %79 = vector.broadcast %cst_40 : f32 to vector<8x4xf32>
    %80 = arith.mulf %78, %79 : vector<8x4xf32>
    %81 = arith.truncf %80 : vector<8x4xf32> to vector<8x4xbf16>
    %c0_41 = arith.constant 0 : index
    %c2_42 = arith.constant 2 : index
    %c0_43 = arith.constant 0 : index
    %c4_44 = arith.constant 4 : index
    %82 = vector.load %arg8[%c0_41, %c2_42, %c0_43, %c4_44] : memref<1x4x8x8xbf16, #tpu.memory_space<vmem>>, vector<1x1x8x4xbf16>
    %83 = vector.shape_cast %82 : vector<1x1x8x4xbf16> to vector<8x4xbf16>
    %84 = vector.shape_cast %81 : vector<8x4xbf16> to vector<1x1x8x4xbf16>
    tpu.vector_store %arg8[%c0_41, %c2_42, %c0_43, %c4_44], %84 {strides = array<i32>} : memref<1x4x8x8xbf16, #tpu.memory_space<vmem>>, vector<1x1x8x4xbf16>,
    %85 = vector.extract_strided_slice %20 {offsets = [0, 24], sizes = [8, 4], strides = [1, 1]} : vector<8x64xf32> to vector<8x4xf32>
    %86 = vector.extract_strided_slice %20 {offsets = [0, 28], sizes = [8, 4], strides = [1, 1]} : vector<8x64xf32> to vector<8x4xf32>
    %87 = arith.mulf %85, %22 : vector<8x4xf32>
    %88 = arith.mulf %86, %24 : vector<8x4xf32>
    %89 = arith.subf %87, %88 : vector<8x4xf32>
    %cst_45 = arith.constant 0.353553385 : f32
    %90 = vector.broadcast %cst_45 : f32 to vector<8x4xf32>
    %91 = arith.mulf %89, %90 : vector<8x4xf32>
    %92 = arith.truncf %91 : vector<8x4xf32> to vector<8x4xbf16>
    %c0_46 = arith.constant 0 : index
    %c3 = arith.constant 3 : index
    %c0_47 = arith.constant 0 : index
    %c0_48 = arith.constant 0 : index
    %93 = vector.load %arg8[%c0_46, %c3, %c0_47, %c0_48] : memref<1x4x8x8xbf16, #tpu.memory_space<vmem>>, vector<1x1x8x4xbf16>
    %94 = vector.shape_cast %93 : vector<1x1x8x4xbf16> to vector<8x4xbf16>
    %95 = vector.shape_cast %92 : vector<8x4xbf16> to vector<1x1x8x4xbf16>
    tpu.vector_store %arg8[%c0_46, %c3, %c0_47, %c0_48], %95 {strides = array<i32>} : memref<1x4x8x8xbf16, #tpu.memory_space<vmem>>, vector<1x1x8x4xbf16>,
    %96 = arith.mulf %86, %22 : vector<8x4xf32>
    %97 = arith.mulf %85, %24 : vector<8x4xf32>
    %98 = arith.addf %96, %97 : vector<8x4xf32>
    %cst_49 = arith.constant 0.353553385 : f32
    %99 = vector.broadcast %cst_49 : f32 to vector<8x4xf32>
    %100 = arith.mulf %98, %99 : vector<8x4xf32>
    %101 = arith.truncf %100 : vector<8x4xf32> to vector<8x4xbf16>
    %c0_50 = arith.constant 0 : index
    %c3_51 = arith.constant 3 : index
    %c0_52 = arith.constant 0 : index
    %c4_53 = arith.constant 4 : index
    %102 = vector.load %arg8[%c0_50, %c3_51, %c0_52, %c4_53] : memref<1x4x8x8xbf16, #tpu.memory_space<vmem>>, vector<1x1x8x4xbf16>
    %103 = vector.shape_cast %102 : vector<1x1x8x4xbf16> to vector<8x4xbf16>
    %104 = vector.shape_cast %101 : vector<8x4xbf16> to vector<1x1x8x4xbf16>
    tpu.vector_store %arg8[%c0_50, %c3_51, %c0_52, %c4_53], %104 {strides = array<i32>} : memref<1x4x8x8xbf16, #tpu.memory_space<vmem>>, vector<1x1x8x4xbf16>,
    %105 = vector.extract_strided_slice %20 {offsets = [0, 32], sizes = [8, 4], strides = [1, 1]} : vector<8x64xf32> to vector<8x4xf32>
    %106 = vector.extract_strided_slice %20 {offsets = [0, 36], sizes = [8, 4], strides = [1, 1]} : vector<8x64xf32> to vector<8x4xf32>
    %107 = arith.mulf %105, %22 : vector<8x4xf32>
    %108 = arith.mulf %106, %24 : vector<8x4xf32>
    %109 = arith.subf %107, %108 : vector<8x4xf32>
    %110 = arith.truncf %109 : vector<8x4xf32> to vector<8x4xbf16>
    %c0_54 = arith.constant 0 : index
    %c0_55 = arith.constant 0 : index
    %c0_56 = arith.constant 0 : index
    %c0_57 = arith.constant 0 : index
    %111 = vector.load %arg9[%c0_54, %c0_55, %c0_56, %c0_57] : memref<1x2x8x8xbf16, #tpu.memory_space<vmem>>, vector<1x1x8x4xbf16>
    %112 = vector.shape_cast %111 : vector<1x1x8x4xbf16> to vector<8x4xbf16>
    %113 = vector.shape_cast %110 : vector<8x4xbf16> to vector<1x1x8x4xbf16>
    tpu.vector_store %arg9[%c0_54, %c0_55, %c0_56, %c0_57], %113 {strides = array<i32>} : memref<1x2x8x8xbf16, #tpu.memory_space<vmem>>, vector<1x1x8x4xbf16>,
    %114 = arith.mulf %106, %22 : vector<8x4xf32>
    %115 = arith.mulf %105, %24 : vector<8x4xf32>
    %116 = arith.addf %114, %115 : vector<8x4xf32>
    %117 = arith.truncf %116 : vector<8x4xf32> to vector<8x4xbf16>
    %c0_58 = arith.constant 0 : index
    %c0_59 = arith.constant 0 : index
    %c0_60 = arith.constant 0 : index
    %c4_61 = arith.constant 4 : index
    %118 = vector.load %arg9[%c0_58, %c0_59, %c0_60, %c4_61] : memref<1x2x8x8xbf16, #tpu.memory_space<vmem>>, vector<1x1x8x4xbf16>
    %119 = vector.shape_cast %118 : vector<1x1x8x4xbf16> to vector<8x4xbf16>
    %120 = vector.shape_cast %117 : vector<8x4xbf16> to vector<1x1x8x4xbf16>
    tpu.vector_store %arg9[%c0_58, %c0_59, %c0_60, %c4_61], %120 {strides = array<i32>} : memref<1x2x8x8xbf16, #tpu.memory_space<vmem>>, vector<1x1x8x4xbf16>,
    %121 = vector.extract_strided_slice %20 {offsets = [0, 48], sizes = [8, 8], strides = [1, 1]} : vector<8x64xf32> to vector<8x8xf32>
    %122 = arith.truncf %121 : vector<8x8xf32> to vector<8x8xbf16>
    %c0_62 = arith.constant 0 : index
    %c0_63 = arith.constant 0 : index
    %c0_64 = arith.constant 0 : index
    %c0_65 = arith.constant 0 : index
    %123 = vector.load %arg10[%c0_62, %c0_63, %c0_64, %c0_65] : memref<1x2x8x8xbf16, #tpu.memory_space<vmem>>, vector<1x1x8x8xbf16>
    %124 = vector.shape_cast %123 : vector<1x1x8x8xbf16> to vector<8x8xbf16>
    %125 = vector.shape_cast %122 : vector<8x8xbf16> to vector<1x1x8x8xbf16>
    tpu.vector_store %arg10[%c0_62, %c0_63, %c0_64, %c0_65], %125 {strides = array<i32>} : memref<1x2x8x8xbf16, #tpu.memory_space<vmem>>, vector<1x1x8x8xbf16>,
    %126 = vector.extract_strided_slice %20 {offsets = [0, 40], sizes = [8, 4], strides = [1, 1]} : vector<8x64xf32> to vector<8x4xf32>
    %127 = vector.extract_strided_slice %20 {offsets = [0, 44], sizes = [8, 4], strides = [1, 1]} : vector<8x64xf32> to vector<8x4xf32>
    %128 = arith.mulf %126, %22 : vector<8x4xf32>
    %129 = arith.mulf %127, %24 : vector<8x4xf32>
    %130 = arith.subf %128, %129 : vector<8x4xf32>
    %131 = arith.truncf %130 : vector<8x4xf32> to vector<8x4xbf16>
    %c0_66 = arith.constant 0 : index
    %c1_67 = arith.constant 1 : index
    %c0_68 = arith.constant 0 : index
    %c0_69 = arith.constant 0 : index
    %132 = vector.load %arg9[%c0_66, %c1_67, %c0_68, %c0_69] : memref<1x2x8x8xbf16, #tpu.memory_space<vmem>>, vector<1x1x8x4xbf16>
    %133 = vector.shape_cast %132 : vector<1x1x8x4xbf16> to vector<8x4xbf16>
    %134 = vector.shape_cast %131 : vector<8x4xbf16> to vector<1x1x8x4xbf16>
    tpu.vector_store %arg9[%c0_66, %c1_67, %c0_68, %c0_69], %134 {strides = array<i32>} : memref<1x2x8x8xbf16, #tpu.memory_space<vmem>>, vector<1x1x8x4xbf16>,
    %135 = arith.mulf %127, %22 : vector<8x4xf32>
    %136 = arith.mulf %126, %24 : vector<8x4xf32>
    %137 = arith.addf %135, %136 : vector<8x4xf32>
    %138 = arith.truncf %137 : vector<8x4xf32> to vector<8x4xbf16>
    %c0_70 = arith.constant 0 : index
    %c1_71 = arith.constant 1 : index
    %c0_72 = arith.constant 0 : index
    %c4_73 = arith.constant 4 : index
    %139 = vector.load %arg9[%c0_70, %c1_71, %c0_72, %c4_73] : memref<1x2x8x8xbf16, #tpu.memory_space<vmem>>, vector<1x1x8x4xbf16>
    %140 = vector.shape_cast %139 : vector<1x1x8x4xbf16> to vector<8x4xbf16>
    %141 = vector.shape_cast %138 : vector<8x4xbf16> to vector<1x1x8x4xbf16>
    tpu.vector_store %arg9[%c0_70, %c1_71, %c0_72, %c4_73], %141 {strides = array<i32>} : memref<1x2x8x8xbf16, #tpu.memory_space<vmem>>, vector<1x1x8x4xbf16>,
    %142 = vector.extract_strided_slice %20 {offsets = [0, 56], sizes = [8, 8], strides = [1, 1]} : vector<8x64xf32> to vector<8x8xf32>
    %143 = arith.truncf %142 : vector<8x8xf32> to vector<8x8xbf16>
    %c0_74 = arith.constant 0 : index
    %c1_75 = arith.constant 1 : index
    %c0_76 = arith.constant 0 : index
    %c0_77 = arith.constant 0 : index
    %144 = vector.load %arg10[%c0_74, %c1_75, %c0_76, %c0_77] : memref<1x2x8x8xbf16, #tpu.memory_space<vmem>>, vector<1x1x8x8xbf16>
    %145 = vector.shape_cast %144 : vector<1x1x8x8xbf16> to vector<8x8xbf16>
    %146 = vector.shape_cast %143 : vector<8x8xbf16> to vector<1x1x8x8xbf16>
    tpu.vector_store %arg10[%c0_74, %c1_75, %c0_76, %c0_77], %146 {strides = array<i32>} : memref<1x2x8x8xbf16, #tpu.memory_space<vmem>>, vector<1x1x8x8xbf16>,
    return
  }
  func.func @transform_0(%arg0: i32) -> (i32, i32, i32) {
    %c0_i32 = arith.constant 0 : i32
    %c0_i32_0 = arith.constant 0 : i32
    %c0_i32_1 = arith.constant 0 : i32
    return %arg0, %c0_i32, %c0_i32_0 : i32, i32, i32
  }
  func.func @transform_1(%arg0: i32) -> (i32, i32, i32) {
    %c0_i32 = arith.constant 0 : i32
    %c0_i32_0 = arith.constant 0 : i32
    %c0_i32_1 = arith.constant 0 : i32
    return %arg0, %c0_i32, %c0_i32_0 : i32, i32, i32
  }
  func.func @transform_2(%arg0: i32) -> (i32, i32) {
    %c0_i32 = arith.constant 0 : i32
    %c0_i32_0 = arith.constant 0 : i32
    %c0_i32_1 = arith.constant 0 : i32
    return %c0_i32, %c0_i32_0 : i32, i32
  }
  func.func @transform_3(%arg0: i32) -> (i32, i32) {
    %c0_i32 = arith.constant 0 : i32
    %c0_i32_0 = arith.constant 0 : i32
    %c0_i32_1 = arith.constant 0 : i32
    return %c0_i32, %c0_i32_0 : i32, i32
  }
  func.func @transform_4(%arg0: i32) -> (i32, i32, i32) {
    %c0_i32 = arith.constant 0 : i32
    %c0_i32_0 = arith.constant 0 : i32
    %c0_i32_1 = arith.constant 0 : i32
    return %arg0, %c0_i32, %c0_i32_0 : i32, i32, i32
  }
  func.func @transform_5(%arg0: i32) -> (i32, i32, i32) {
    %c0_i32 = arith.constant 0 : i32
    %c0_i32_0 = arith.constant 0 : i32
    %c0_i32_1 = arith.constant 0 : i32
    return %arg0, %c0_i32, %c0_i32_0 : i32, i32, i32
  }
  func.func @transform_6(%arg0: i32) -> (i32, i32, i32) {
    %c0_i32 = arith.constant 0 : i32
    %c0_i32_0 = arith.constant 0 : i32
    %c0_i32_1 = arith.constant 0 : i32
    return %arg0, %c0_i32, %c0_i32_0 : i32, i32, i32
  }
  func.func @transform_7(%arg0: i32) -> (i32, i32, i32, i32) {
    %c0_i32 = arith.constant 0 : i32
    %c0_i32_0 = arith.constant 0 : i32
    %c0_i32_1 = arith.constant 0 : i32
    %c0_i32_2 = arith.constant 0 : i32
    return %arg0, %c0_i32, %c0_i32_0, %c0_i32_1 : i32, i32, i32, i32
  }
  func.func @transform_8(%arg0: i32) -> (i32, i32, i32, i32) {
    %c0_i32 = arith.constant 0 : i32
    %c0_i32_0 = arith.constant 0 : i32
    %c0_i32_1 = arith.constant 0 : i32
    %c0_i32_2 = arith.constant 0 : i32
    return %arg0, %c0_i32, %c0_i32_0, %c0_i32_1 : i32, i32, i32, i32
  }
  func.func @transform_9(%arg0: i32) -> (i32, i32, i32, i32) {
    %c0_i32 = arith.constant 0 : i32
    %c0_i32_0 = arith.constant 0 : i32
    %c0_i32_1 = arith.constant 0 : i32
    %c0_i32_2 = arith.constant 0 : i32
    return %arg0, %c0_i32, %c0_i32_0, %c0_i32_1 : i32, i32, i32, i32
  }
}

module attributes {stable_mosaic.version = 11 : i64} {
  func.func @_moe_kernel(%arg0: i32, %arg1: i32, %arg2: memref<4xi32, #tpu.memory_space<smem>>, %arg3: memref<16x32xbf16, #tpu.memory_space<vmem>>, %arg4: memref<1x32x64xbf16, #tpu.memory_space<vmem>>, %arg5: memref<1x32x64xbf16, #tpu.memory_space<vmem>>, %arg6: memref<1x64x32xbf16, #tpu.memory_space<vmem>>, %arg7: memref<1x16x1xf32, #tpu.memory_space<vmem>>, %arg8: memref<16x32xf32, #tpu.memory_space<vmem>>) attributes {dimension_semantics = [#tpu.dimension_semantics<parallel>, #tpu.dimension_semantics<arbitrary>], iteration_bounds = array<i64: 1, 4>, scalar_prefetch = 1 : i64, scratch_operands = 0 : i64, tpu.core_type = #tpu.core_type<tc>, window_params = [{transform_indices = @transform_0, window_bounds = array<i64: 16, 32>}, {transform_indices = @transform_1, window_bounds = array<i64: 1, 32, 64>}, {transform_indices = @transform_2, window_bounds = array<i64: 1, 32, 64>}, {transform_indices = @transform_3, window_bounds = array<i64: 1, 64, 32>}, {transform_indices = @transform_4, window_bounds = array<i64: 1, 16, 1>}, {transform_indices = @transform_5, window_bounds = array<i64: 16, 32>}]} {
    %c0_i32 = arith.constant 0 : i32
    %0 = arith.cmpi eq, %arg1, %c0_i32 : i32
    %1 = arith.extui %0 : i1 to i32
    %c0_i32_0 = arith.constant 0 : i32
    %2 = arith.cmpi ne, %1, %c0_i32_0 : i32
    scf.if %2 {
      %cst = arith.constant 0.000000e+00 : f32
      %8 = vector.broadcast %cst : f32 to vector<16x32xf32>
      %c0 = arith.constant 0 : index
      %c0_3 = arith.constant 0 : index
      %9 = vector.load %arg8[%c0, %c0_3] : memref<16x32xf32, #tpu.memory_space<vmem>>, vector<16x32xf32>
      tpu.vector_store %arg8[%c0, %c0_3], %8 {strides = array<i32>} : memref<16x32xf32, #tpu.memory_space<vmem>>, vector<16x32xf32>,
    } else {
    }
    %3 = arith.index_cast %arg1 : i32 to index
    %4 = memref.load %arg2[%3] : memref<4xi32, #tpu.memory_space<smem>>
    %c0_i32_1 = arith.constant 0 : i32
    %5 = arith.cmpi sgt, %4, %c0_i32_1 : i32
    %6 = arith.extui %5 : i1 to i32
    %c0_i32_2 = arith.constant 0 : i32
    %7 = arith.cmpi ne, %6, %c0_i32_2 : i32
    scf.if %7 {
      %c0 = arith.constant 0 : index
      %c0_3 = arith.constant 0 : index
      %8 = vector.load %arg3[%c0, %c0_3] : memref<16x32xbf16, #tpu.memory_space<vmem>>, vector<16x32xbf16>
      %c0_4 = arith.constant 0 : index
      %c0_5 = arith.constant 0 : index
      %c0_6 = arith.constant 0 : index
      %9 = vector.load %arg4[%c0_4, %c0_5, %c0_6] : memref<1x32x64xbf16, #tpu.memory_space<vmem>>, vector<1x32x64xbf16>
      %10 = vector.shape_cast %9 : vector<1x32x64xbf16> to vector<32x64xbf16>
      %cst = arith.constant dense<0.000000e+00> : vector<16x64xf32>
      %11 = tpu.matmul %8, %10, %cst {dimension_numbers = #tpu.dot_dimension_numbers<[1], [0], [0], [1], [0, 0, 1, 1], [], []>} : vector<16x32xbf16>, vector<32x64xbf16>, vector<16x64xf32> -> vector<16x64xf32>
      %12 = arith.negf %11 : vector<16x64xf32>
      %13 = math.exp %12 : vector<16x64xf32>
      %cst_7 = arith.constant 1.000000e+00 : f32
      %14 = vector.broadcast %cst_7 : f32 to vector<16x64xf32>
      %15 = arith.addf %14, %13 : vector<16x64xf32>
      %16 = arith.divf %14, %15 : vector<16x64xf32>
      %17 = arith.mulf %11, %16 : vector<16x64xf32>
      %c0_8 = arith.constant 0 : index
      %c0_9 = arith.constant 0 : index
      %c0_10 = arith.constant 0 : index
      %18 = vector.load %arg5[%c0_8, %c0_9, %c0_10] : memref<1x32x64xbf16, #tpu.memory_space<vmem>>, vector<1x32x64xbf16>
      %19 = vector.shape_cast %18 : vector<1x32x64xbf16> to vector<32x64xbf16>
      %cst_11 = arith.constant dense<0.000000e+00> : vector<16x64xf32>
      %20 = tpu.matmul %8, %19, %cst_11 {dimension_numbers = #tpu.dot_dimension_numbers<[1], [0], [0], [1], [0, 0, 1, 1], [], []>} : vector<16x32xbf16>, vector<32x64xbf16>, vector<16x64xf32> -> vector<16x64xf32>
      %21 = arith.mulf %17, %20 : vector<16x64xf32>
      %22 = arith.truncf %21 : vector<16x64xf32> to vector<16x64xbf16>
      %c0_12 = arith.constant 0 : index
      %c0_13 = arith.constant 0 : index
      %c0_14 = arith.constant 0 : index
      %23 = vector.load %arg6[%c0_12, %c0_13, %c0_14] : memref<1x64x32xbf16, #tpu.memory_space<vmem>>, vector<1x64x32xbf16>
      %24 = vector.shape_cast %23 : vector<1x64x32xbf16> to vector<64x32xbf16>
      %cst_15 = arith.constant dense<0.000000e+00> : vector<16x32xf32>
      %25 = tpu.matmul %22, %24, %cst_15 {dimension_numbers = #tpu.dot_dimension_numbers<[1], [0], [0], [1], [0, 0, 1, 1], [], []>} : vector<16x64xbf16>, vector<64x32xbf16>, vector<16x32xf32> -> vector<16x32xf32>
      %c0_16 = arith.constant 0 : index
      %c0_17 = arith.constant 0 : index
      %26 = vector.load %arg8[%c0_16, %c0_17] : memref<16x32xf32, #tpu.memory_space<vmem>>, vector<16x32xf32>
      %c0_18 = arith.constant 0 : index
      %c0_19 = arith.constant 0 : index
      %c0_20 = arith.constant 0 : index
      %27 = vector.load %arg7[%c0_18, %c0_19, %c0_20] : memref<1x16x1xf32, #tpu.memory_space<vmem>>, vector<1x16x1xf32>
      %28 = vector.shape_cast %27 : vector<1x16x1xf32> to vector<16x1xf32>
      %29 = vector.broadcast %28 : vector<16x1xf32> to vector<16x32xf32>
      %30 = arith.mulf %25, %29 : vector<16x32xf32>
      %31 = arith.addf %26, %30 : vector<16x32xf32>
      %c0_21 = arith.constant 0 : index
      %c0_22 = arith.constant 0 : index
      %32 = vector.load %arg8[%c0_21, %c0_22] : memref<16x32xf32, #tpu.memory_space<vmem>>, vector<16x32xf32>
      tpu.vector_store %arg8[%c0_21, %c0_22], %31 {strides = array<i32>} : memref<16x32xf32, #tpu.memory_space<vmem>>, vector<16x32xf32>,
    } else {
    }
    return
  }
  func.func @transform_0(%arg0: i32, %arg1: i32, %arg2: memref<4xi32, #tpu.memory_space<smem>>) -> (i32, i32) {
    %c0_i32 = arith.constant 0 : i32
    %c0_i32_0 = arith.constant 0 : i32
    return %arg0, %c0_i32 : i32, i32
  }
  func.func @transform_1(%arg0: i32, %arg1: i32, %arg2: memref<4xi32, #tpu.memory_space<smem>>) -> (i32, i32, i32) {
    %c0_i32 = arith.constant 0 : i32
    %c0_i32_0 = arith.constant 0 : i32
    %c0_i32_1 = arith.constant 0 : i32
    return %arg1, %c0_i32, %c0_i32_0 : i32, i32, i32
  }
  func.func @transform_2(%arg0: i32, %arg1: i32, %arg2: memref<4xi32, #tpu.memory_space<smem>>) -> (i32, i32, i32) {
    %c0_i32 = arith.constant 0 : i32
    %c0_i32_0 = arith.constant 0 : i32
    %c0_i32_1 = arith.constant 0 : i32
    return %arg1, %c0_i32, %c0_i32_0 : i32, i32, i32
  }
  func.func @transform_3(%arg0: i32, %arg1: i32, %arg2: memref<4xi32, #tpu.memory_space<smem>>) -> (i32, i32, i32) {
    %c0_i32 = arith.constant 0 : i32
    %c0_i32_0 = arith.constant 0 : i32
    %c0_i32_1 = arith.constant 0 : i32
    return %arg1, %c0_i32, %c0_i32_0 : i32, i32, i32
  }
  func.func @transform_4(%arg0: i32, %arg1: i32, %arg2: memref<4xi32, #tpu.memory_space<smem>>) -> (i32, i32, i32) {
    %c0_i32 = arith.constant 0 : i32
    %c0_i32_0 = arith.constant 0 : i32
    return %arg1, %arg0, %c0_i32 : i32, i32, i32
  }
  func.func @transform_5(%arg0: i32, %arg1: i32, %arg2: memref<4xi32, #tpu.memory_space<smem>>) -> (i32, i32) {
    %c0_i32 = arith.constant 0 : i32
    %c0_i32_0 = arith.constant 0 : i32
    return %arg0, %c0_i32 : i32, i32
  }
}

</mosaic_0001>

<llo_original>
// kernel: sub.5
$region0: #{sub.5}
  %s0 = inlined_call_operand.vmem [shape: f32[2,8], index: 0, kind: input, shape index: {}]
  %s1 = inlined_call_operand.vmem [shape: f32[16], index: 1, kind: output, shape index: {}]
  $region1: #{sub.5} parent=0
    #allocation0 [shape = 'u8[4096]{0}', space=vmem, size = 0x1000, scoped, tag = 'scoped mem for output reshape']
    #allocation1 [shape = 'u8[4096]{0}', space=vmem, size = 0x1000, scoped, tag = 'scoped mem for input reshape']
    %s3 = sshllo.u32 0, 2
    %v4 = vld [vmem:[%s0] sm:%s3]
    %5 = vst [vmem:[#allocation1] sm:%s3] %v4
    %v6 = vld [vmem:[#allocation1] sm:$0x1]
    %vm7 = vcmask 64512
    %8 = vst.msk [vmem:[#allocation0] sm:$0x1] %vm7, %v6
    %s9 = scalar_lea.vmem [#allocation1], 1
    %v10 = vld [vmem:[%s9] sm:$0x1]
    %11 = vrot.lane.b32.xlu0 %v10, 8
    %v12 = vpop.permute.xlu0 %11
    %vm13 = vcmask 130112
    %14 = vst.msk [vmem:[#allocation0] sm:$0x1] %vm13, %v12
    %s16 = sshllo.u32 0, 1
    %v18 = vld [vmem:[#allocation0] sm:%s16]
    %s19 = sshllo.u32 0, 1
    %20 = vst [vmem:[%s1] sm:%s19] %v18

// kernel: mixtral_decoder_layer.5
$region0: #{mixtral_decoder_layer.5}
  #allocation0 [shape = 'u32[]', space=smem, size = 0x4, offset = 0x4, fixed_abs, tag = 'smem constant byte address 0x4 - core index']
  #allocation1 [shape = 'u32[144,128]{1,0:T(1,128)}', space=vmem, size = 0x12000, scoped, tag = 'internal scratch']
  %s0 = inlined_call_operand.vmem [shape: bf16[2,4,8,8], index: 0, kind: input, shape index: {}]
  %s1 = inlined_call_operand.vmem [shape: bf16[2,2,8,8], index: 1, kind: input, shape index: {}]
  %s2 = inlined_call_operand.vmem [shape: bf16[2,2,8,8], index: 2, kind: input, shape index: {}]
  %s3 = inlined_call_operand.vmem [shape: bf16[2,4,8,8], index: 3, kind: output, shape index: {}]
  %s4 = sld [smem:[#allocation0]]
  $region45: #{mixtral_decoder_layer.5} parent=0
    _
  %s6 = ssub.s32 1, %s4
  %s7 = scalar_select 0, %s6, %s4
  loop: start=0, step=1, limit=6
  $region2: #{mixtral_decoder_layer.5} parent=0 // loop_pre_header
    _
  $region3: #{mixtral_decoder_layer.5} parent=0 // loop_header
    %s9 = sphi 0, %s13
    %p10 = scmp.ge.s32.totalorder %s9, 6
    %s16 = sphi 0, %s28
    %s17 = sphi 0, %s24
    %s18 = sphi 0, %s16
    %s19 = sphi 0, %s17
    %s20 = sphi 0, %s18
    %s21 = sphi 0, %s19
    %s33 = sphi 0, %s35
    %s36 = sphi 0, %s33
    %s37 = sphi 0, %s36
    %s53 = sphi 0, %s37
    %s61 = sphi 0, %s63
    %s64 = sphi 0, %s61
    %s65 = sphi 0, %s64
    %s81 = sphi 0, %s65
    %s89 = sphi 0, %s91
    %s92 = sphi 0, %s89
    %s93 = sphi 0, %s92
    %s109 = sphi 0, %s93
    %s117 = sphi 0, %s119
    %s120 = sphi 0, %s117
    %s121 = sphi 0, %s120
    %s137 = sphi 0, %s121
  $region4: #{mixtral_decoder_layer.5} parent=0 // loop_header_branch
    %12 = sbr.rel (%p10) target = $region8
  $region5: #{mixtral_decoder_layer.5} parent=0 // loop_body
    %s14 = ssub.s32 %s9, 1
    %s15 = ssub.s32 %s9, 2
    %s22 = sadd.s32 1, %s17
    %p23 = scmp.ge.s32.totalorder %s22, 2
    %s24 = scalar_select %p23, 0, %s22
    %s25 = sadd.s32 1, %s16
    %s26 = scalar_select %p23, %s25, %s16
    %p27 = scmp.ge.s32.totalorder %s26, 2
    %s28 = scalar_select %p27, 0, %s26
    %s29 = ssub.s32 %s16, %s28
    %s30 = ssub.s32 %s17, %s24
    %s31 = sor.u32 %s29, %s30
    %p32 = scmp.eq.s32.totalorder %s31, 0
    %s34 = sadd.s32 %s33, 1
    %s35 = scalar_select %p32, %s33, %s34
    %p38 = pneg %p32
    %p39 = scmp.eq.s32.totalorder %s9, 3
    %p40 = por %p38, %p39
    %p41 = scmp.ne.s32.totalorder %s33, %s36
    %p42 = scmp.eq.s32.totalorder %s9, 0
    %p43 = por %p41, %p42
    %p44 = scmp.ne.s32.totalorder %s33, %s36
    %p45 = scmp.eq.s32.totalorder %s14, 3
    %p46 = por %p44, %p45
    %p47 = scmp.ne.s32.totalorder %s36, %s37
    %p48 = scmp.eq.s32.totalorder %s14, 0
    %p49 = por %p47, %p48
    %p50 = scmp.ne.s32.totalorder %s36, %s37
    %p51 = scmp.eq.s32.totalorder %s15, 3
    %p52 = por %p50, %p51
    %p54 = scmp.ne.s32.totalorder %s37, %s53
    %p55 = scmp.eq.s32.totalorder %s15, 0
    %p56 = por %p54, %p55
    %s57 = ssub.s32 %s16, %s28
    %s58 = ssub.s32 %s17, %s24
    %s59 = sor.u32 %s57, %s58
    %p60 = scmp.eq.s32.totalorder %s59, 0
    %s62 = sadd.s32 %s61, 1
    %s63 = scalar_select %p60, %s61, %s62
    %p66 = pneg %p60
    %p67 = scmp.eq.s32.totalorder %s9, 3
    %p68 = por %p66, %p67
    %p69 = scmp.ne.s32.totalorder %s61, %s64
    %p70 = scmp.eq.s32.totalorder %s9, 0
    %p71 = por %p69, %p70
    %p72 = scmp.ne.s32.totalorder %s61, %s64
    %p73 = scmp.eq.s32.totalorder %s14, 3
    %p74 = por %p72, %p73
    %p75 = scmp.ne.s32.totalorder %s64, %s65
    %p76 = scmp.eq.s32.totalorder %s14, 0
    %p77 = por %p75, %p76
    %p78 = scmp.ne.s32.totalorder %s64, %s65
    %p79 = scmp.eq.s32.totalorder %s15, 3
    %p80 = por %p78, %p79
    %p82 = scmp.ne.s32.totalorder %s65, %s81
    %p83 = scmp.eq.s32.totalorder %s15, 0
    %p84 = por %p82, %p83
    %s85 = ssub.s32 %s16, %s28
    %s86 = ssub.s32 %s17, %s24
    %s87 = sor.u32 %s85, %s86
    %p88 = scmp.eq.s32.totalorder %s87, 0
    %s90 = sadd.s32 %s89, 1
    %s91 = scalar_select %p88, %s89, %s90
    %p94 = pneg %p88
    %p95 = scmp.eq.s32.totalorder %s9, 3
    %p96 = por %p94, %p95
    %p97 = scmp.ne.s32.totalorder %s89, %s92
    %p98 = scmp.eq.s32.totalorder %s9, 0
    %p99 = por %p97, %p98
    %p100 = scmp.ne.s32.totalorder %s89, %s92
    %p101 = scmp.eq.s32.totalorder %s14, 3
    %p102 = por %p100, %p101
    %p103 = scmp.ne.s32.totalorder %s92, %s93
    %p104 = scmp.eq.s32.totalorder %s14, 0
    %p105 = por %p103, %p104
    %p106 = scmp.ne.s32.totalorder %s92, %s93
    %p107 = scmp.eq.s32.totalorder %s15, 3
    %p108 = por %p106, %p107
    %p110 = scmp.ne.s32.totalorder %s93, %s109
    %p111 = scmp.eq.s32.totalorder %s15, 0
    %p112 = por %p110, %p111
    %s113 = ssub.s32 %s16, %s28
    %s114 = ssub.s32 %s17, %s24
    %s115 = sor.u32 %s113, %s114
    %p116 = scmp.eq.s32.totalorder %s115, 0
    %s118 = sadd.s32 %s117, 1
    %s119 = scalar_select %p116, %s117, %s118
    %p122 = pneg %p116
    %p123 = scmp.eq.s32.totalorder %s9, 3
    %p124 = por %p122, %p123
    %p125 = scmp.ne.s32.totalorder %s117, %s120
    %p126 = scmp.eq.s32.totalorder %s9, 0
    %p127 = por %p125, %p126
    %p128 = scmp.ne.s32.totalorder %s117, %s120
    %p129 = scmp.eq.s32.totalorder %s14, 3
    %p130 = por %p128, %p129
    %p131 = scmp.ne.s32.totalorder %s120, %s121
    %p132 = scmp.eq.s32.totalorder %s14, 0
    %p133 = por %p131, %p132
    %p134 = scmp.ne.s32.totalorder %s120, %s121
    %p135 = scmp.eq.s32.totalorder %s15, 3
    %p136 = por %p134, %p135
    %p138 = scmp.ne.s32.totalorder %s121, %s137
    %p139 = scmp.eq.s32.totalorder %s15, 0
    %p140 = por %p138, %p139
    %p141 = scmp.le.s32.totalorder 1, %s9
    %p142 = scmp.lt.s32.totalorder %s9, 5
    %p143 = pnand %p141, %p142
    %p144 = pneg %p143
    // Predicated region
    $region9: #{mixtral_decoder_layer.5} parent=5 // pred_check
      _
    $region10: #{mixtral_decoder_layer.5} parent=5 // pred_check_branch
      %146 = sbr.rel (%p143) target = $region12
    $region11: #{mixtral_decoder_layer.5} parent=5 // pred_region
      %s147 = ssub.s32 %s9, 1
    $region12: #{mixtral_decoder_layer.5} parent=5 // pred_fallthru
      _
    %p148 = scmp.lt.s32.totalorder %s9, 4
    // Predicated region
    $region13: #{mixtral_decoder_layer.5} parent=5 // pred_check
      %p149 = pneg %p148
    $region14: #{mixtral_decoder_layer.5} parent=5 // pred_check_branch
      %151 = sbr.rel (%p149) target = $region16
    $region15: #{mixtral_decoder_layer.5} parent=5 // pred_region
      // Predicated region
      $region17: #{mixtral_decoder_layer.5} parent=15 // pred_check
        %p152 = pneg %p43
      $region18: #{mixtral_decoder_layer.5} parent=15 // pred_check_branch
        %154 = sbr.rel (%p152) target = $region20
      $region19: #{mixtral_decoder_layer.5} parent=15 // pred_region
        %s155 = smul.u32 2, %s17
        %p156 = scmp.lt.s32.totalorder %s16, 1
        %s157 = scalar_select %p156, %s16, 1
        %p158 = scmp.lt.s32.totalorder %s155, 3
        %s159 = scalar_select %p158, %s155, 3
        %s160 = smul.addr %s157, 4
        %s161 = sadd.s32 %s159, %s160
        %s162 = smul.addr %s161, 4
        %s163 = scalar_lea.vmem %s0, %s162
        %s164 = smul.u32 2, %s17
      $region20: #{mixtral_decoder_layer.5} parent=15 // pred_fallthru
        _
      // Predicated region
      $region21: #{mixtral_decoder_layer.5} parent=15 // pred_check
        %p165 = pneg %p71
      $region22: #{mixtral_decoder_layer.5} parent=15 // pred_check_branch
        %167 = sbr.rel (%p165) target = $region24
      $region23: #{mixtral_decoder_layer.5} parent=15 // pred_region
        %p168 = scmp.lt.s32.totalorder %s16, 1
        %s169 = scalar_select %p168, %s16, 1
        %p170 = scmp.lt.s32.totalorder %s17, 1
        %s171 = scalar_select %p170, %s17, 1
        %s172 = smul.addr %s169, 2
        %s173 = sadd.s32 %s171, %s172
        %s174 = smul.addr %s173, 4
        %s175 = scalar_lea.vmem %s1, %s174
      $region24: #{mixtral_decoder_layer.5} parent=15 // pred_fallthru
        _
      // Predicated region
      $region25: #{mixtral_decoder_layer.5} parent=15 // pred_check
        %p176 = pneg %p99
      $region26: #{mixtral_decoder_layer.5} parent=15 // pred_check_branch
        %178 = sbr.rel (%p176) target = $region28
      $region27: #{mixtral_decoder_layer.5} parent=15 // pred_region
        %p179 = scmp.lt.s32.totalorder %s16, 1
        %s180 = scalar_select %p179, %s16, 1
        %p181 = scmp.lt.s32.totalorder %s17, 1
        %s182 = scalar_select %p181, %s17, 1
        %s183 = smul.addr %s180, 2
        %s184 = sadd.s32 %s182, %s183
        %s185 = smul.addr %s184, 4
        %s186 = scalar_lea.vmem %s2, %s185
      $region28: #{mixtral_decoder_layer.5} parent=15 // pred_fallthru
        _
    $region16: #{mixtral_decoder_layer.5} parent=5 // pred_fallthru
      _
    %p187 = scmp.le.s32.totalorder 1, %s9
    %p188 = scmp.lt.s32.totalorder %s9, 5
    %p189 = pnand %p187, %p188
    %p190 = pneg %p189
    // Predicated region
    $region29: #{mixtral_decoder_layer.5} parent=5 // pred_check
      _
    $region30: #{mixtral_decoder_layer.5} parent=5 // pred_check_branch
      %192 = sbr.rel (%p189) target = $region32
    $region31: #{mixtral_decoder_layer.5} parent=5 // pred_region
      %s193 = ssub.s32 %s9, 1
      %s194 = smul.u32 2, %s19
      %p195 = scmp.lt.s32.totalorder %s18, 1
      %s196 = scalar_select %p195, %s18, 1
      %p197 = scmp.lt.s32.totalorder %s194, 3
      %s198 = scalar_select %p197, %s194, 3
      %s199 = smul.addr %s196, 4
      %s200 = sadd.s32 %s198, %s199
      %s201 = smul.addr %s200, 4
      %s202 = scalar_lea.vmem %s0, %s201
      %p203 = pneg %p49
      %p204 = pneg %p46
      %p205 = scmp.lt.s32.totalorder %s18, 1
      %s206 = scalar_select %p205, %s18, 1
      %p207 = scmp.lt.s32.totalorder %s19, 1
      %s208 = scalar_select %p207, %s19, 1
      %s209 = smul.addr %s206, 2
      %s210 = sadd.s32 %s208, %s209
      %s211 = smul.addr %s210, 4
      %s212 = scalar_lea.vmem %s1, %s211
      %p213 = pneg %p77
      %p214 = pneg %p74
      %p215 = scmp.lt.s32.totalorder %s18, 1
      %s216 = scalar_select %p215, %s18, 1
      %p217 = scmp.lt.s32.totalorder %s19, 1
      %s218 = scalar_select %p217, %s19, 1
      %s219 = smul.addr %s216, 2
      %s220 = sadd.s32 %s218, %s219
      %s221 = smul.addr %s220, 4
      %s222 = scalar_lea.vmem %s2, %s221
      %p223 = pneg %p105
      %p224 = pneg %p102
      %p225 = pneg %p133
      %p226 = pneg %p130
      %s227 = smul.u32 2, %s19
      %p228 = scmp.lt.s32.totalorder %s18, 1
      %s229 = scalar_select %p228, %s18, 1
      %p230 = scmp.lt.s32.totalorder %s227, 3
      %s231 = scalar_select %p230, %s227, 3
      %s232 = smul.addr %s229, 4
      %s233 = sadd.s32 %s231, %s232
      %s234 = smul.addr %s233, 4
      %s235 = scalar_lea.vmem %s3, %s234
      %s236 = smul.u32 2, %s19
      %p237 = scmp.lt.s32.totalorder %s18, 1
      %s238 = scalar_select %p237, %s18, 1
      %p239 = scmp.lt.s32.totalorder %s236, 3
      %s240 = scalar_select %p239, %s236, 3
      %s241 = smul.addr %s238, 4
      %s242 = sadd.s32 %s240, %s241
      %s243 = smul.addr %s242, 4
      %s244 = scalar_lea.vmem %s0, %s243
      %s245 = smul.u32 2, %s19
      %p246 = scmp.lt.s32.totalorder %s18, 1
      %s247 = scalar_select %p246, %s18, 1
      %p248 = scmp.lt.s32.totalorder %s19, 1
      %s249 = scalar_select %p248, %s19, 1
      %s250 = smul.addr %s247, 2
      %s251 = sadd.s32 %s249, %s250
      %s252 = smul.addr %s251, 4
      %s253 = scalar_lea.vmem %s1, %s252
      %p254 = scmp.lt.s32.totalorder %s18, 1
      %s255 = scalar_select %p254, %s18, 1
      %p256 = scmp.lt.s32.totalorder %s19, 1
      %s257 = scalar_select %p256, %s19, 1
      %s258 = smul.addr %s255, 2
      %s259 = sadd.s32 %s257, %s258
      %s260 = smul.addr %s259, 4
      %s261 = scalar_lea.vmem %s2, %s260
      %s262 = smul.u32 2, %s19
      %p263 = scmp.lt.s32.totalorder %s18, 1
      %s264 = scalar_select %p263, %s18, 1
      %p265 = scmp.lt.s32.totalorder %s262, 3
      %s266 = scalar_select %p265, %s262, 3
      %s267 = smul.addr %s264, 4
      %s268 = sadd.s32 %s266, %s267
      %s269 = smul.addr %s268, 4
      %s270 = scalar_lea.vmem %s3, %s269
      %s271 = smul.u32 2, %s19
      %v273 = vlaneseq
      %v274 = vshrl.u32 %v273, 7
      %v275 = vlaneseq
      %v276 = vand.u32 %v275, 127
      %vm277 = vcmp.le.s32.totalorder %v276, %v274
      %v278 = vld [vmem:[%s253] sm:$0xf]
      %v279 = vld [vmem:[%s261] sm:$0xf]
      %v280 = vld [vmem:[%s244] sm:$0xf]
      %vm281 = vcmask 64512
      %v283 = vsel %vm281, %v280, 0
      %v286 = vsel %vm281, %v278, 0
      %288 = vmatprep.subr.bf16.mxu0 0
      %289 = vmatpush1.bf16.xpose.msra.mxu0 %v286
      %290 = vmatprep.subr.bf16.mxu0 0
      %291 = vmatpush1.bf16.xpose.msra.mxu0 0
      %292 = vmatprep.subr.bf16.mxu0 0
      %293 = vmatpush1.bf16.xpose.msra.mxu0 0
      %294 = vmatprep.subr.bf16.mxu0 0
      %295 = vmatpush1.bf16.xpose.msra.mxu0 0
      %296 = vmatprep.subr.bf16.mxu0 0
      %297 = vmatpush1.bf16.xpose.msra.mxu0 0
      %298 = vmatprep.subr.bf16.mxu0 0
      %299 = vmatpush1.bf16.xpose.msra.mxu0 0
      %300 = vmatprep.subr.bf16.mxu0 0
      %301 = vmatpush1.bf16.xpose.msra.mxu0 0
      %302 = vmatprep.subr.bf16.mxu0 0
      %303 = vmatpush1.bf16.xpose.msra.mxu0 0
      %304 = vmatprep.subr.bf16.mxu0 0
      %305 = vmatpush1.bf16.xpose.msra.mxu0 0
      %306 = vmatprep.subr.bf16.mxu0 0
      %307 = vmatpush1.bf16.xpose.msra.mxu0 0
      %308 = vmatprep.subr.bf16.mxu0 0
      %309 = vmatpush1.bf16.xpose.msra.mxu0 0
      %310 = vmatprep.subr.bf16.mxu0 0
      %311 = vmatpush1.bf16.xpose.msra.mxu0 0
      %312 = vmatprep.subr.bf16.mxu0 0
      %313 = vmatpush1.bf16.xpose.msra.mxu0 0
      %314 = vmatprep.subr.bf16.mxu0 0
      %315 = vmatpush1.bf16.xpose.msra.mxu0 0
      %316 = vmatprep.subr.bf16.mxu0 0
      %317 = vmatpush1.bf16.xpose.msra.mxu0 0
      %318 = vmatprep.subr.bf16.mxu0 0
      %319 = vmatpush1.bf16.xpose.msra.mxu0 0
      %320 = vmatprep.mubr.bf16.mxu0 0
      %321 = vmatmul.mubr.bf16.gmra.mrb[0].mxu0 %v283
      %v322 = vpop.f32.mrb[0].mxu0
      %v323 = vadd.f32 0.0, %v322
      %v324 = vpop.f32.mrb[0].mxu0
      %v325 = vpop.f32.mrb[0].mxu0
      %v326 = vpop.f32.mrb[0].mxu0
      %327 = vdwg.mxu0
      %v328 = vsel %vm277, %v323, -1e+30
      %v329 = vsel %vm281, %v328, -inf
      %330 = vmax.xlane.f32.xlu0 %v329
      %v331 = vpop.xlane.xlu0 %330
      %v332 = vsub.f32 %v328, %v331
      %v333 = vmul.f32 %v332, 1.442695
      %v334 = vpow.pop %v333
      %v335 = vsel %vm281, %v334, 0.0
      %336 = vadd.xlane.f32.xlu0 %v335
      %v337 = vpop.xlane.xlu0 %336
      %v338 = vrcp.pop %v337
      %v339 = vpack.c.bf16 %v334, %v334
      %v341 = vsel %vm281, %v339, 0
      %vm343 = vcmask 1043456
      %v345 = vsel %vm343, %v279, 0
      %347 = vmatprep.subr.bf16.mxu0 0
      %348 = vmatpush1.bf16.msra.mxu0 %v345
      %349 = vmatprep.subr.bf16.mxu0 0
      %350 = vmatpush1.bf16.msra.mxu0 0
      %351 = vmatprep.subr.bf16.mxu0 0
      %352 = vmatpush1.bf16.msra.mxu0 0
      %353 = vmatprep.subr.bf16.mxu0 0
      %354 = vmatpush1.bf16.msra.mxu0 0
      %355 = vmatprep.subr.bf16.mxu0 0
      %356 = vmatpush1.bf16.msra.mxu0 0
      %357 = vmatprep.subr.bf16.mxu0 0
      %358 = vmatpush1.bf16.msra.mxu0 0
      %359 = vmatprep.subr.bf16.mxu0 0
      %360 = vmatpush1.bf16.msra.mxu0 0
      %361 = vmatprep.subr.bf16.mxu0 0
      %362 = vmatpush1.bf16.msra.mxu0 0
      %363 = vmatprep.subr.bf16.mxu0 0
      %364 = vmatpush1.bf16.msra.mxu0 0
      %365 = vmatprep.subr.bf16.mxu0 0
      %366 = vmatpush1.bf16.msra.mxu0 0
      %367 = vmatprep.subr.bf16.mxu0 0
      %368 = vmatpush1.bf16.msra.mxu0 0
      %369 = vmatprep.subr.bf16.mxu0 0
      %370 = vmatpush1.bf16.msra.mxu0 0
      %371 = vmatprep.subr.bf16.mxu0 0
      %372 = vmatpush1.bf16.msra.mxu0 0
      %373 = vmatprep.subr.bf16.mxu0 0
      %374 = vmatpush1.bf16.msra.mxu0 0
      %375 = vmatprep.subr.bf16.mxu0 0
      %376 = vmatpush1.bf16.msra.mxu0 0
      %377 = vmatprep.subr.bf16.mxu0 0
      %378 = vmatpush1.bf16.msra.mxu0 0
      %379 = vmatprep.mubr.bf16.mxu0 0
      %380 = vmatmul.mubr.bf16.gmra.mrb[0].mxu0 %v341
      %v381 = vpop.f32.mrb[0].mxu0
      %v382 = vadd.f32 0.0, %v381
      %v383 = vpop.f32.mrb[0].mxu0
      %v384 = vpop.f32.mrb[0].mxu0
      %v385 = vpop.f32.mrb[0].mxu0
      %386 = vdwg.mxu0
      %v387 = vmul.f32 %v382, %v338
      %v388 = vpack.c.bf16 %v387, %v387
      %vm389 = vcmask 60416
      %390 = vst.msk [vmem:[%s270] sm:$0xf] %vm389, %v388
      %s391 = scalar_lea.vmem %s244, 4
      %v392 = vld [vmem:[%s391] sm:$0xf]
      %v394 = vsel %vm281, %v392, 0
      %396 = vmatprep.subr.bf16.mxu0 0
      %397 = vmatpush1.bf16.xpose.msra.mxu0 %v286
      %398 = vmatprep.subr.bf16.mxu0 0
      %399 = vmatpush1.bf16.xpose.msra.mxu0 0
      %400 = vmatprep.subr.bf16.mxu0 0
      %401 = vmatpush1.bf16.xpose.msra.mxu0 0
      %402 = vmatprep.subr.bf16.mxu0 0
      %403 = vmatpush1.bf16.xpose.msra.mxu0 0
      %404 = vmatprep.subr.bf16.mxu0 0
      %405 = vmatpush1.bf16.xpose.msra.mxu0 0
      %406 = vmatprep.subr.bf16.mxu0 0
      %407 = vmatpush1.bf16.xpose.msra.mxu0 0
      %408 = vmatprep.subr.bf16.mxu0 0
      %409 = vmatpush1.bf16.xpose.msra.mxu0 0
      %410 = vmatprep.subr.bf16.mxu0 0
      %411 = vmatpush1.bf16.xpose.msra.mxu0 0
      %412 = vmatprep.subr.bf16.mxu0 0
      %413 = vmatpush1.bf16.xpose.msra.mxu0 0
      %414 = vmatprep.subr.bf16.mxu0 0
      %415 = vmatpush1.bf16.xpose.msra.mxu0 0
      %416 = vmatprep.subr.bf16.mxu0 0
      %417 = vmatpush1.bf16.xpose.msra.mxu0 0
      %418 = vmatprep.subr.bf16.mxu0 0
      %419 = vmatpush1.bf16.xpose.msra.mxu0 0
      %420 = vmatprep.subr.bf16.mxu0 0
      %421 = vmatpush1.bf16.xpose.msra.mxu0 0
      %422 = vmatprep.subr.bf16.mxu0 0
      %423 = vmatpush1.bf16.xpose.msra.mxu0 0
      %424 = vmatprep.subr.bf16.mxu0 0
      %425 = vmatpush1.bf16.xpose.msra.mxu0 0
      %426 = vmatprep.subr.bf16.mxu0 0
      %427 = vmatpush1.bf16.xpose.msra.mxu0 0
      %428 = vmatprep.mubr.bf16.mxu0 0
      %429 = vmatmul.mubr.bf16.gmra.mrb[0].mxu0 %v394
      %v430 = vpop.f32.mrb[0].mxu0
      %v431 = vadd.f32 0.0, %v430
      %v432 = vpop.f32.mrb[0].mxu0
      %v433 = vpop.f32.mrb[0].mxu0
      %v434 = vpop.f32.mrb[0].mxu0
      %435 = vdwg.mxu0
      %v436 = vsel %vm277, %v431, -1e+30
      %v437 = vsel %vm281, %v436, -inf
      %438 = vmax.xlane.f32.xlu0 %v437
      %v439 = vpop.xlane.xlu0 %438
      %v440 = vsub.f32 %v436, %v439
      %v441 = vmul.f32 %v440, 1.442695
      %v442 = vpow.pop %v441
      %v443 = vsel %vm281, %v442, 0.0
      %444 = vadd.xlane.f32.xlu0 %v443
      %v445 = vpop.xlane.xlu0 %444
      %v446 = vrcp.pop %v445
      %v447 = vpack.c.bf16 %v442, %v442
      %v449 = vsel %vm281, %v447, 0
      %451 = vmatprep.subr.bf16.mxu0 0
      %452 = vmatpush1.bf16.msra.mxu0 %v345
      %453 = vmatprep.subr.bf16.mxu0 0
      %454 = vmatpush1.bf16.msra.mxu0 0
      %455 = vmatprep.subr.bf16.mxu0 0
      %456 = vmatpush1.bf16.msra.mxu0 0
      %457 = vmatprep.subr.bf16.mxu0 0
      %458 = vmatpush1.bf16.msra.mxu0 0
      %459 = vmatprep.subr.bf16.mxu0 0
      %460 = vmatpush1.bf16.msra.mxu0 0
      %461 = vmatprep.subr.bf16.mxu0 0
      %462 = vmatpush1.bf16.msra.mxu0 0
      %463 = vmatprep.subr.bf16.mxu0 0
      %464 = vmatpush1.bf16.msra.mxu0 0
      %465 = vmatprep.subr.bf16.mxu0 0
      %466 = vmatpush1.bf16.msra.mxu0 0
      %467 = vmatprep.subr.bf16.mxu0 0
      %468 = vmatpush1.bf16.msra.mxu0 0
      %469 = vmatprep.subr.bf16.mxu0 0
      %470 = vmatpush1.bf16.msra.mxu0 0
      %471 = vmatprep.subr.bf16.mxu0 0
      %472 = vmatpush1.bf16.msra.mxu0 0
      %473 = vmatprep.subr.bf16.mxu0 0
      %474 = vmatpush1.bf16.msra.mxu0 0
      %475 = vmatprep.subr.bf16.mxu0 0
      %476 = vmatpush1.bf16.msra.mxu0 0
      %477 = vmatprep.subr.bf16.mxu0 0
      %478 = vmatpush1.bf16.msra.mxu0 0
      %479 = vmatprep.subr.bf16.mxu0 0
      %480 = vmatpush1.bf16.msra.mxu0 0
      %481 = vmatprep.subr.bf16.mxu0 0
      %482 = vmatpush1.bf16.msra.mxu0 0
      %483 = vmatprep.mubr.bf16.mxu0 0
      %484 = vmatmul.mubr.bf16.gmra.mrb[0].mxu0 %v449
      %v485 = vpop.f32.mrb[0].mxu0
      %v486 = vadd.f32 0.0, %v485
      %v487 = vpop.f32.mrb[0].mxu0
      %v488 = vpop.f32.mrb[0].mxu0
      %v489 = vpop.f32.mrb[0].mxu0
      %490 = vdwg.mxu0
      %v491 = vmul.f32 %v486, %v446
      %v492 = vpack.c.bf16 %v491, %v491
      %s493 = scalar_lea.vmem %s270, 4
      %494 = vst.msk [vmem:[%s493] sm:$0xf] %vm389, %v492
      %s495 = smul.u32 2, %s19
      %p496 = scmp.lt.s32.totalorder %s18, 1
      %s497 = scalar_select %p496, %s18, 1
      %p498 = scmp.lt.s32.totalorder %s495, 3
      %s499 = scalar_select %p498, %s495, 3
      %s500 = smul.addr %s497, 4
      %s501 = sadd.s32 %s499, %s500
      %s502 = smul.addr %s501, 4
      %s503 = scalar_lea.vmem %s3, %s502
      // Predicated region
      $region33: #{mixtral_decoder_layer.5} parent=31 // pred_check
        %p504 = pneg %p130
      $region34: #{mixtral_decoder_layer.5} parent=31 // pred_check_branch
        %506 = sbr.rel (%p504) target = $region36
      $region35: #{mixtral_decoder_layer.5} parent=31 // pred_region
        %s507 = smul.u32 2, %s19
      $region36: #{mixtral_decoder_layer.5} parent=31 // pred_fallthru
        _
    $region32: #{mixtral_decoder_layer.5} parent=5 // pred_fallthru
      _
    %p508 = scmp.le.s32.totalorder 2, %s9
    // Predicated region
    $region37: #{mixtral_decoder_layer.5} parent=5 // pred_check
      %p509 = pneg %p508
    $region38: #{mixtral_decoder_layer.5} parent=5 // pred_check_branch
      %511 = sbr.rel (%p509) target = $region40
    $region39: #{mixtral_decoder_layer.5} parent=5 // pred_region
      %s512 = ssub.s32 %s9, 2
      // Predicated region
      $region41: #{mixtral_decoder_layer.5} parent=39 // pred_check
        %p513 = pneg %p136
      $region42: #{mixtral_decoder_layer.5} parent=39 // pred_check_branch
        %515 = sbr.rel (%p513) target = $region44
      $region43: #{mixtral_decoder_layer.5} parent=39 // pred_region
        %s516 = smul.u32 2, %s21
        %p517 = scmp.lt.s32.totalorder %s20, 1
        %s518 = scalar_select %p517, %s20, 1
        %p519 = scmp.lt.s32.totalorder %s516, 3
        %s520 = scalar_select %p519, %s516, 3
        %s521 = smul.addr %s518, 4
        %s522 = sadd.s32 %s520, %s521
        %s523 = smul.addr %s522, 4
        %s524 = scalar_lea.vmem %s3, %s523
      $region44: #{mixtral_decoder_layer.5} parent=39 // pred_fallthru
        _
    $region40: #{mixtral_decoder_layer.5} parent=5 // pred_fallthru
      _
  $region6: #{mixtral_decoder_layer.5} parent=0 // loop_footer
    %s13 = sadd.s32 1, %s9
  $region7: #{mixtral_decoder_layer.5} parent=0 // loop_footer_branch
    %8 = sbr.rel target = $region3
  $region8: #{mixtral_decoder_layer.5} parent=0 // loop_exit
    _

// kernel: mixtral_decoder_layer.6
$region0: #{mixtral_decoder_layer.6}
  #allocation0 [shape = 'u32[]', space=smem, size = 0x4, offset = 0x4, fixed_abs, tag = 'smem constant byte address 0x4 - core index']
  #allocation1 [shape = 'u32[144,128]{1,0:T(1,128)}', space=vmem, size = 0x12000, scoped, tag = 'internal scratch']
  %s0 = inlined_call_operand.vmem [shape: bf16[2,4,8,8], index: 0, kind: input, shape index: {}]
  %s1 = inlined_call_operand.vmem [shape: f32[2,8,32], index: 1, kind: input, shape index: {}]
  %s2 = inlined_call_operand.vmem [shape: bf16[4,8,32], index: 2, kind: input, shape index: {}]
  %s3 = inlined_call_operand.vmem [shape: f32[1,32], index: 3, kind: input, shape index: {}]
  %s4 = inlined_call_operand.vmem [shape: bf16[32,4], index: 4, kind: input, shape index: {}]
  %s5 = inlined_call_operand.vmem [shape: bf16[2,8,32], index: 5, kind: output, shape index: {0}]
  %s6 = inlined_call_operand.hbm [shape: f32[2,8,32], index: 6, kind: output, shape index: {1}]
  %s7 = inlined_call_operand.vmem [shape: f32[2,8,4], index: 7, kind: output, shape index: {2}]
  %8 = xla_tuple %s5, %s6, %s7
  %s9 = sld [smem:[#allocation0]]
  $region69: #{mixtral_decoder_layer.6} parent=0
    _
  %s11 = ssub.s32 1, %s9
  %s12 = scalar_select 0, %s11, %s9
  $region1: #{mixtral_decoder_layer.6} parent=0
    #allocation2 [shape = 'u8[8192]{0}', space=vmem, size = 0x2000, scoped, tag = 'output window, operand 1']
    #allocation3 [shape = 's32[2]{0}', space=sflag, size = 0x8, scoped, tag = 'scoped memory for mixtral_decoder_layer.6']
    %13 = vsyncpa [#allocation3], 0
    %s14 = scalar_lea.sflag [#allocation3], 1
    %15 = vsyncpa %s14, 0
    loop: start=0, step=1, limit=4
    $region2: #{mixtral_decoder_layer.6} parent=1 // loop_pre_header
      _
    $region3: #{mixtral_decoder_layer.6} parent=1 // loop_header
      %s17 = sphi 0, %s21
      %p18 = scmp.ge.s32.totalorder %s17, 4
      %s27 = sphi 0, %s29
      %s30 = sphi 0, %s27
      %s31 = sphi 0, %s30
      %s47 = sphi 0, %s31
      %s53 = sphi 0, %s55
      %s56 = sphi 0, %s53
      %s57 = sphi 0, %s56
      %s73 = sphi 0, %s57
      %s77 = sphi 0, %s77
      %s79 = sphi 0, %s77
      %s80 = sphi 0, %s79
      %s94 = sphi 0, %s80
      %s98 = sphi 0, %s98
      %s100 = sphi 0, %s98
      %s101 = sphi 0, %s100
      %s115 = sphi 0, %s101
      %s119 = sphi 0, %s119
      %s121 = sphi 0, %s119
      %s122 = sphi 0, %s121
      %s136 = sphi 0, %s122
      %s142 = sphi 0, %s144
      %s145 = sphi 0, %s142
      %s146 = sphi 0, %s145
      %s162 = sphi 0, %s146
      %s168 = sphi 0, %s170
      %s171 = sphi 0, %s168
      %s172 = sphi 0, %s171
      %s188 = sphi 0, %s172
      %s194 = sphi 0, %s196
      %s197 = sphi 0, %s194
      %s198 = sphi 0, %s197
      %s214 = sphi 0, %s198
    $region4: #{mixtral_decoder_layer.6} parent=1 // loop_header_branch
      %20 = sbr.rel (%p18) target = $region8
    $region5: #{mixtral_decoder_layer.6} parent=1 // loop_body
      %s22 = ssub.s32 %s17, 1
      %s23 = ssub.s32 %s17, 2
      %s24 = sadd.s32 %s17, 1
      %s25 = ssub.s32 %s17, %s24
      %p26 = scmp.eq.s32.totalorder %s25, 0
      %s28 = sadd.s32 %s27, 1
      %s29 = scalar_select %p26, %s27, %s28
      %p32 = pneg %p26
      %p33 = scmp.eq.s32.totalorder %s17, 1
      %p34 = por %p32, %p33
      %p35 = scmp.ne.s32.totalorder %s27, %s30
      %p36 = scmp.eq.s32.totalorder %s17, 0
      %p37 = por %p35, %p36
      %p38 = scmp.ne.s32.totalorder %s27, %s30
      %p39 = scmp.eq.s32.totalorder %s22, 1
      %p40 = por %p38, %p39
      %p41 = scmp.ne.s32.totalorder %s30, %s31
      %p42 = scmp.eq.s32.totalorder %s22, 0
      %p43 = por %p41, %p42
      %p44 = scmp.ne.s32.totalorder %s30, %s31
      %p45 = scmp.eq.s32.totalorder %s23, 1
      %p46 = por %p44, %p45
      %p48 = scmp.ne.s32.totalorder %s31, %s47
      %p49 = scmp.eq.s32.totalorder %s23, 0
      %p50 = por %p48, %p49
      %s51 = ssub.s32 %s17, %s24
      %p52 = scmp.eq.s32.totalorder %s51, 0
      %s54 = sadd.s32 %s53, 1
      %s55 = scalar_select %p52, %s53, %s54
      %p58 = pneg %p52
      %p59 = scmp.eq.s32.totalorder %s17, 1
      %p60 = por %p58, %p59
      %p61 = scmp.ne.s32.totalorder %s53, %s56
      %p62 = scmp.eq.s32.totalorder %s17, 0
      %p63 = por %p61, %p62
      %p64 = scmp.ne.s32.totalorder %s53, %s56
      %p65 = scmp.eq.s32.totalorder %s22, 1
      %p66 = por %p64, %p65
      %p67 = scmp.ne.s32.totalorder %s56, %s57
      %p68 = scmp.eq.s32.totalorder %s22, 0
      %p69 = por %p67, %p68
      %p70 = scmp.ne.s32.totalorder %s56, %s57
      %p71 = scmp.eq.s32.totalorder %s23, 1
      %p72 = por %p70, %p71
      %p74 = scmp.ne.s32.totalorder %s57, %s73
      %p75 = scmp.eq.s32.totalorder %s23, 0
      %p76 = por %p74, %p75
      %s78 = sadd.s32 %s77, 1
      %p81 = scmp.eq.s32.totalorder %s17, 1
      %p82 = scmp.ne.s32.totalorder %s77, %s79
      %p83 = scmp.eq.s32.totalorder %s17, 0
      %p84 = por %p82, %p83
      %p85 = scmp.ne.s32.totalorder %s77, %s79
      %p86 = scmp.eq.s32.totalorder %s22, 1
      %p87 = por %p85, %p86
      %p88 = scmp.ne.s32.totalorder %s79, %s80
      %p89 = scmp.eq.s32.totalorder %s22, 0
      %p90 = por %p88, %p89
      %p91 = scmp.ne.s32.totalorder %s79, %s80
      %p92 = scmp.eq.s32.totalorder %s23, 1
      %p93 = por %p91, %p92
      %p95 = scmp.ne.s32.totalorder %s80, %s94
      %p96 = scmp.eq.s32.totalorder %s23, 0
      %p97 = por %p95, %p96
      %s99 = sadd.s32 %s98, 1
      %p102 = scmp.eq.s32.totalorder %s17, 1
      %p103 = scmp.ne.s32.totalorder %s98, %s100
      %p104 = scmp.eq.s32.totalorder %s17, 0
      %p105 = por %p103, %p104
      %p106 = scmp.ne.s32.totalorder %s98, %s100
      %p107 = scmp.eq.s32.totalorder %s22, 1
      %p108 = por %p106, %p107
      %p109 = scmp.ne.s32.totalorder %s100, %s101
      %p110 = scmp.eq.s32.totalorder %s22, 0
      %p111 = por %p109, %p110
      %p112 = scmp.ne.s32.totalorder %s100, %s101
      %p113 = scmp.eq.s32.totalorder %s23, 1
      %p114 = por %p112, %p113
      %p116 = scmp.ne.s32.totalorder %s101, %s115
      %p117 = scmp.eq.s32.totalorder %s23, 0
      %p118 = por %p116, %p117
      %s120 = sadd.s32 %s119, 1
      %p123 = scmp.eq.s32.totalorder %s17, 1
      %p124 = scmp.ne.s32.totalorder %s119, %s121
      %p125 = scmp.eq.s32.totalorder %s17, 0
      %p126 = por %p124, %p125
      %p127 = scmp.ne.s32.totalorder %s119, %s121
      %p128 = scmp.eq.s32.totalorder %s22, 1
      %p129 = por %p127, %p128
      %p130 = scmp.ne.s32.totalorder %s121, %s122
      %p131 = scmp.eq.s32.totalorder %s22, 0
      %p132 = por %p130, %p131
      %p133 = scmp.ne.s32.totalorder %s121, %s122
      %p134 = scmp.eq.s32.totalorder %s23, 1
      %p135 = por %p133, %p134
      %p137 = scmp.ne.s32.totalorder %s122, %s136
      %p138 = scmp.eq.s32.totalorder %s23, 0
      %p139 = por %p137, %p138
      %s140 = ssub.s32 %s17, %s24
      %p141 = scmp.eq.s32.totalorder %s140, 0
      %s143 = sadd.s32 %s142, 1
      %s144 = scalar_select %p141, %s142, %s143
      %p147 = pneg %p141
      %p148 = scmp.eq.s32.totalorder %s17, 1
      %p149 = por %p147, %p148
      %p150 = scmp.ne.s32.totalorder %s142, %s145
      %p151 = scmp.eq.s32.totalorder %s17, 0
      %p152 = por %p150, %p151
      %p153 = scmp.ne.s32.totalorder %s142, %s145
      %p154 = scmp.eq.s32.totalorder %s22, 1
      %p155 = por %p153, %p154
      %p156 = scmp.ne.s32.totalorder %s145, %s146
      %p157 = scmp.eq.s32.totalorder %s22, 0
      %p158 = por %p156, %p157
      %p159 = scmp.ne.s32.totalorder %s145, %s146
      %p160 = scmp.eq.s32.totalorder %s23, 1
      %p161 = por %p159, %p160
      %p163 = scmp.ne.s32.totalorder %s146, %s162
      %p164 = scmp.eq.s32.totalorder %s23, 0
      %p165 = por %p163, %p164
      %s166 = ssub.s32 %s17, %s24
      %p167 = scmp.eq.s32.totalorder %s166, 0
      %s169 = sadd.s32 %s168, 1
      %s170 = scalar_select %p167, %s168, %s169
      %p173 = pneg %p167
      %p174 = scmp.eq.s32.totalorder %s17, 1
      %p175 = por %p173, %p174
      %p176 = scmp.ne.s32.totalorder %s168, %s171
      %p177 = scmp.eq.s32.totalorder %s17, 0
      %p178 = por %p176, %p177
      %p179 = scmp.ne.s32.totalorder %s168, %s171
      %p180 = scmp.eq.s32.totalorder %s22, 1
      %p181 = por %p179, %p180
      %p182 = scmp.ne.s32.totalorder %s171, %s172
      %p183 = scmp.eq.s32.totalorder %s22, 0
      %p184 = por %p182, %p183
      %p185 = scmp.ne.s32.totalorder %s171, %s172
      %p186 = scmp.eq.s32.totalorder %s23, 1
      %p187 = por %p185, %p186
      %p189 = scmp.ne.s32.totalorder %s172, %s188
      %p190 = scmp.eq.s32.totalorder %s23, 0
      %p191 = por %p189, %p190
      %s192 = ssub.s32 %s17, %s24
      %p193 = scmp.eq.s32.totalorder %s192, 0
      %s195 = sadd.s32 %s194, 1
      %s196 = scalar_select %p193, %s194, %s195
      %p199 = pneg %p193
      %p200 = scmp.eq.s32.totalorder %s17, 1
      %p201 = por %p199, %p200
      %p202 = scmp.ne.s32.totalorder %s194, %s197
      %p203 = scmp.eq.s32.totalorder %s17, 0
      %p204 = por %p202, %p203
      %p205 = scmp.ne.s32.totalorder %s194, %s197
      %p206 = scmp.eq.s32.totalorder %s22, 1
      %p207 = por %p205, %p206
      %p208 = scmp.ne.s32.totalorder %s197, %s198
      %p209 = scmp.eq.s32.totalorder %s22, 0
      %p210 = por %p208, %p209
      %p211 = scmp.ne.s32.totalorder %s197, %s198
      %p212 = scmp.eq.s32.totalorder %s23, 1
      %p213 = por %p211, %p212
      %p215 = scmp.ne.s32.totalorder %s198, %s214
      %p216 = scmp.eq.s32.totalorder %s23, 0
      %p217 = por %p215, %p216
      %p218 = scmp.le.s32.totalorder 1, %s17
      %p219 = scmp.lt.s32.totalorder %s17, 3
      %p220 = pnand %p218, %p219
      %p221 = pneg %p220
      // Predicated region
      $region9: #{mixtral_decoder_layer.6} parent=5 // pred_check
        _
      $region10: #{mixtral_decoder_layer.6} parent=5 // pred_check_branch
        %223 = sbr.rel (%p220) target = $region12
      $region11: #{mixtral_decoder_layer.6} parent=5 // pred_region
        %s224 = ssub.s32 %s17, 1
        // Predicated region
        $region13: #{mixtral_decoder_layer.6} parent=11 // pred_check
          %p225 = pneg %p90
        $region14: #{mixtral_decoder_layer.6} parent=11 // pred_check_branch
          %227 = sbr.rel (%p225) target = $region16
        $region15: #{mixtral_decoder_layer.6} parent=11 // pred_region
          _
        $region16: #{mixtral_decoder_layer.6} parent=11 // pred_fallthru
          _
        // Predicated region
        $region17: #{mixtral_decoder_layer.6} parent=11 // pred_check
          %p228 = pneg %p111
        $region18: #{mixtral_decoder_layer.6} parent=11 // pred_check_branch
          %230 = sbr.rel (%p228) target = $region20
        $region19: #{mixtral_decoder_layer.6} parent=11 // pred_region
          _
        $region20: #{mixtral_decoder_layer.6} parent=11 // pred_fallthru
          _
        // Predicated region
        $region21: #{mixtral_decoder_layer.6} parent=11 // pred_check
          %p231 = pneg %p132
        $region22: #{mixtral_decoder_layer.6} parent=11 // pred_check_branch
          %233 = sbr.rel (%p231) target = $region24
        $region23: #{mixtral_decoder_layer.6} parent=11 // pred_region
          _
        $region24: #{mixtral_decoder_layer.6} parent=11 // pred_fallthru
          _
      $region12: #{mixtral_decoder_layer.6} parent=5 // pred_fallthru
        _
      %p234 = scmp.lt.s32.totalorder %s17, 2
      // Predicated region
      $region25: #{mixtral_decoder_layer.6} parent=5 // pred_check
        %p235 = pneg %p234
      $region26: #{mixtral_decoder_layer.6} parent=5 // pred_check_branch
        %237 = sbr.rel (%p235) target = $region28
      $region27: #{mixtral_decoder_layer.6} parent=5 // pred_region
        // Predicated region
        $region29: #{mixtral_decoder_layer.6} parent=27 // pred_check
          %p238 = pneg %p37
        $region30: #{mixtral_decoder_layer.6} parent=27 // pred_check_branch
          %240 = sbr.rel (%p238) target = $region32
        $region31: #{mixtral_decoder_layer.6} parent=27 // pred_region
          %p241 = scmp.lt.s32.totalorder %s17, 1
          %s242 = scalar_select %p241, %s17, 1
          %s243 = smul.addr %s242, 4
          %s244 = smul.addr %s243, 4
          %s245 = scalar_lea.vmem %s0, %s244
        $region32: #{mixtral_decoder_layer.6} parent=27 // pred_fallthru
          _
        // Predicated region
        $region33: #{mixtral_decoder_layer.6} parent=27 // pred_check
          %p246 = pneg %p63
        $region34: #{mixtral_decoder_layer.6} parent=27 // pred_check_branch
          %248 = sbr.rel (%p246) target = $region36
        $region35: #{mixtral_decoder_layer.6} parent=27 // pred_region
          %p249 = scmp.lt.s32.totalorder %s17, 1
          %s250 = scalar_select %p249, %s17, 1
          %s251 = smul.addr %s250, 8
          %s252 = scalar_lea.vmem %s1, %s251
        $region36: #{mixtral_decoder_layer.6} parent=27 // pred_fallthru
          _
      $region28: #{mixtral_decoder_layer.6} parent=5 // pred_fallthru
        _
      %p253 = scmp.le.s32.totalorder 1, %s17
      %p254 = scmp.lt.s32.totalorder %s17, 3
      %p255 = pnand %p253, %p254
      %p256 = pneg %p255
      // Predicated region
      $region37: #{mixtral_decoder_layer.6} parent=5 // pred_check
        _
      $region38: #{mixtral_decoder_layer.6} parent=5 // pred_check_branch
        %258 = sbr.rel (%p255) target = $region40
      $region39: #{mixtral_decoder_layer.6} parent=5 // pred_region
        %s259 = ssub.s32 %s17, 1
        %p260 = scmp.lt.s32.totalorder %s22, 1
        %s261 = scalar_select %p260, %s22, 1
        %s262 = smul.addr %s261, 4
        %s263 = smul.addr %s262, 4
        %s264 = scalar_lea.vmem %s0, %s263
        %p265 = pneg %p43
        %p266 = pneg %p40
        %p267 = scmp.lt.s32.totalorder %s22, 1
        %s268 = scalar_select %p267, %s22, 1
        %s269 = smul.addr %s268, 8
        %s270 = scalar_lea.vmem %s1, %s269
        %p271 = pneg %p69
        %p272 = pneg %p66
        %p273 = pneg %p90
        %p274 = pneg %p87
        %p275 = pneg %p111
        %p276 = pneg %p108
        %p277 = pneg %p132
        %p278 = pneg %p129
        %p279 = pneg %p158
        %p280 = pneg %p155
        %p281 = scmp.lt.s32.totalorder %s22, 1
        %s282 = scalar_select %p281, %s22, 1
        %s283 = smul.addr %s282, 4
        %s284 = scalar_lea.vmem %s5, %s283
        %p285 = pneg %p184
        %p286 = pneg %p181
        %s287 = sand.u32 %s171, 1
        %s288 = scalar_lea.sflag [#allocation3], %s287
        %s289 = sand.u32 %s171, 1
        %s290 = smul.addr %s289, 8
        %s291 = scalar_lea.vmem [#allocation2], %s290
        %p292 = pneg %p210
        %p293 = pneg %p207
        %p294 = scmp.lt.s32.totalorder %s22, 1
        %s295 = scalar_select %p294, %s22, 1
        %s296 = smul.addr %s295, 8
        %s297 = scalar_lea.vmem %s7, %s296
        %p298 = scmp.lt.s32.totalorder %s22, 1
        %s299 = scalar_select %p298, %s22, 1
        %s300 = smul.addr %s299, 4
        %s301 = smul.addr %s300, 4
        %s302 = scalar_lea.vmem %s0, %s301
        %p303 = scmp.lt.s32.totalorder %s22, 1
        %s304 = scalar_select %p303, %s22, 1
        %s305 = smul.addr %s304, 8
        %s306 = scalar_lea.vmem %s1, %s305
        %p307 = scmp.lt.s32.totalorder %s22, 1
        %s308 = scalar_select %p307, %s22, 1
        %s309 = smul.addr %s308, 4
        %s310 = scalar_lea.vmem %s5, %s309
        %p311 = scmp.lt.s32.totalorder %s22, 1
        %s312 = scalar_select %p311, %s22, 1
        %s313 = smul.addr %s312, 8
        %s314 = scalar_lea.vmem %s7, %s313
        %v316 = vld [vmem:[%s302] sm:$0xf]
        %v317 = vld [vmem:[%s2] sm:$0xf]
        %s318 = scalar_lea.vmem %s302, 4
        %v319 = vld [vmem:[%s318] sm:$0xf]
        %s320 = scalar_lea.vmem %s2, 4
        %v321 = vld [vmem:[%s320] sm:$0xf]
        %vm322 = vcmask 64512
        %v324 = vsel %vm322, %v319, 0
        %vm326 = vcmask 1043456
        %v328 = vsel %vm326, %v321, 0
        %330 = vmatprep.subr.bf16.mxu0 0
        %331 = vmatpush1.bf16.msra.mxu0 %v328
        %332 = vmatprep.subr.bf16.mxu0 0
        %333 = vmatpush1.bf16.msra.mxu0 0
        %334 = vmatprep.subr.bf16.mxu0 0
        %335 = vmatpush1.bf16.msra.mxu0 0
        %336 = vmatprep.subr.bf16.mxu0 0
        %337 = vmatpush1.bf16.msra.mxu0 0
        %338 = vmatprep.subr.bf16.mxu0 0
        %339 = vmatpush1.bf16.msra.mxu0 0
        %340 = vmatprep.subr.bf16.mxu0 0
        %341 = vmatpush1.bf16.msra.mxu0 0
        %342 = vmatprep.subr.bf16.mxu0 0
        %343 = vmatpush1.bf16.msra.mxu0 0
        %344 = vmatprep.subr.bf16.mxu0 0
        %345 = vmatpush1.bf16.msra.mxu0 0
        %346 = vmatprep.subr.bf16.mxu0 0
        %347 = vmatpush1.bf16.msra.mxu0 0
        %348 = vmatprep.subr.bf16.mxu0 0
        %349 = vmatpush1.bf16.msra.mxu0 0
        %350 = vmatprep.subr.bf16.mxu0 0
        %351 = vmatpush1.bf16.msra.mxu0 0
        %352 = vmatprep.subr.bf16.mxu0 0
        %353 = vmatpush1.bf16.msra.mxu0 0
        %354 = vmatprep.subr.bf16.mxu0 0
        %355 = vmatpush1.bf16.msra.mxu0 0
        %356 = vmatprep.subr.bf16.mxu0 0
        %357 = vmatpush1.bf16.msra.mxu0 0
        %358 = vmatprep.subr.bf16.mxu0 0
        %359 = vmatpush1.bf16.msra.mxu0 0
        %360 = vmatprep.subr.bf16.mxu0 0
        %361 = vmatpush1.bf16.msra.mxu0 0
        %362 = vmatprep.mubr.bf16.mxu0 0
        %363 = vmatmul.mubr.bf16.gmra.mrb[0].mxu0 %v324
        %v364 = vpop.f32.mrb[0].mxu0
        %v365 = vadd.f32 0.0, %v364
        %v366 = vpop.f32.mrb[0].mxu0
        %v367 = vpop.f32.mrb[0].mxu0
        %v368 = vpop.f32.mrb[0].mxu0
        %369 = vdwg.mxu0
        %v371 = vsel %vm322, %v316, 0
        %v374 = vsel %vm326, %v317, 0
        %376 = vmatprep.subr.bf16.mxu0 0
        %377 = vmatpush1.bf16.msra.mxu0 %v374
        %378 = vmatprep.subr.bf16.mxu0 0
        %379 = vmatpush1.bf16.msra.mxu0 0
        %380 = vmatprep.subr.bf16.mxu0 0
        %381 = vmatpush1.bf16.msra.mxu0 0
        %382 = vmatprep.subr.bf16.mxu0 0
        %383 = vmatpush1.bf16.msra.mxu0 0
        %384 = vmatprep.subr.bf16.mxu0 0
        %385 = vmatpush1.bf16.msra.mxu0 0
        %386 = vmatprep.subr.bf16.mxu0 0
        %387 = vmatpush1.bf16.msra.mxu0 0
        %388 = vmatprep.subr.bf16.mxu0 0
        %389 = vmatpush1.bf16.msra.mxu0 0
        %390 = vmatprep.subr.bf16.mxu0 0
        %391 = vmatpush1.bf16.msra.mxu0 0
        %392 = vmatprep.subr.bf16.mxu0 0
        %393 = vmatpush1.bf16.msra.mxu0 0
        %394 = vmatprep.subr.bf16.mxu0 0
        %395 = vmatpush1.bf16.msra.mxu0 0
        %396 = vmatprep.subr.bf16.mxu0 0
        %397 = vmatpush1.bf16.msra.mxu0 0
        %398 = vmatprep.subr.bf16.mxu0 0
        %399 = vmatpush1.bf16.msra.mxu0 0
        %400 = vmatprep.subr.bf16.mxu0 0
        %401 = vmatpush1.bf16.msra.mxu0 0
        %402 = vmatprep.subr.bf16.mxu0 0
        %403 = vmatpush1.bf16.msra.mxu0 0
        %404 = vmatprep.subr.bf16.mxu0 0
        %405 = vmatpush1.bf16.msra.mxu0 0
        %406 = vmatprep.subr.bf16.mxu0 0
        %407 = vmatpush1.bf16.msra.mxu0 0
        %408 = vmatprep.mubr.bf16.mxu0 0
        %409 = vmatmul.mubr.bf16.gmra.mrb[0].mxu0 %v371
        %v410 = vpop.f32.mrb[0].mxu0
        %v411 = vadd.f32 %v365, %v410
        %v412 = vpop.f32.mrb[0].mxu0
        %v413 = vpop.f32.mrb[0].mxu0
        %v414 = vpop.f32.mrb[0].mxu0
        %415 = vdwg.mxu0
        %s416 = scalar_lea.vmem %s302, 8
        %v417 = vld [vmem:[%s416] sm:$0xf]
        %s418 = scalar_lea.vmem %s2, 8
        %v419 = vld [vmem:[%s418] sm:$0xf]
        %v421 = vsel %vm322, %v417, 0
        %v424 = vsel %vm326, %v419, 0
        %426 = vmatprep.subr.bf16.mxu0 0
        %427 = vmatpush1.bf16.msra.mxu0 %v424
        %428 = vmatprep.subr.bf16.mxu0 0
        %429 = vmatpush1.bf16.msra.mxu0 0
        %430 = vmatprep.subr.bf16.mxu0 0
        %431 = vmatpush1.bf16.msra.mxu0 0
        %432 = vmatprep.subr.bf16.mxu0 0
        %433 = vmatpush1.bf16.msra.mxu0 0
        %434 = vmatprep.subr.bf16.mxu0 0
        %435 = vmatpush1.bf16.msra.mxu0 0
        %436 = vmatprep.subr.bf16.mxu0 0
        %437 = vmatpush1.bf16.msra.mxu0 0
        %438 = vmatprep.subr.bf16.mxu0 0
        %439 = vmatpush1.bf16.msra.mxu0 0
        %440 = vmatprep.subr.bf16.mxu0 0
        %441 = vmatpush1.bf16.msra.mxu0 0
        %442 = vmatprep.subr.bf16.mxu0 0
        %443 = vmatpush1.bf16.msra.mxu0 0
        %444 = vmatprep.subr.bf16.mxu0 0
        %445 = vmatpush1.bf16.msra.mxu0 0
        %446 = vmatprep.subr.bf16.mxu0 0
        %447 = vmatpush1.bf16.msra.mxu0 0
        %448 = vmatprep.subr.bf16.mxu0 0
        %449 = vmatpush1.bf16.msra.mxu0 0
        %450 = vmatprep.subr.bf16.mxu0 0
        %451 = vmatpush1.bf16.msra.mxu0 0
        %452 = vmatprep.subr.bf16.mxu0 0
        %453 = vmatpush1.bf16.msra.mxu0 0
        %454 = vmatprep.subr.bf16.mxu0 0
        %455 = vmatpush1.bf16.msra.mxu0 0
        %456 = vmatprep.subr.bf16.mxu0 0
        %457 = vmatpush1.bf16.msra.mxu0 0
        %458 = vmatprep.mubr.bf16.mxu0 0
        %459 = vmatmul.mubr.bf16.gmra.mrb[0].mxu0 %v421
        %v460 = vpop.f32.mrb[0].mxu0
        %v461 = vadd.f32 0.0, %v460
        %v462 = vpop.f32.mrb[0].mxu0
        %v463 = vpop.f32.mrb[0].mxu0
        %v464 = vpop.f32.mrb[0].mxu0
        %465 = vdwg.mxu0
        %v466 = vadd.f32 %v411, %v461
        %s467 = scalar_lea.vmem %s302, 12
        %v468 = vld [vmem:[%s467] sm:$0xf]
        %s469 = scalar_lea.vmem %s2, 12
        %v470 = vld [vmem:[%s469] sm:$0xf]
        %v472 = vsel %vm322, %v468, 0
        %v475 = vsel %vm326, %v470, 0
        %477 = vmatprep.subr.bf16.mxu0 0
        %478 = vmatpush1.bf16.msra.mxu0 %v475
        %479 = vmatprep.subr.bf16.mxu0 0
        %480 = vmatpush1.bf16.msra.mxu0 0
        %481 = vmatprep.subr.bf16.mxu0 0
        %482 = vmatpush1.bf16.msra.mxu0 0
        %483 = vmatprep.subr.bf16.mxu0 0
        %484 = vmatpush1.bf16.msra.mxu0 0
        %485 = vmatprep.subr.bf16.mxu0 0
        %486 = vmatpush1.bf16.msra.mxu0 0
        %487 = vmatprep.subr.bf16.mxu0 0
        %488 = vmatpush1.bf16.msra.mxu0 0
        %489 = vmatprep.subr.bf16.mxu0 0
        %490 = vmatpush1.bf16.msra.mxu0 0
        %491 = vmatprep.subr.bf16.mxu0 0
        %492 = vmatpush1.bf16.msra.mxu0 0
        %493 = vmatprep.subr.bf16.mxu0 0
        %494 = vmatpush1.bf16.msra.mxu0 0
        %495 = vmatprep.subr.bf16.mxu0 0
        %496 = vmatpush1.bf16.msra.mxu0 0
        %497 = vmatprep.subr.bf16.mxu0 0
        %498 = vmatpush1.bf16.msra.mxu0 0
        %499 = vmatprep.subr.bf16.mxu0 0
        %500 = vmatpush1.bf16.msra.mxu0 0
        %501 = vmatprep.subr.bf16.mxu0 0
        %502 = vmatpush1.bf16.msra.mxu0 0
        %503 = vmatprep.subr.bf16.mxu0 0
        %504 = vmatpush1.bf16.msra.mxu0 0
        %505 = vmatprep.subr.bf16.mxu0 0
        %506 = vmatpush1.bf16.msra.mxu0 0
        %507 = vmatprep.subr.bf16.mxu0 0
        %508 = vmatpush1.bf16.msra.mxu0 0
        %509 = vmatprep.mubr.bf16.mxu0 0
        %510 = vmatmul.mubr.bf16.gmra.mrb[0].mxu0 %v472
        %v511 = vpop.f32.mrb[0].mxu0
        %v512 = vadd.f32 0.0, %v511
        %v513 = vpop.f32.mrb[0].mxu0
        %v514 = vpop.f32.mrb[0].mxu0
        %v515 = vpop.f32.mrb[0].mxu0
        %516 = vdwg.mxu0
        %v517 = vadd.f32 %v466, %v512
        %v518 = vld [vmem:[%s306] sm:$0xff]
        %v519 = vadd.f32 %v517, %v518
        %vm520 = vcmask 261120
        %521 = vst.msk [vmem:[%s291] sm:$0xff] %vm520, %v519
        %v522 = vmul.f32 %v519, %v519
        %v523 = vsel %vm520, %v522, 0.0
        %524 = vadd.xlane.f32.xlu0 %v523
        %v525 = vpop.xlane.xlu0 %524
        %v526 = vrcp.pop 32.0
        %v527 = vmul.f32 %v525, %v526
        %v528 = vadd.f32 %v527, 1e-05
        %v529 = vrsqrt.pop %v528
        %v530 = vmul.f32 %v519, %v529
        %v531 = vld [vmem:[%s3] sm:$0x1]
        %v533 = vlaneseq
        %v534 = vshrl.u32 %v533, 7
        %v535 = vsub.s32 0, %v534
        %v536 = vrot.slane %v531, %v535
        %v538 = vmul.f32 %v530, %v536
        %v539 = vpack.c.bf16 %v538, %v538
        %vm540 = vcmask 257024
        %541 = vst.msk [vmem:[%s310] sm:$0xf] %vm540, %v539
        %v542 = vld [vmem:[%s4] sm:$0xf]
        %v543 = vld [vmem:[%s4 + $0x4] sm:$0xf]
        %v544 = vld [vmem:[%s4 + $0x8] sm:$0xf]
        %v545 = vld [vmem:[%s4 + $0xc] sm:$0xf]
        %v550 = vunpack.c.l.b16 %v542
        %v551 = vunpack.c.l.b16 %v543
        %v552 = vunpack.c.l.b16 %v544
        %v553 = vunpack.c.l.b16 %v545
        %v554 = vpack.c.b16 %v551, %v550
        %v555 = vpack.c.b16 %v553, %v552
        %v559 = vsel %vm520, %v539, 0
        %561 = vmatprep.subr.bf16.mxu0 0
        %562 = vmatpush1.bf16.msra.mxu0 %v554
        %563 = vmatprep.subr.bf16.mxu0 0
        %564 = vmatpush1.bf16.msra.mxu0 %v555
        %565 = vmatprep.subr.bf16.mxu0 0
        %566 = vmatpush1.bf16.msra.mxu0 0
        %567 = vmatprep.subr.bf16.mxu0 0
        %568 = vmatpush1.bf16.msra.mxu0 0
        %569 = vmatprep.subr.bf16.mxu0 0
        %570 = vmatpush1.bf16.msra.mxu0 0
        %571 = vmatprep.subr.bf16.mxu0 0
        %572 = vmatpush1.bf16.msra.mxu0 0
        %573 = vmatprep.subr.bf16.mxu0 0
        %574 = vmatpush1.bf16.msra.mxu0 0
        %575 = vmatprep.subr.bf16.mxu0 0
        %576 = vmatpush1.bf16.msra.mxu0 0
        %577 = vmatprep.subr.bf16.mxu0 0
        %578 = vmatpush1.bf16.msra.mxu0 0
        %579 = vmatprep.subr.bf16.mxu0 0
        %580 = vmatpush1.bf16.msra.mxu0 0
        %581 = vmatprep.subr.bf16.mxu0 0
        %582 = vmatpush1.bf16.msra.mxu0 0
        %583 = vmatprep.subr.bf16.mxu0 0
        %584 = vmatpush1.bf16.msra.mxu0 0
        %585 = vmatprep.subr.bf16.mxu0 0
        %586 = vmatpush1.bf16.msra.mxu0 0
        %587 = vmatprep.subr.bf16.mxu0 0
        %588 = vmatpush1.bf16.msra.mxu0 0
        %589 = vmatprep.subr.bf16.mxu0 0
        %590 = vmatpush1.bf16.msra.mxu0 0
        %591 = vmatprep.subr.bf16.mxu0 0
        %592 = vmatpush1.bf16.msra.mxu0 0
        %593 = vmatprep.mubr.bf16.mxu0 0
        %594 = vmatmul.mubr.bf16.gmra.mrb[0].mxu0 %v559
        %v595 = vpop.f32.mrb[0].mxu0
        %v596 = vadd.f32 0.0, %v595
        %v597 = vpop.f32.mrb[0].mxu0
        %v598 = vpop.f32.mrb[0].mxu0
        %v599 = vpop.f32.mrb[0].mxu0
        %600 = vdwg.mxu0
        %vm601 = vcmask 31744
        %602 = vst.msk [vmem:[%s314] sm:$0xff] %vm601, %v596
        %p603 = scmp.lt.s32.totalorder %s22, 1
        %s604 = scalar_select %p603, %s22, 1
        %s605 = smul.addr %s604, 4
        %s606 = scalar_lea.vmem %s5, %s605
        %s607 = sand.u32 %s171, 1
        %s608 = scalar_lea.sflag [#allocation3], %s607
        %s609 = sand.u32 %s171, 1
        %s610 = smul.addr %s609, 8
        %s611 = scalar_lea.vmem [#allocation2], %s610
        %p612 = scmp.lt.s32.totalorder %s22, 1
        %s613 = scalar_select %p612, %s22, 1
        %s614 = smul.addr %s613, 8
        %s615 = scalar_lea.vmem %s7, %s614
        // Predicated region
        $region41: #{mixtral_decoder_layer.6} parent=39 // pred_check
          %p616 = pneg %p155
        $region42: #{mixtral_decoder_layer.6} parent=39 // pred_check_branch
          %618 = sbr.rel (%p616) target = $region44
        $region43: #{mixtral_decoder_layer.6} parent=39 // pred_region
          _
        $region44: #{mixtral_decoder_layer.6} parent=39 // pred_fallthru
          _
        // Predicated region
        $region45: #{mixtral_decoder_layer.6} parent=39 // pred_check
          %p619 = pneg %p181
        $region46: #{mixtral_decoder_layer.6} parent=39 // pred_check_branch
          %621 = sbr.rel (%p619) target = $region48
        $region47: #{mixtral_decoder_layer.6} parent=39 // pred_region
          %s623 = ssub.s32 128, 128
          %624 = vsyncadd %s608, %s623
          %s625 = smul.addr %s22, 128
          %s626 = scalar_lea.hbm %s6, %s625
          %s628 = sshll.u32 %s611, 4
          %s629 = int_to_ptr.vmem [resolvable:$true] %s628
          %631 = dma.vmem_to_hbm [thread:$0]  %s629, 128, %s626, %s608
        $region48: #{mixtral_decoder_layer.6} parent=39 // pred_fallthru
          _
        // Predicated region
        $region49: #{mixtral_decoder_layer.6} parent=39 // pred_check
          %p632 = pneg %p207
        $region50: #{mixtral_decoder_layer.6} parent=39 // pred_check_branch
          %634 = sbr.rel (%p632) target = $region52
        $region51: #{mixtral_decoder_layer.6} parent=39 // pred_region
          _
        $region52: #{mixtral_decoder_layer.6} parent=39 // pred_fallthru
          _
      $region40: #{mixtral_decoder_layer.6} parent=5 // pred_fallthru
        _
      %p635 = scmp.le.s32.totalorder 2, %s17
      // Predicated region
      $region53: #{mixtral_decoder_layer.6} parent=5 // pred_check
        %p636 = pneg %p635
      $region54: #{mixtral_decoder_layer.6} parent=5 // pred_check_branch
        %638 = sbr.rel (%p636) target = $region56
      $region55: #{mixtral_decoder_layer.6} parent=5 // pred_region
        %s639 = ssub.s32 %s17, 2
        // Predicated region
        $region57: #{mixtral_decoder_layer.6} parent=55 // pred_check
          %p640 = pneg %p161
        $region58: #{mixtral_decoder_layer.6} parent=55 // pred_check_branch
          %642 = sbr.rel (%p640) target = $region60
        $region59: #{mixtral_decoder_layer.6} parent=55 // pred_region
          %p643 = scmp.lt.s32.totalorder %s23, 1
          %s644 = scalar_select %p643, %s23, 1
          %s645 = smul.addr %s644, 4
          %s646 = scalar_lea.vmem %s5, %s645
        $region60: #{mixtral_decoder_layer.6} parent=55 // pred_fallthru
          _
        // Predicated region
        $region61: #{mixtral_decoder_layer.6} parent=55 // pred_check
          %p647 = pneg %p187
        $region62: #{mixtral_decoder_layer.6} parent=55 // pred_check_branch
          %649 = sbr.rel (%p647) target = $region64
        $region63: #{mixtral_decoder_layer.6} parent=55 // pred_region
          %s650 = sand.u32 %s172, 1
          %s651 = scalar_lea.sflag [#allocation3], %s650
          %s652 = sand.u32 %s172, 1
          %s653 = smul.addr %s652, 8
          %s654 = scalar_lea.vmem [#allocation2], %s653
          %655 = dma.done %s651, 128
        $region64: #{mixtral_decoder_layer.6} parent=55 // pred_fallthru
          _
        // Predicated region
        $region65: #{mixtral_decoder_layer.6} parent=55 // pred_check
          %p656 = pneg %p213
        $region66: #{mixtral_decoder_layer.6} parent=55 // pred_check_branch
          %658 = sbr.rel (%p656) target = $region68
        $region67: #{mixtral_decoder_layer.6} parent=55 // pred_region
          %p659 = scmp.lt.s32.totalorder %s23, 1
          %s660 = scalar_select %p659, %s23, 1
          %s661 = smul.addr %s660, 8
          %s662 = scalar_lea.vmem %s7, %s661
        $region68: #{mixtral_decoder_layer.6} parent=55 // pred_fallthru
          _
      $region56: #{mixtral_decoder_layer.6} parent=5 // pred_fallthru
        _
    $region6: #{mixtral_decoder_layer.6} parent=1 // loop_footer
      %s21 = sadd.s32 1, %s17
    $region7: #{mixtral_decoder_layer.6} parent=1 // loop_footer_branch
      %16 = sbr.rel target = $region3
    $region8: #{mixtral_decoder_layer.6} parent=1 // loop_exit
      _
    %663 = vsyncpa [#allocation3], 1
    %s664 = scalar_lea.sflag [#allocation3], 1
    %665 = vsyncpa %s664, 1

// kernel: mixtral_decoder_layer.4
$region0: #{mixtral_decoder_layer.4}
  #allocation0 [shape = 'u32[]', space=smem, size = 0x4, offset = 0x4, fixed_abs, tag = 'smem constant byte address 0x4 - core index']
  #allocation1 [shape = 'u32[144,128]{1,0:T(1,128)}', space=vmem, size = 0x12000, scoped, tag = 'internal scratch']
  %s0 = inlined_call_operand.vmem [shape: f32[2,8,32], index: 0, kind: input, shape index: {}, may-alias: {0,1}]
  %s1 = inlined_call_operand.vmem [shape: f32[2,8,32], index: 1, kind: input, shape index: {}, may-alias: {0,1}]
  %s2 = inlined_call_operand.vmem [shape: f32[1,32], index: 2, kind: input, shape index: {}]
  %s3 = inlined_call_operand.vmem [shape: bf16[32,64], index: 3, kind: input, shape index: {}]
  %s4 = inlined_call_operand.vmem [shape: f32[2,8,4], index: 4, kind: input, shape index: {}]
  %s5 = inlined_call_operand.vmem [shape: f32[2,8,4], index: 5, kind: input, shape index: {}]
  %s6 = inlined_call_operand.vmem [shape: f32[2,8,32], index: 6, kind: output, shape index: {0}]
  %s7 = inlined_call_operand.vmem [shape: bf16[2,4,8,8], index: 7, kind: output, shape index: {1}]
  %s8 = inlined_call_operand.vmem [shape: bf16[2,2,8,8], index: 8, kind: output, shape index: {2}]
  %s9 = inlined_call_operand.vmem [shape: bf16[2,2,8,8], index: 9, kind: output, shape index: {3}]
  %10 = xla_tuple %s6, %s7, %s8, %s9
  %s11 = sld [smem:[#allocation0]]
  $region81: #{mixtral_decoder_layer.4} parent=0
    _
  %s13 = ssub.s32 1, %s11
  %s14 = scalar_select 0, %s13, %s11
  loop: start=0, step=1, limit=4
  $region2: #{mixtral_decoder_layer.4} parent=0 // loop_pre_header
    _
  $region3: #{mixtral_decoder_layer.4} parent=0 // loop_header
    %s16 = sphi 0, %s20
    %p17 = scmp.ge.s32.totalorder %s16, 4
    %s26 = sphi 0, %s28
    %s29 = sphi 0, %s26
    %s30 = sphi 0, %s29
    %s46 = sphi 0, %s30
    %s52 = sphi 0, %s54
    %s55 = sphi 0, %s52
    %s56 = sphi 0, %s55
    %s72 = sphi 0, %s56
    %s76 = sphi 0, %s76
    %s78 = sphi 0, %s76
    %s79 = sphi 0, %s78
    %s93 = sphi 0, %s79
    %s97 = sphi 0, %s97
    %s99 = sphi 0, %s97
    %s100 = sphi 0, %s99
    %s114 = sphi 0, %s100
    %s120 = sphi 0, %s122
    %s123 = sphi 0, %s120
    %s124 = sphi 0, %s123
    %s140 = sphi 0, %s124
    %s146 = sphi 0, %s148
    %s149 = sphi 0, %s146
    %s150 = sphi 0, %s149
    %s166 = sphi 0, %s150
    %s172 = sphi 0, %s174
    %s175 = sphi 0, %s172
    %s176 = sphi 0, %s175
    %s192 = sphi 0, %s176
    %s198 = sphi 0, %s200
    %s201 = sphi 0, %s198
    %s202 = sphi 0, %s201
    %s218 = sphi 0, %s202
    %s224 = sphi 0, %s226
    %s227 = sphi 0, %s224
    %s228 = sphi 0, %s227
    %s244 = sphi 0, %s228
    %s250 = sphi 0, %s252
    %s253 = sphi 0, %s250
    %s254 = sphi 0, %s253
    %s270 = sphi 0, %s254
  $region4: #{mixtral_decoder_layer.4} parent=0 // loop_header_branch
    %19 = sbr.rel (%p17) target = $region8
  $region5: #{mixtral_decoder_layer.4} parent=0 // loop_body
    %s21 = ssub.s32 %s16, 1
    %s22 = ssub.s32 %s16, 2
    %s23 = sadd.s32 %s16, 1
    %s24 = ssub.s32 %s16, %s23
    %p25 = scmp.eq.s32.totalorder %s24, 0
    %s27 = sadd.s32 %s26, 1
    %s28 = scalar_select %p25, %s26, %s27
    %p31 = pneg %p25
    %p32 = scmp.eq.s32.totalorder %s16, 1
    %p33 = por %p31, %p32
    %p34 = scmp.ne.s32.totalorder %s26, %s29
    %p35 = scmp.eq.s32.totalorder %s16, 0
    %p36 = por %p34, %p35
    %p37 = scmp.ne.s32.totalorder %s26, %s29
    %p38 = scmp.eq.s32.totalorder %s21, 1
    %p39 = por %p37, %p38
    %p40 = scmp.ne.s32.totalorder %s29, %s30
    %p41 = scmp.eq.s32.totalorder %s21, 0
    %p42 = por %p40, %p41
    %p43 = scmp.ne.s32.totalorder %s29, %s30
    %p44 = scmp.eq.s32.totalorder %s22, 1
    %p45 = por %p43, %p44
    %p47 = scmp.ne.s32.totalorder %s30, %s46
    %p48 = scmp.eq.s32.totalorder %s22, 0
    %p49 = por %p47, %p48
    %s50 = ssub.s32 %s16, %s23
    %p51 = scmp.eq.s32.totalorder %s50, 0
    %s53 = sadd.s32 %s52, 1
    %s54 = scalar_select %p51, %s52, %s53
    %p57 = pneg %p51
    %p58 = scmp.eq.s32.totalorder %s16, 1
    %p59 = por %p57, %p58
    %p60 = scmp.ne.s32.totalorder %s52, %s55
    %p61 = scmp.eq.s32.totalorder %s16, 0
    %p62 = por %p60, %p61
    %p63 = scmp.ne.s32.totalorder %s52, %s55
    %p64 = scmp.eq.s32.totalorder %s21, 1
    %p65 = por %p63, %p64
    %p66 = scmp.ne.s32.totalorder %s55, %s56
    %p67 = scmp.eq.s32.totalorder %s21, 0
    %p68 = por %p66, %p67
    %p69 = scmp.ne.s32.totalorder %s55, %s56
    %p70 = scmp.eq.s32.totalorder %s22, 1
    %p71 = por %p69, %p70
    %p73 = scmp.ne.s32.totalorder %s56, %s72
    %p74 = scmp.eq.s32.totalorder %s22, 0
    %p75 = por %p73, %p74
    %s77 = sadd.s32 %s76, 1
    %p80 = scmp.eq.s32.totalorder %s16, 1
    %p81 = scmp.ne.s32.totalorder %s76, %s78
    %p82 = scmp.eq.s32.totalorder %s16, 0
    %p83 = por %p81, %p82
    %p84 = scmp.ne.s32.totalorder %s76, %s78
    %p85 = scmp.eq.s32.totalorder %s21, 1
    %p86 = por %p84, %p85
    %p87 = scmp.ne.s32.totalorder %s78, %s79
    %p88 = scmp.eq.s32.totalorder %s21, 0
    %p89 = por %p87, %p88
    %p90 = scmp.ne.s32.totalorder %s78, %s79
    %p91 = scmp.eq.s32.totalorder %s22, 1
    %p92 = por %p90, %p91
    %p94 = scmp.ne.s32.totalorder %s79, %s93
    %p95 = scmp.eq.s32.totalorder %s22, 0
    %p96 = por %p94, %p95
    %s98 = sadd.s32 %s97, 1
    %p101 = scmp.eq.s32.totalorder %s16, 1
    %p102 = scmp.ne.s32.totalorder %s97, %s99
    %p103 = scmp.eq.s32.totalorder %s16, 0
    %p104 = por %p102, %p103
    %p105 = scmp.ne.s32.totalorder %s97, %s99
    %p106 = scmp.eq.s32.totalorder %s21, 1
    %p107 = por %p105, %p106
    %p108 = scmp.ne.s32.totalorder %s99, %s100
    %p109 = scmp.eq.s32.totalorder %s21, 0
    %p110 = por %p108, %p109
    %p111 = scmp.ne.s32.totalorder %s99, %s100
    %p112 = scmp.eq.s32.totalorder %s22, 1
    %p113 = por %p111, %p112
    %p115 = scmp.ne.s32.totalorder %s100, %s114
    %p116 = scmp.eq.s32.totalorder %s22, 0
    %p117 = por %p115, %p116
    %s118 = ssub.s32 %s16, %s23
    %p119 = scmp.eq.s32.totalorder %s118, 0
    %s121 = sadd.s32 %s120, 1
    %s122 = scalar_select %p119, %s120, %s121
    %p125 = pneg %p119
    %p126 = scmp.eq.s32.totalorder %s16, 1
    %p127 = por %p125, %p126
    %p128 = scmp.ne.s32.totalorder %s120, %s123
    %p129 = scmp.eq.s32.totalorder %s16, 0
    %p130 = por %p128, %p129
    %p131 = scmp.ne.s32.totalorder %s120, %s123
    %p132 = scmp.eq.s32.totalorder %s21, 1
    %p133 = por %p131, %p132
    %p134 = scmp.ne.s32.totalorder %s123, %s124
    %p135 = scmp.eq.s32.totalorder %s21, 0
    %p136 = por %p134, %p135
    %p137 = scmp.ne.s32.totalorder %s123, %s124
    %p138 = scmp.eq.s32.totalorder %s22, 1
    %p139 = por %p137, %p138
    %p141 = scmp.ne.s32.totalorder %s124, %s140
    %p142 = scmp.eq.s32.totalorder %s22, 0
    %p143 = por %p141, %p142
    %s144 = ssub.s32 %s16, %s23
    %p145 = scmp.eq.s32.totalorder %s144, 0
    %s147 = sadd.s32 %s146, 1
    %s148 = scalar_select %p145, %s146, %s147
    %p151 = pneg %p145
    %p152 = scmp.eq.s32.totalorder %s16, 1
    %p153 = por %p151, %p152
    %p154 = scmp.ne.s32.totalorder %s146, %s149
    %p155 = scmp.eq.s32.totalorder %s16, 0
    %p156 = por %p154, %p155
    %p157 = scmp.ne.s32.totalorder %s146, %s149
    %p158 = scmp.eq.s32.totalorder %s21, 1
    %p159 = por %p157, %p158
    %p160 = scmp.ne.s32.totalorder %s149, %s150
    %p161 = scmp.eq.s32.totalorder %s21, 0
    %p162 = por %p160, %p161
    %p163 = scmp.ne.s32.totalorder %s149, %s150
    %p164 = scmp.eq.s32.totalorder %s22, 1
    %p165 = por %p163, %p164
    %p167 = scmp.ne.s32.totalorder %s150, %s166
    %p168 = scmp.eq.s32.totalorder %s22, 0
    %p169 = por %p167, %p168
    %s170 = ssub.s32 %s16, %s23
    %p171 = scmp.eq.s32.totalorder %s170, 0
    %s173 = sadd.s32 %s172, 1
    %s174 = scalar_select %p171, %s172, %s173
    %p177 = pneg %p171
    %p178 = scmp.eq.s32.totalorder %s16, 1
    %p179 = por %p177, %p178
    %p180 = scmp.ne.s32.totalorder %s172, %s175
    %p181 = scmp.eq.s32.totalorder %s16, 0
    %p182 = por %p180, %p181
    %p183 = scmp.ne.s32.totalorder %s172, %s175
    %p184 = scmp.eq.s32.totalorder %s21, 1
    %p185 = por %p183, %p184
    %p186 = scmp.ne.s32.totalorder %s175, %s176
    %p187 = scmp.eq.s32.totalorder %s21, 0
    %p188 = por %p186, %p187
    %p189 = scmp.ne.s32.totalorder %s175, %s176
    %p190 = scmp.eq.s32.totalorder %s22, 1
    %p191 = por %p189, %p190
    %p193 = scmp.ne.s32.totalorder %s176, %s192
    %p194 = scmp.eq.s32.totalorder %s22, 0
    %p195 = por %p193, %p194
    %s196 = ssub.s32 %s16, %s23
    %p197 = scmp.eq.s32.totalorder %s196, 0
    %s199 = sadd.s32 %s198, 1
    %s200 = scalar_select %p197, %s198, %s199
    %p203 = pneg %p197
    %p204 = scmp.eq.s32.totalorder %s16, 1
    %p205 = por %p203, %p204
    %p206 = scmp.ne.s32.totalorder %s198, %s201
    %p207 = scmp.eq.s32.totalorder %s16, 0
    %p208 = por %p206, %p207
    %p209 = scmp.ne.s32.totalorder %s198, %s201
    %p210 = scmp.eq.s32.totalorder %s21, 1
    %p211 = por %p209, %p210
    %p212 = scmp.ne.s32.totalorder %s201, %s202
    %p213 = scmp.eq.s32.totalorder %s21, 0
    %p214 = por %p212, %p213
    %p215 = scmp.ne.s32.totalorder %s201, %s202
    %p216 = scmp.eq.s32.totalorder %s22, 1
    %p217 = por %p215, %p216
    %p219 = scmp.ne.s32.totalorder %s202, %s218
    %p220 = scmp.eq.s32.totalorder %s22, 0
    %p221 = por %p219, %p220
    %s222 = ssub.s32 %s16, %s23
    %p223 = scmp.eq.s32.totalorder %s222, 0
    %s225 = sadd.s32 %s224, 1
    %s226 = scalar_select %p223, %s224, %s225
    %p229 = pneg %p223
    %p230 = scmp.eq.s32.totalorder %s16, 1
    %p231 = por %p229, %p230
    %p232 = scmp.ne.s32.totalorder %s224, %s227
    %p233 = scmp.eq.s32.totalorder %s16, 0
    %p234 = por %p232, %p233
    %p235 = scmp.ne.s32.totalorder %s224, %s227
    %p236 = scmp.eq.s32.totalorder %s21, 1
    %p237 = por %p235, %p236
    %p238 = scmp.ne.s32.totalorder %s227, %s228
    %p239 = scmp.eq.s32.totalorder %s21, 0
    %p240 = por %p238, %p239
    %p241 = scmp.ne.s32.totalorder %s227, %s228
    %p242 = scmp.eq.s32.totalorder %s22, 1
    %p243 = por %p241, %p242
    %p245 = scmp.ne.s32.totalorder %s228, %s244
    %p246 = scmp.eq.s32.totalorder %s22, 0
    %p247 = por %p245, %p246
    %s248 = ssub.s32 %s16, %s23
    %p249 = scmp.eq.s32.totalorder %s248, 0
    %s251 = sadd.s32 %s250, 1
    %s252 = scalar_select %p249, %s250, %s251
    %p255 = pneg %p249
    %p256 = scmp.eq.s32.totalorder %s16, 1
    %p257 = por %p255, %p256
    %p258 = scmp.ne.s32.totalorder %s250, %s253
    %p259 = scmp.eq.s32.totalorder %s16, 0
    %p260 = por %p258, %p259
    %p261 = scmp.ne.s32.totalorder %s250, %s253
    %p262 = scmp.eq.s32.totalorder %s21, 1
    %p263 = por %p261, %p262
    %p264 = scmp.ne.s32.totalorder %s253, %s254
    %p265 = scmp.eq.s32.totalorder %s21, 0
    %p266 = por %p264, %p265
    %p267 = scmp.ne.s32.totalorder %s253, %s254
    %p268 = scmp.eq.s32.totalorder %s22, 1
    %p269 = por %p267, %p268
    %p271 = scmp.ne.s32.totalorder %s254, %s270
    %p272 = scmp.eq.s32.totalorder %s22, 0
    %p273 = por %p271, %p272
    %p274 = scmp.le.s32.totalorder 1, %s16
    %p275 = scmp.lt.s32.totalorder %s16, 3
    %p276 = pnand %p274, %p275
    %p277 = pneg %p276
    // Predicated region
    $region9: #{mixtral_decoder_layer.4} parent=5 // pred_check
      _
    $region10: #{mixtral_decoder_layer.4} parent=5 // pred_check_branch
      %279 = sbr.rel (%p276) target = $region12
    $region11: #{mixtral_decoder_layer.4} parent=5 // pred_region
      %s280 = ssub.s32 %s16, 1
      // Predicated region
      $region13: #{mixtral_decoder_layer.4} parent=11 // pred_check
        %p281 = pneg %p89
      $region14: #{mixtral_decoder_layer.4} parent=11 // pred_check_branch
        %283 = sbr.rel (%p281) target = $region16
      $region15: #{mixtral_decoder_layer.4} parent=11 // pred_region
        _
      $region16: #{mixtral_decoder_layer.4} parent=11 // pred_fallthru
        _
      // Predicated region
      $region17: #{mixtral_decoder_layer.4} parent=11 // pred_check
        %p284 = pneg %p110
      $region18: #{mixtral_decoder_layer.4} parent=11 // pred_check_branch
        %286 = sbr.rel (%p284) target = $region20
      $region19: #{mixtral_decoder_layer.4} parent=11 // pred_region
        _
      $region20: #{mixtral_decoder_layer.4} parent=11 // pred_fallthru
        _
    $region12: #{mixtral_decoder_layer.4} parent=5 // pred_fallthru
      _
    %p287 = scmp.lt.s32.totalorder %s16, 2
    // Predicated region
    $region21: #{mixtral_decoder_layer.4} parent=5 // pred_check
      %p288 = pneg %p287
    $region22: #{mixtral_decoder_layer.4} parent=5 // pred_check_branch
      %290 = sbr.rel (%p288) target = $region24
    $region23: #{mixtral_decoder_layer.4} parent=5 // pred_region
      // Predicated region
      $region25: #{mixtral_decoder_layer.4} parent=23 // pred_check
        %p291 = pneg %p36
      $region26: #{mixtral_decoder_layer.4} parent=23 // pred_check_branch
        %293 = sbr.rel (%p291) target = $region28
      $region27: #{mixtral_decoder_layer.4} parent=23 // pred_region
        %p294 = scmp.lt.s32.totalorder %s16, 1
        %s295 = scalar_select %p294, %s16, 1
        %s296 = smul.addr %s295, 8
        %s297 = scalar_lea.vmem %s0, %s296
      $region28: #{mixtral_decoder_layer.4} parent=23 // pred_fallthru
        _
      // Predicated region
      $region29: #{mixtral_decoder_layer.4} parent=23 // pred_check
        %p298 = pneg %p62
      $region30: #{mixtral_decoder_layer.4} parent=23 // pred_check_branch
        %300 = sbr.rel (%p298) target = $region32
      $region31: #{mixtral_decoder_layer.4} parent=23 // pred_region
        %p301 = scmp.lt.s32.totalorder %s16, 1
        %s302 = scalar_select %p301, %s16, 1
        %s303 = smul.addr %s302, 8
        %s304 = scalar_lea.vmem %s1, %s303
      $region32: #{mixtral_decoder_layer.4} parent=23 // pred_fallthru
        _
      // Predicated region
      $region33: #{mixtral_decoder_layer.4} parent=23 // pred_check
        %p305 = pneg %p130
      $region34: #{mixtral_decoder_layer.4} parent=23 // pred_check_branch
        %307 = sbr.rel (%p305) target = $region36
      $region35: #{mixtral_decoder_layer.4} parent=23 // pred_region
        %p308 = scmp.lt.s32.totalorder %s16, 1
        %s309 = scalar_select %p308, %s16, 1
        %s310 = smul.addr %s309, 8
        %s311 = scalar_lea.vmem %s4, %s310
      $region36: #{mixtral_decoder_layer.4} parent=23 // pred_fallthru
        _
      // Predicated region
      $region37: #{mixtral_decoder_layer.4} parent=23 // pred_check
        %p312 = pneg %p156
      $region38: #{mixtral_decoder_layer.4} parent=23 // pred_check_branch
        %314 = sbr.rel (%p312) target = $region40
      $region39: #{mixtral_decoder_layer.4} parent=23 // pred_region
        %p315 = scmp.lt.s32.totalorder %s16, 1
        %s316 = scalar_select %p315, %s16, 1
        %s317 = smul.addr %s316, 8
        %s318 = scalar_lea.vmem %s5, %s317
      $region40: #{mixtral_decoder_layer.4} parent=23 // pred_fallthru
        _
    $region24: #{mixtral_decoder_layer.4} parent=5 // pred_fallthru
      _
    %p319 = scmp.le.s32.totalorder 1, %s16
    %p320 = scmp.lt.s32.totalorder %s16, 3
    %p321 = pnand %p319, %p320
    %p322 = pneg %p321
    // Predicated region
    $region41: #{mixtral_decoder_layer.4} parent=5 // pred_check
      _
    $region42: #{mixtral_decoder_layer.4} parent=5 // pred_check_branch
      %324 = sbr.rel (%p321) target = $region44
    $region43: #{mixtral_decoder_layer.4} parent=5 // pred_region
      %s325 = ssub.s32 %s16, 1
      %p326 = scmp.lt.s32.totalorder %s21, 1
      %s327 = scalar_select %p326, %s21, 1
      %s328 = smul.addr %s327, 8
      %s329 = scalar_lea.vmem %s0, %s328
      %p330 = pneg %p42
      %p331 = pneg %p39
      %p332 = scmp.lt.s32.totalorder %s21, 1
      %s333 = scalar_select %p332, %s21, 1
      %s334 = smul.addr %s333, 8
      %s335 = scalar_lea.vmem %s1, %s334
      %p336 = pneg %p68
      %p337 = pneg %p65
      %p338 = pneg %p89
      %p339 = pneg %p86
      %p340 = pneg %p110
      %p341 = pneg %p107
      %p342 = scmp.lt.s32.totalorder %s21, 1
      %s343 = scalar_select %p342, %s21, 1
      %s344 = smul.addr %s343, 8
      %s345 = scalar_lea.vmem %s4, %s344
      %p346 = pneg %p136
      %p347 = pneg %p133
      %p348 = scmp.lt.s32.totalorder %s21, 1
      %s349 = scalar_select %p348, %s21, 1
      %s350 = smul.addr %s349, 8
      %s351 = scalar_lea.vmem %s5, %s350
      %p352 = pneg %p162
      %p353 = pneg %p159
      %p354 = pneg %p188
      %p355 = pneg %p185
      %p356 = scmp.lt.s32.totalorder %s21, 1
      %s357 = scalar_select %p356, %s21, 1
      %s358 = smul.addr %s357, 8
      %s359 = scalar_lea.vmem %s6, %s358
      %p360 = pneg %p214
      %p361 = pneg %p211
      %p362 = scmp.lt.s32.totalorder %s21, 1
      %s363 = scalar_select %p362, %s21, 1
      %s364 = smul.addr %s363, 4
      %s365 = smul.addr %s364, 4
      %s366 = scalar_lea.vmem %s7, %s365
      %p367 = pneg %p240
      %p368 = pneg %p237
      %p369 = scmp.lt.s32.totalorder %s21, 1
      %s370 = scalar_select %p369, %s21, 1
      %s371 = smul.addr %s370, 2
      %s372 = smul.addr %s371, 4
      %s373 = scalar_lea.vmem %s8, %s372
      %p374 = pneg %p266
      %p375 = pneg %p263
      %p376 = scmp.lt.s32.totalorder %s21, 1
      %s377 = scalar_select %p376, %s21, 1
      %s378 = smul.addr %s377, 2
      %s379 = smul.addr %s378, 4
      %s380 = scalar_lea.vmem %s9, %s379
      %p381 = scmp.lt.s32.totalorder %s21, 1
      %s382 = scalar_select %p381, %s21, 1
      %s383 = smul.addr %s382, 8
      %s384 = scalar_lea.vmem %s0, %s383
      %p385 = scmp.lt.s32.totalorder %s21, 1
      %s386 = scalar_select %p385, %s21, 1
      %s387 = smul.addr %s386, 8
      %s388 = scalar_lea.vmem %s1, %s387
      %p389 = scmp.lt.s32.totalorder %s21, 1
      %s390 = scalar_select %p389, %s21, 1
      %s391 = smul.addr %s390, 8
      %s392 = scalar_lea.vmem %s4, %s391
      %p393 = scmp.lt.s32.totalorder %s21, 1
      %s394 = scalar_select %p393, %s21, 1
      %s395 = smul.addr %s394, 8
      %s396 = scalar_lea.vmem %s5, %s395
      %p397 = scmp.lt.s32.totalorder %s21, 1
      %s398 = scalar_select %p397, %s21, 1
      %s399 = smul.addr %s398, 8
      %s400 = scalar_lea.vmem %s6, %s399
      %p401 = scmp.lt.s32.totalorder %s21, 1
      %s402 = scalar_select %p401, %s21, 1
      %s403 = smul.addr %s402, 4
      %s404 = smul.addr %s403, 4
      %s405 = scalar_lea.vmem %s7, %s404
      %p406 = scmp.lt.s32.totalorder %s21, 1
      %s407 = scalar_select %p406, %s21, 1
      %s408 = smul.addr %s407, 2
      %s409 = smul.addr %s408, 4
      %s410 = scalar_lea.vmem %s8, %s409
      %p411 = scmp.lt.s32.totalorder %s21, 1
      %s412 = scalar_select %p411, %s21, 1
      %s413 = smul.addr %s412, 2
      %s414 = smul.addr %s413, 4
      %s415 = scalar_lea.vmem %s9, %s414
      %v417 = vld [vmem:[%s384] sm:$0xff]
      %vm418 = vcmask 261120
      %419 = vst.msk [vmem:[%s400] sm:$0xff] %vm418, %v417
      %v420 = vmul.f32 %v417, %v417
      %v421 = vsel %vm418, %v420, 0.0
      %422 = vadd.xlane.f32.xlu0 %v421
      %v423 = vpop.xlane.xlu0 %422
      %v424 = vrcp.pop 32.0
      %v425 = vmul.f32 %v423, %v424
      %v426 = vadd.f32 %v425, 1e-05
      %v427 = vrsqrt.pop %v426
      %v428 = vmul.f32 %v417, %v427
      %v429 = vld [vmem:[%s2] sm:$0x1]
      %v431 = vlaneseq
      %v432 = vshrl.u32 %v431, 7
      %v433 = vsub.s32 0, %v432
      %v434 = vrot.slane %v429, %v433
      %v436 = vmul.f32 %v428, %v434
      %v437 = vpack.c.bf16 %v436, %v436
      %v438 = vld [vmem:[%s3] sm:$0xf]
      %v439 = vld [vmem:[%s3 + $0x4] sm:$0xf]
      %v440 = vld [vmem:[%s3 + $0x8] sm:$0xf]
      %v441 = vld [vmem:[%s3 + $0xc] sm:$0xf]
      %v446 = vunpack.c.l.b16 %v438
      %v447 = vunpack.c.l.b16 %v439
      %v448 = vunpack.c.l.b16 %v440
      %v449 = vunpack.c.l.b16 %v441
      %v450 = vpack.c.b16 %v447, %v446
      %v451 = vpack.c.b16 %v449, %v448
      %v455 = vsel %vm418, %v437, 0
      %457 = vmatprep.subr.bf16.mxu0 0
      %458 = vmatpush1.bf16.msra.mxu0 %v450
      %459 = vmatprep.subr.bf16.mxu0 0
      %460 = vmatpush1.bf16.msra.mxu0 %v451
      %461 = vmatprep.subr.bf16.mxu0 0
      %462 = vmatpush1.bf16.msra.mxu0 0
      %463 = vmatprep.subr.bf16.mxu0 0
      %464 = vmatpush1.bf16.msra.mxu0 0
      %465 = vmatprep.subr.bf16.mxu0 0
      %466 = vmatpush1.bf16.msra.mxu0 0
      %467 = vmatprep.subr.bf16.mxu0 0
      %468 = vmatpush1.bf16.msra.mxu0 0
      %469 = vmatprep.subr.bf16.mxu0 0
      %470 = vmatpush1.bf16.msra.mxu0 0
      %471 = vmatprep.subr.bf16.mxu0 0
      %472 = vmatpush1.bf16.msra.mxu0 0
      %473 = vmatprep.subr.bf16.mxu0 0
      %474 = vmatpush1.bf16.msra.mxu0 0
      %475 = vmatprep.subr.bf16.mxu0 0
      %476 = vmatpush1.bf16.msra.mxu0 0
      %477 = vmatprep.subr.bf16.mxu0 0
      %478 = vmatpush1.bf16.msra.mxu0 0
      %479 = vmatprep.subr.bf16.mxu0 0
      %480 = vmatpush1.bf16.msra.mxu0 0
      %481 = vmatprep.subr.bf16.mxu0 0
      %482 = vmatpush1.bf16.msra.mxu0 0
      %483 = vmatprep.subr.bf16.mxu0 0
      %484 = vmatpush1.bf16.msra.mxu0 0
      %485 = vmatprep.subr.bf16.mxu0 0
      %486 = vmatpush1.bf16.msra.mxu0 0
      %487 = vmatprep.subr.bf16.mxu0 0
      %488 = vmatpush1.bf16.msra.mxu0 0
      %489 = vmatprep.mubr.bf16.mxu0 0
      %490 = vmatmul.mubr.bf16.gmra.mrb[0].mxu0 %v455
      %v491 = vpop.f32.mrb[0].mxu0
      %v492 = vadd.f32 0.0, %v491
      %v493 = vpop.f32.mrb[0].mxu0
      %v494 = vpop.f32.mrb[0].mxu0
      %v495 = vpop.f32.mrb[0].mxu0
      %496 = vdwg.mxu0
      %v497 = vld [vmem:[%s392] sm:$0xff]
      %v498 = vld [vmem:[%s396] sm:$0xff]
      %v499 = vmul.f32 %v492, %v497
      %501 = vrot.lane.b32.xlu0 %v498, 4
      %v502 = vpop.permute.xlu0 %501
      %v504 = vmul.f32 %v492, %v502
      %506 = vrot.lane.b32.xlu0 %v504, 124
      %v507 = vpop.permute.xlu0 %506
      %v509 = vsub.f32 %v499, %v507
      %v510 = vmul.f32 %v509, 0.35355338
      %v511 = vpack.c.bf16 %v510, %v510
      %vm512 = vcmask 27648
      %513 = vst.msk [vmem:[%s405] sm:$0xf] %vm512, %v511
      %515 = vrot.lane.b32.xlu0 %v497, 4
      %v516 = vpop.permute.xlu0 %515
      %v518 = vmul.f32 %v492, %v516
      %v519 = vmul.f32 %v492, %v498
      %521 = vrot.lane.b32.xlu0 %v519, 4
      %v522 = vpop.permute.xlu0 %521
      %v524 = vadd.f32 %v518, %v522
      %v525 = vmul.f32 %v524, 0.35355338
      %v526 = vpack.c.bf16 %v525, %v525
      %vm527 = vcmask 60448
      %528 = vst.msk [vmem:[%s405] sm:$0xf] %vm527, %v526
      %529 = vrot.lane.b32.xlu0 %v497, 8
      %v530 = vpop.permute.xlu0 %529
      %v532 = vmul.f32 %v492, %v530
      %533 = vrot.lane.b32.xlu0 %v498, 12
      %v534 = vpop.permute.xlu0 %533
      %v536 = vmul.f32 %v492, %v534
      %538 = vrot.lane.b32.xlu0 %v536, 124
      %v539 = vpop.permute.xlu0 %538
      %v541 = vsub.f32 %v532, %v539
      %v542 = vmul.f32 %v541, 0.35355338
      %v543 = vpack.c.bf16 %v542, %v542
      %v545 = vunpack.c.l.b16 %v543
      %v546 = vpack.c.b16 %v545, %v545
      %547 = vrot.lane.b32.xlu0 %v546, 120
      %v548 = vpop.permute.xlu0 %547
      %s550 = scalar_lea.vmem %s405, 4
      %551 = vst.msk [vmem:[%s550] sm:$0xf] %vm512, %v548
      %552 = vrot.lane.b32.xlu0 %v497, 12
      %v553 = vpop.permute.xlu0 %552
      %v555 = vmul.f32 %v492, %v553
      %556 = vrot.lane.b32.xlu0 %v498, 8
      %v557 = vpop.permute.xlu0 %556
      %v559 = vmul.f32 %v492, %v557
      %561 = vrot.lane.b32.xlu0 %v559, 4
      %v562 = vpop.permute.xlu0 %561
      %v564 = vadd.f32 %v555, %v562
      %v565 = vmul.f32 %v564, 0.35355338
      %v566 = vpack.c.bf16 %v565, %v565
      %v568 = vunpack.c.l.b16 %v566
      %v569 = vpack.c.b16 %v568, %v568
      %570 = vrot.lane.b32.xlu0 %v569, 120
      %v571 = vpop.permute.xlu0 %570
      %573 = vst.msk [vmem:[%s550] sm:$0xf] %vm527, %v571
      %574 = vrot.lane.b32.xlu0 %v497, 16
      %v575 = vpop.permute.xlu0 %574
      %v577 = vmul.f32 %v492, %v575
      %578 = vrot.lane.b32.xlu0 %v498, 20
      %v579 = vpop.permute.xlu0 %578
      %v581 = vmul.f32 %v492, %v579
      %583 = vrot.lane.b32.xlu0 %v581, 124
      %v584 = vpop.permute.xlu0 %583
      %v586 = vsub.f32 %v577, %v584
      %v587 = vmul.f32 %v586, 0.35355338
      %v588 = vpack.c.bf16 %v587, %v587
      %v590 = vunpack.c.l.b16 %v588
      %v591 = vpack.c.b16 %v590, %v590
      %592 = vrot.lane.b32.xlu0 %v591, 112
      %v593 = vpop.permute.xlu0 %592
      %s595 = scalar_lea.vmem %s405, 8
      %596 = vst.msk [vmem:[%s595] sm:$0xf] %vm512, %v593
      %597 = vrot.lane.b32.xlu0 %v497, 20
      %v598 = vpop.permute.xlu0 %597
      %v600 = vmul.f32 %v492, %v598
      %601 = vrot.lane.b32.xlu0 %v498, 16
      %v602 = vpop.permute.xlu0 %601
      %v604 = vmul.f32 %v492, %v602
      %606 = vrot.lane.b32.xlu0 %v604, 4
      %v607 = vpop.permute.xlu0 %606
      %v609 = vadd.f32 %v600, %v607
      %v610 = vmul.f32 %v609, 0.35355338
      %v611 = vpack.c.bf16 %v610, %v610
      %v613 = vunpack.c.l.b16 %v611
      %v614 = vpack.c.b16 %v613, %v613
      %615 = vrot.lane.b32.xlu0 %v614, 112
      %v616 = vpop.permute.xlu0 %615
      %618 = vst.msk [vmem:[%s595] sm:$0xf] %vm527, %v616
      %619 = vrot.lane.b32.xlu0 %v497, 24
      %v620 = vpop.permute.xlu0 %619
      %v622 = vmul.f32 %v492, %v620
      %623 = vrot.lane.b32.xlu0 %v498, 28
      %v624 = vpop.permute.xlu0 %623
      %v626 = vmul.f32 %v492, %v624
      %628 = vrot.lane.b32.xlu0 %v626, 124
      %v629 = vpop.permute.xlu0 %628
      %v631 = vsub.f32 %v622, %v629
      %v632 = vmul.f32 %v631, 0.35355338
      %v633 = vpack.c.bf16 %v632, %v632
      %v635 = vunpack.c.l.b16 %v633
      %v636 = vpack.c.b16 %v635, %v635
      %637 = vrot.lane.b32.xlu0 %v636, 104
      %v638 = vpop.permute.xlu0 %637
      %s640 = scalar_lea.vmem %s405, 12
      %641 = vst.msk [vmem:[%s640] sm:$0xf] %vm512, %v638
      %642 = vrot.lane.b32.xlu0 %v497, 28
      %v643 = vpop.permute.xlu0 %642
      %v645 = vmul.f32 %v492, %v643
      %646 = vrot.lane.b32.xlu0 %v498, 24
      %v647 = vpop.permute.xlu0 %646
      %v649 = vmul.f32 %v492, %v647
      %651 = vrot.lane.b32.xlu0 %v649, 4
      %v652 = vpop.permute.xlu0 %651
      %v654 = vadd.f32 %v645, %v652
      %v655 = vmul.f32 %v654, 0.35355338
      %v656 = vpack.c.bf16 %v655, %v655
      %v658 = vunpack.c.l.b16 %v656
      %v659 = vpack.c.b16 %v658, %v658
      %660 = vrot.lane.b32.xlu0 %v659, 104
      %v661 = vpop.permute.xlu0 %660
      %663 = vst.msk [vmem:[%s640] sm:$0xf] %vm527, %v661
      %664 = vrot.lane.b32.xlu0 %v497, 32
      %v665 = vpop.permute.xlu0 %664
      %v667 = vmul.f32 %v492, %v665
      %668 = vrot.lane.b32.xlu0 %v498, 36
      %v669 = vpop.permute.xlu0 %668
      %v671 = vmul.f32 %v492, %v669
      %673 = vrot.lane.b32.xlu0 %v671, 124
      %v674 = vpop.permute.xlu0 %673
      %v676 = vsub.f32 %v667, %v674
      %v677 = vpack.c.bf16 %v676, %v676
      %v679 = vunpack.c.l.b16 %v677
      %v680 = vpack.c.b16 %v679, %v679
      %681 = vrot.lane.b32.xlu0 %v680, 96
      %v682 = vpop.permute.xlu0 %681
      %684 = vst.msk [vmem:[%s410] sm:$0xf] %vm512, %v682
      %685 = vrot.lane.b32.xlu0 %v497, 36
      %v686 = vpop.permute.xlu0 %685
      %v688 = vmul.f32 %v492, %v686
      %689 = vrot.lane.b32.xlu0 %v498, 32
      %v690 = vpop.permute.xlu0 %689
      %v692 = vmul.f32 %v492, %v690
      %694 = vrot.lane.b32.xlu0 %v692, 4
      %v695 = vpop.permute.xlu0 %694
      %v697 = vadd.f32 %v688, %v695
      %v698 = vpack.c.bf16 %v697, %v697
      %v700 = vunpack.c.l.b16 %v698
      %v701 = vpack.c.b16 %v700, %v700
      %702 = vrot.lane.b32.xlu0 %v701, 96
      %v703 = vpop.permute.xlu0 %702
      %705 = vst.msk [vmem:[%s410] sm:$0xf] %vm527, %v703
      %v706 = vpack.c.bf16 %v492, %v492
      %v708 = vunpack.c.l.b16 %v706
      %v709 = vpack.c.b16 %v708, %v708
      %710 = vrot.lane.b32.xlu0 %v709, 80
      %v711 = vpop.permute.xlu0 %710
      %vm713 = vcmask 60416
      %714 = vst.msk [vmem:[%s415] sm:$0xf] %vm713, %v711
      %715 = vrot.lane.b32.xlu0 %v497, 40
      %v716 = vpop.permute.xlu0 %715
      %v718 = vmul.f32 %v492, %v716
      %719 = vrot.lane.b32.xlu0 %v498, 44
      %v720 = vpop.permute.xlu0 %719
      %v722 = vmul.f32 %v492, %v720
      %724 = vrot.lane.b32.xlu0 %v722, 124
      %v725 = vpop.permute.xlu0 %724
      %v727 = vsub.f32 %v718, %v725
      %v728 = vpack.c.bf16 %v727, %v727
      %v730 = vunpack.c.l.b16 %v728
      %v731 = vpack.c.b16 %v730, %v730
      %732 = vrot.lane.b32.xlu0 %v731, 88
      %v733 = vpop.permute.xlu0 %732
      %s735 = scalar_lea.vmem %s410, 4
      %736 = vst.msk [vmem:[%s735] sm:$0xf] %vm512, %v733
      %737 = vrot.lane.b32.xlu0 %v497, 44
      %v738 = vpop.permute.xlu0 %737
      %v740 = vmul.f32 %v492, %v738
      %741 = vrot.lane.b32.xlu0 %v498, 40
      %v742 = vpop.permute.xlu0 %741
      %v744 = vmul.f32 %v492, %v742
      %746 = vrot.lane.b32.xlu0 %v744, 4
      %v747 = vpop.permute.xlu0 %746
      %v749 = vadd.f32 %v740, %v747
      %v750 = vpack.c.bf16 %v749, %v749
      %v752 = vunpack.c.l.b16 %v750
      %v753 = vpack.c.b16 %v752, %v752
      %754 = vrot.lane.b32.xlu0 %v753, 88
      %v755 = vpop.permute.xlu0 %754
      %757 = vst.msk [vmem:[%s735] sm:$0xf] %vm527, %v755
      %758 = vrot.lane.b32.xlu0 %v709, 72
      %v759 = vpop.permute.xlu0 %758
      %s761 = scalar_lea.vmem %s415, 4
      %762 = vst.msk [vmem:[%s761] sm:$0xf] %vm713, %v759
      %p763 = scmp.lt.s32.totalorder %s21, 1
      %s764 = scalar_select %p763, %s21, 1
      %s765 = smul.addr %s764, 8
      %s766 = scalar_lea.vmem %s6, %s765
      %p767 = scmp.lt.s32.totalorder %s21, 1
      %s768 = scalar_select %p767, %s21, 1
      %s769 = smul.addr %s768, 4
      %s770 = smul.addr %s769, 4
      %s771 = scalar_lea.vmem %s7, %s770
      %p772 = scmp.lt.s32.totalorder %s21, 1
      %s773 = scalar_select %p772, %s21, 1
      %s774 = smul.addr %s773, 2
      %s775 = smul.addr %s774, 4
      %s776 = scalar_lea.vmem %s8, %s775
      %p777 = scmp.lt.s32.totalorder %s21, 1
      %s778 = scalar_select %p777, %s21, 1
      %s779 = smul.addr %s778, 2
      %s780 = smul.addr %s779, 4
      %s781 = scalar_lea.vmem %s9, %s780
      // Predicated region
      $region45: #{mixtral_decoder_layer.4} parent=43 // pred_check
        %p782 = pneg %p185
      $region46: #{mixtral_decoder_layer.4} parent=43 // pred_check_branch
        %784 = sbr.rel (%p782) target = $region48
      $region47: #{mixtral_decoder_layer.4} parent=43 // pred_region
        _
      $region48: #{mixtral_decoder_layer.4} parent=43 // pred_fallthru
        _
      // Predicated region
      $region49: #{mixtral_decoder_layer.4} parent=43 // pred_check
        %p785 = pneg %p211
      $region50: #{mixtral_decoder_layer.4} parent=43 // pred_check_branch
        %787 = sbr.rel (%p785) target = $region52
      $region51: #{mixtral_decoder_layer.4} parent=43 // pred_region
        _
      $region52: #{mixtral_decoder_layer.4} parent=43 // pred_fallthru
        _
      // Predicated region
      $region53: #{mixtral_decoder_layer.4} parent=43 // pred_check
        %p788 = pneg %p237
      $region54: #{mixtral_decoder_layer.4} parent=43 // pred_check_branch
        %790 = sbr.rel (%p788) target = $region56
      $region55: #{mixtral_decoder_layer.4} parent=43 // pred_region
        _
      $region56: #{mixtral_decoder_layer.4} parent=43 // pred_fallthru
        _
      // Predicated region
      $region57: #{mixtral_decoder_layer.4} parent=43 // pred_check
        %p791 = pneg %p263
      $region58: #{mixtral_decoder_layer.4} parent=43 // pred_check_branch
        %793 = sbr.rel (%p791) target = $region60
      $region59: #{mixtral_decoder_layer.4} parent=43 // pred_region
        _
      $region60: #{mixtral_decoder_layer.4} parent=43 // pred_fallthru
        _
    $region44: #{mixtral_decoder_layer.4} parent=5 // pred_fallthru
      _
    %p794 = scmp.le.s32.totalorder 2, %s16
    // Predicated region
    $region61: #{mixtral_decoder_layer.4} parent=5 // pred_check
      %p795 = pneg %p794
    $region62: #{mixtral_decoder_layer.4} parent=5 // pred_check_branch
      %797 = sbr.rel (%p795) target = $region64
    $region63: #{mixtral_decoder_layer.4} parent=5 // pred_region
      %s798 = ssub.s32 %s16, 2
      // Predicated region
      $region65: #{mixtral_decoder_layer.4} parent=63 // pred_check
        %p799 = pneg %p191
      $region66: #{mixtral_decoder_layer.4} parent=63 // pred_check_branch
        %801 = sbr.rel (%p799) target = $region68
      $region67: #{mixtral_decoder_layer.4} parent=63 // pred_region
        %p802 = scmp.lt.s32.totalorder %s22, 1
        %s803 = scalar_select %p802, %s22, 1
        %s804 = smul.addr %s803, 8
        %s805 = scalar_lea.vmem %s6, %s804
      $region68: #{mixtral_decoder_layer.4} parent=63 // pred_fallthru
        _
      // Predicated region
      $region69: #{mixtral_decoder_layer.4} parent=63 // pred_check
        %p806 = pneg %p217
      $region70: #{mixtral_decoder_layer.4} parent=63 // pred_check_branch
        %808 = sbr.rel (%p806) target = $region72
      $region71: #{mixtral_decoder_layer.4} parent=63 // pred_region
        %p809 = scmp.lt.s32.totalorder %s22, 1
        %s810 = scalar_select %p809, %s22, 1
        %s811 = smul.addr %s810, 4
        %s812 = smul.addr %s811, 4
        %s813 = scalar_lea.vmem %s7, %s812
      $region72: #{mixtral_decoder_layer.4} parent=63 // pred_fallthru
        _
      // Predicated region
      $region73: #{mixtral_decoder_layer.4} parent=63 // pred_check
        %p814 = pneg %p243
      $region74: #{mixtral_decoder_layer.4} parent=63 // pred_check_branch
        %816 = sbr.rel (%p814) target = $region76
      $region75: #{mixtral_decoder_layer.4} parent=63 // pred_region
        %p817 = scmp.lt.s32.totalorder %s22, 1
        %s818 = scalar_select %p817, %s22, 1
        %s819 = smul.addr %s818, 2
        %s820 = smul.addr %s819, 4
        %s821 = scalar_lea.vmem %s8, %s820
      $region76: #{mixtral_decoder_layer.4} parent=63 // pred_fallthru
        _
      // Predicated region
      $region77: #{mixtral_decoder_layer.4} parent=63 // pred_check
        %p822 = pneg %p269
      $region78: #{mixtral_decoder_layer.4} parent=63 // pred_check_branch
        %824 = sbr.rel (%p822) target = $region80
      $region79: #{mixtral_decoder_layer.4} parent=63 // pred_region
        %p825 = scmp.lt.s32.totalorder %s22, 1
        %s826 = scalar_select %p825, %s22, 1
        %s827 = smul.addr %s826, 2
        %s828 = smul.addr %s827, 4
        %s829 = scalar_lea.vmem %s9, %s828
      $region80: #{mixtral_decoder_layer.4} parent=63 // pred_fallthru
        _
    $region64: #{mixtral_decoder_layer.4} parent=5 // pred_fallthru
      _
  $region6: #{mixtral_decoder_layer.4} parent=0 // loop_footer
    %s20 = sadd.s32 1, %s16
  $region7: #{mixtral_decoder_layer.4} parent=0 // loop_footer_branch
    %15 = sbr.rel target = $region3
  $region8: #{mixtral_decoder_layer.4} parent=0 // loop_exit
    _

// kernel: mixtral_decoder_layer.7
$region0: #{mixtral_decoder_layer.7}
  #allocation0 [shape = 'u32[]', space=smem, size = 0x4, offset = 0x4, fixed_abs, tag = 'smem constant byte address 0x4 - core index']
  #allocation1 [shape = 'u32[144,128]{1,0:T(1,128)}', space=vmem, size = 0x12000, scoped, tag = 'internal scratch']
  #allocation2 [shape = 's32[1]{0}', space=sflag, size = 0x4, scoped, tag = 'scoped memory for mixtral_decoder_layer.7']
  #allocation3 [shape = 'u8[512]{0}', space=smem, size = 0x200, scoped, tag = 'prefetched SMEM operand 0']
  %s0 = inlined_call_operand.vmem [shape: s32[4], index: 0, kind: input, shape index: {}]
  %s1 = inlined_call_operand.vmem [shape: bf16[16,32], index: 1, kind: input, shape index: {}]
  %s2 = inlined_call_operand.vmem [shape: bf16[4,32,64], index: 2, kind: input, shape index: {}]
  %s3 = inlined_call_operand.vmem [shape: bf16[4,32,64], index: 3, kind: input, shape index: {}]
  %s4 = inlined_call_operand.vmem [shape: bf16[4,64,32], index: 4, kind: input, shape index: {}]
  %s5 = inlined_call_operand.vmem [shape: f32[4,16,1], index: 5, kind: input, shape index: {}]
  %s6 = inlined_call_operand.hbm [shape: f32[16,32], index: 6, kind: output, shape index: {}]
  %s7 = sld [smem:[#allocation0]]
  $region61: #{mixtral_decoder_layer.7} parent=0
    _
  %s9 = ssub.s32 1, %s7
  %s10 = scalar_select 0, %s9, %s7
  %s11 = sshll.u32 %s0, 4
  %s12 = int_to_ptr.vmem [resolvable:$true] %s11
  %14 = dma.vmem_to_smem %s12, 16, [#allocation3], [#allocation2]
  %15 = dma.done [#allocation2], 16
  %16 = sfence
  $region1: #{mixtral_decoder_layer.7} parent=0
    #allocation4 [shape = 'u8[8192]{0}', space=vmem, size = 0x2000, scoped, tag = 'output window, operand 0, single buffered']
    #allocation5 [shape = 's32[2]{0}', space=sflag, size = 0x8, scoped, tag = 'scoped memory for mixtral_decoder_layer.7']
    %17 = vsyncpa [#allocation5], 0
    loop: start=0, step=1, limit=6
    $region2: #{mixtral_decoder_layer.7} parent=1 // loop_pre_header
      _
    $region3: #{mixtral_decoder_layer.7} parent=1 // loop_header
      %s19 = sphi 0, %s23
      %p20 = scmp.ge.s32.totalorder %s19, 6
      %s26 = sphi 0, %s38
      %s27 = sphi 0, %s34
      %s28 = sphi 0, %s26
      %s29 = sphi 0, %s27
      %s30 = sphi 0, %s28
      %s31 = sphi 0, %s29
      %s41 = sphi 0, %s43
      %s44 = sphi 0, %s41
      %s45 = sphi 0, %s44
      %s61 = sphi 0, %s45
      %s67 = sphi 0, %s69
      %s70 = sphi 0, %s67
      %s71 = sphi 0, %s70
      %s87 = sphi 0, %s71
      %s93 = sphi 0, %s95
      %s96 = sphi 0, %s93
      %s97 = sphi 0, %s96
      %s113 = sphi 0, %s97
      %s119 = sphi 0, %s121
      %s122 = sphi 0, %s119
      %s123 = sphi 0, %s122
      %s139 = sphi 0, %s123
      %s147 = sphi 0, %s149
      %s150 = sphi 0, %s147
      %s151 = sphi 0, %s150
      %s167 = sphi 0, %s151
      %s173 = sphi 0, %s175
      %s176 = sphi 0, %s173
      %s177 = sphi 0, %s176
      %s193 = sphi 0, %s177
    $region4: #{mixtral_decoder_layer.7} parent=1 // loop_header_branch
      %22 = sbr.rel (%p20) target = $region8
    $region5: #{mixtral_decoder_layer.7} parent=1 // loop_body
      %s24 = ssub.s32 %s19, 1
      %s25 = ssub.s32 %s19, 2
      %s32 = sadd.s32 1, %s27
      %p33 = scmp.ge.s32.totalorder %s32, 4
      %s34 = scalar_select %p33, 0, %s32
      %s35 = sadd.s32 1, %s26
      %s36 = scalar_select %p33, %s35, %s26
      %p37 = scmp.ge.s32.totalorder %s36, 1
      %s38 = scalar_select %p37, 0, %s36
      %s39 = ssub.s32 %s26, %s38
      %p40 = scmp.eq.s32.totalorder %s39, 0
      %s42 = sadd.s32 %s41, 1
      %s43 = scalar_select %p40, %s41, %s42
      %p46 = pneg %p40
      %p47 = scmp.eq.s32.totalorder %s19, 3
      %p48 = por %p46, %p47
      %p49 = scmp.ne.s32.totalorder %s41, %s44
      %p50 = scmp.eq.s32.totalorder %s19, 0
      %p51 = por %p49, %p50
      %p52 = scmp.ne.s32.totalorder %s41, %s44
      %p53 = scmp.eq.s32.totalorder %s24, 3
      %p54 = por %p52, %p53
      %p55 = scmp.ne.s32.totalorder %s44, %s45
      %p56 = scmp.eq.s32.totalorder %s24, 0
      %p57 = por %p55, %p56
      %p58 = scmp.ne.s32.totalorder %s44, %s45
      %p59 = scmp.eq.s32.totalorder %s25, 3
      %p60 = por %p58, %p59
      %p62 = scmp.ne.s32.totalorder %s45, %s61
      %p63 = scmp.eq.s32.totalorder %s25, 0
      %p64 = por %p62, %p63
      %s65 = ssub.s32 %s27, %s34
      %p66 = scmp.eq.s32.totalorder %s65, 0
      %s68 = sadd.s32 %s67, 1
      %s69 = scalar_select %p66, %s67, %s68
      %p72 = pneg %p66
      %p73 = scmp.eq.s32.totalorder %s19, 3
      %p74 = por %p72, %p73
      %p75 = scmp.ne.s32.totalorder %s67, %s70
      %p76 = scmp.eq.s32.totalorder %s19, 0
      %p77 = por %p75, %p76
      %p78 = scmp.ne.s32.totalorder %s67, %s70
      %p79 = scmp.eq.s32.totalorder %s24, 3
      %p80 = por %p78, %p79
      %p81 = scmp.ne.s32.totalorder %s70, %s71
      %p82 = scmp.eq.s32.totalorder %s24, 0
      %p83 = por %p81, %p82
      %p84 = scmp.ne.s32.totalorder %s70, %s71
      %p85 = scmp.eq.s32.totalorder %s25, 3
      %p86 = por %p84, %p85
      %p88 = scmp.ne.s32.totalorder %s71, %s87
      %p89 = scmp.eq.s32.totalorder %s25, 0
      %p90 = por %p88, %p89
      %s91 = ssub.s32 %s27, %s34
      %p92 = scmp.eq.s32.totalorder %s91, 0
      %s94 = sadd.s32 %s93, 1
      %s95 = scalar_select %p92, %s93, %s94
      %p98 = pneg %p92
      %p99 = scmp.eq.s32.totalorder %s19, 3
      %p100 = por %p98, %p99
      %p101 = scmp.ne.s32.totalorder %s93, %s96
      %p102 = scmp.eq.s32.totalorder %s19, 0
      %p103 = por %p101, %p102
      %p104 = scmp.ne.s32.totalorder %s93, %s96
      %p105 = scmp.eq.s32.totalorder %s24, 3
      %p106 = por %p104, %p105
      %p107 = scmp.ne.s32.totalorder %s96, %s97
      %p108 = scmp.eq.s32.totalorder %s24, 0
      %p109 = por %p107, %p108
      %p110 = scmp.ne.s32.totalorder %s96, %s97
      %p111 = scmp.eq.s32.totalorder %s25, 3
      %p112 = por %p110, %p111
      %p114 = scmp.ne.s32.totalorder %s97, %s113
      %p115 = scmp.eq.s32.totalorder %s25, 0
      %p116 = por %p114, %p115
      %s117 = ssub.s32 %s27, %s34
      %p118 = scmp.eq.s32.totalorder %s117, 0
      %s120 = sadd.s32 %s119, 1
      %s121 = scalar_select %p118, %s119, %s120
      %p124 = pneg %p118
      %p125 = scmp.eq.s32.totalorder %s19, 3
      %p126 = por %p124, %p125
      %p127 = scmp.ne.s32.totalorder %s119, %s122
      %p128 = scmp.eq.s32.totalorder %s19, 0
      %p129 = por %p127, %p128
      %p130 = scmp.ne.s32.totalorder %s119, %s122
      %p131 = scmp.eq.s32.totalorder %s24, 3
      %p132 = por %p130, %p131
      %p133 = scmp.ne.s32.totalorder %s122, %s123
      %p134 = scmp.eq.s32.totalorder %s24, 0
      %p135 = por %p133, %p134
      %p136 = scmp.ne.s32.totalorder %s122, %s123
      %p137 = scmp.eq.s32.totalorder %s25, 3
      %p138 = por %p136, %p137
      %p140 = scmp.ne.s32.totalorder %s123, %s139
      %p141 = scmp.eq.s32.totalorder %s25, 0
      %p142 = por %p140, %p141
      %s143 = ssub.s32 %s27, %s34
      %s144 = ssub.s32 %s26, %s38
      %s145 = sor.u32 %s143, %s144
      %p146 = scmp.eq.s32.totalorder %s145, 0
      %s148 = sadd.s32 %s147, 1
      %s149 = scalar_select %p146, %s147, %s148
      %p152 = pneg %p146
      %p153 = scmp.eq.s32.totalorder %s19, 3
      %p154 = por %p152, %p153
      %p155 = scmp.ne.s32.totalorder %s147, %s150
      %p156 = scmp.eq.s32.totalorder %s19, 0
      %p157 = por %p155, %p156
      %p158 = scmp.ne.s32.totalorder %s147, %s150
      %p159 = scmp.eq.s32.totalorder %s24, 3
      %p160 = por %p158, %p159
      %p161 = scmp.ne.s32.totalorder %s150, %s151
      %p162 = scmp.eq.s32.totalorder %s24, 0
      %p163 = por %p161, %p162
      %p164 = scmp.ne.s32.totalorder %s150, %s151
      %p165 = scmp.eq.s32.totalorder %s25, 3
      %p166 = por %p164, %p165
      %p168 = scmp.ne.s32.totalorder %s151, %s167
      %p169 = scmp.eq.s32.totalorder %s25, 0
      %p170 = por %p168, %p169
      %s171 = ssub.s32 %s26, %s38
      %p172 = scmp.eq.s32.totalorder %s171, 0
      %s174 = sadd.s32 %s173, 1
      %s175 = scalar_select %p172, %s173, %s174
      %p178 = pneg %p172
      %p179 = scmp.eq.s32.totalorder %s19, 3
      %p180 = por %p178, %p179
      %p181 = scmp.ne.s32.totalorder %s173, %s176
      %p182 = scmp.eq.s32.totalorder %s19, 0
      %p183 = por %p181, %p182
      %p184 = scmp.ne.s32.totalorder %s173, %s176
      %p185 = scmp.eq.s32.totalorder %s24, 3
      %p186 = por %p184, %p185
      %p187 = scmp.ne.s32.totalorder %s176, %s177
      %p188 = scmp.eq.s32.totalorder %s24, 0
      %p189 = por %p187, %p188
      %p190 = scmp.ne.s32.totalorder %s176, %s177
      %p191 = scmp.eq.s32.totalorder %s25, 3
      %p192 = por %p190, %p191
      %p194 = scmp.ne.s32.totalorder %s177, %s193
      %p195 = scmp.eq.s32.totalorder %s25, 0
      %p196 = por %p194, %p195
      %p197 = scmp.le.s32.totalorder 1, %s19
      %p198 = scmp.lt.s32.totalorder %s19, 5
      %p199 = pnand %p197, %p198
      %p200 = pneg %p199
      // Predicated region
      $region9: #{mixtral_decoder_layer.7} parent=5 // pred_check
        _
      $region10: #{mixtral_decoder_layer.7} parent=5 // pred_check_branch
        %202 = sbr.rel (%p199) target = $region12
      $region11: #{mixtral_decoder_layer.7} parent=5 // pred_region
        %s203 = ssub.s32 %s19, 1
        // Predicated region
        $region13: #{mixtral_decoder_layer.7} parent=11 // pred_check
          %p204 = pneg %p57
        $region14: #{mixtral_decoder_layer.7} parent=11 // pred_check_branch
          %206 = sbr.rel (%p204) target = $region16
        $region15: #{mixtral_decoder_layer.7} parent=11 // pred_region
          %s207 = smul.u32 2, %s28
          %p208 = scmp.lt.s32.totalorder %s207, 1
          %s209 = scalar_select %p208, %s207, 1
          %s210 = smul.addr %s209, 4
          %s211 = scalar_lea.vmem %s1, %s210
          %s212 = smul.u32 2, %s28
        $region16: #{mixtral_decoder_layer.7} parent=11 // pred_fallthru
          _
      $region12: #{mixtral_decoder_layer.7} parent=5 // pred_fallthru
        _
      %p213 = scmp.lt.s32.totalorder %s19, 4
      // Predicated region
      $region17: #{mixtral_decoder_layer.7} parent=5 // pred_check
        %p214 = pneg %p213
      $region18: #{mixtral_decoder_layer.7} parent=5 // pred_check_branch
        %216 = sbr.rel (%p214) target = $region20
      $region19: #{mixtral_decoder_layer.7} parent=5 // pred_region
        // Predicated region
        $region21: #{mixtral_decoder_layer.7} parent=19 // pred_check
          %p217 = pneg %p77
        $region22: #{mixtral_decoder_layer.7} parent=19 // pred_check_branch
          %219 = sbr.rel (%p217) target = $region24
        $region23: #{mixtral_decoder_layer.7} parent=19 // pred_region
          %p220 = scmp.lt.s32.totalorder %s27, 3
          %s221 = scalar_select %p220, %s27, 3
          %s222 = smul.addr %s221, 4
          %s223 = smul.addr %s222, 4
          %s224 = scalar_lea.vmem %s2, %s223
        $region24: #{mixtral_decoder_layer.7} parent=19 // pred_fallthru
          _
        // Predicated region
        $region25: #{mixtral_decoder_layer.7} parent=19 // pred_check
          %p225 = pneg %p103
        $region26: #{mixtral_decoder_layer.7} parent=19 // pred_check_branch
          %227 = sbr.rel (%p225) target = $region28
        $region27: #{mixtral_decoder_layer.7} parent=19 // pred_region
          %p228 = scmp.lt.s32.totalorder %s27, 3
          %s229 = scalar_select %p228, %s27, 3
          %s230 = smul.addr %s229, 4
          %s231 = smul.addr %s230, 4
          %s232 = scalar_lea.vmem %s3, %s231
        $region28: #{mixtral_decoder_layer.7} parent=19 // pred_fallthru
          _
        // Predicated region
        $region29: #{mixtral_decoder_layer.7} parent=19 // pred_check
          %p233 = pneg %p129
        $region30: #{mixtral_decoder_layer.7} parent=19 // pred_check_branch
          %235 = sbr.rel (%p233) target = $region32
        $region31: #{mixtral_decoder_layer.7} parent=19 // pred_region
          %p236 = scmp.lt.s32.totalorder %s27, 3
          %s237 = scalar_select %p236, %s27, 3
          %s238 = smul.addr %s237, 8
          %s239 = smul.addr %s238, 4
          %s240 = scalar_lea.vmem %s4, %s239
        $region32: #{mixtral_decoder_layer.7} parent=19 // pred_fallthru
          _
        // Predicated region
        $region33: #{mixtral_decoder_layer.7} parent=19 // pred_check
          %p241 = pneg %p157
        $region34: #{mixtral_decoder_layer.7} parent=19 // pred_check_branch
          %243 = sbr.rel (%p241) target = $region36
        $region35: #{mixtral_decoder_layer.7} parent=19 // pred_region
          %s244 = smul.u32 2, %s26
          %p245 = scmp.lt.s32.totalorder %s27, 3
          %s246 = scalar_select %p245, %s27, 3
          %p247 = scmp.lt.s32.totalorder %s244, 1
          %s248 = scalar_select %p247, %s244, 1
          %s249 = smul.addr %s246, 2
          %s250 = sadd.s32 %s248, %s249
          %s251 = smul.addr %s250, 8
          %s252 = scalar_lea.vmem %s5, %s251
          %s253 = smul.u32 2, %s26
        $region36: #{mixtral_decoder_layer.7} parent=19 // pred_fallthru
          _
      $region20: #{mixtral_decoder_layer.7} parent=5 // pred_fallthru
        _
      %p254 = scmp.le.s32.totalorder 1, %s19
      %p255 = scmp.lt.s32.totalorder %s19, 5
      %p256 = pnand %p254, %p255
      %p257 = pneg %p256
      // Predicated region
      $region37: #{mixtral_decoder_layer.7} parent=5 // pred_check
        _
      $region38: #{mixtral_decoder_layer.7} parent=5 // pred_check_branch
        %259 = sbr.rel (%p256) target = $region40
      $region39: #{mixtral_decoder_layer.7} parent=5 // pred_region
        %s260 = ssub.s32 %s19, 1
        %s261 = smul.u32 2, %s28
        %p262 = scmp.lt.s32.totalorder %s261, 1
        %s263 = scalar_select %p262, %s261, 1
        %s264 = smul.addr %s263, 4
        %s265 = scalar_lea.vmem %s1, %s264
        %p266 = pneg %p57
        %p267 = pneg %p54
        %p268 = scmp.lt.s32.totalorder %s29, 3
        %s269 = scalar_select %p268, %s29, 3
        %s270 = smul.addr %s269, 4
        %s271 = smul.addr %s270, 4
        %s272 = scalar_lea.vmem %s2, %s271
        %p273 = pneg %p83
        %p274 = pneg %p80
        %p275 = scmp.lt.s32.totalorder %s29, 3
        %s276 = scalar_select %p275, %s29, 3
        %s277 = smul.addr %s276, 4
        %s278 = smul.addr %s277, 4
        %s279 = scalar_lea.vmem %s3, %s278
        %p280 = pneg %p109
        %p281 = pneg %p106
        %p282 = scmp.lt.s32.totalorder %s29, 3
        %s283 = scalar_select %p282, %s29, 3
        %s284 = smul.addr %s283, 8
        %s285 = smul.addr %s284, 4
        %s286 = scalar_lea.vmem %s4, %s285
        %p287 = pneg %p135
        %p288 = pneg %p132
        %s289 = smul.u32 2, %s28
        %p290 = scmp.lt.s32.totalorder %s29, 3
        %s291 = scalar_select %p290, %s29, 3
        %p292 = scmp.lt.s32.totalorder %s289, 1
        %s293 = scalar_select %p292, %s289, 1
        %s294 = smul.addr %s291, 2
        %s295 = sadd.s32 %s293, %s294
        %s296 = smul.addr %s295, 8
        %s297 = scalar_lea.vmem %s5, %s296
        %p298 = pneg %p163
        %p299 = pneg %p160
        %p300 = pneg %p189
        %p301 = pneg %p186
        %s302 = smul.u32 2, %s28
        %p303 = scmp.lt.s32.totalorder %s302, 1
        %s304 = scalar_select %p303, %s302, 1
        %s305 = smul.addr %s304, 4
        %s306 = scalar_lea.vmem %s1, %s305
        %s307 = smul.u32 2, %s28
        %p308 = scmp.lt.s32.totalorder %s29, 3
        %s309 = scalar_select %p308, %s29, 3
        %s310 = smul.addr %s309, 4
        %s311 = smul.addr %s310, 4
        %s312 = scalar_lea.vmem %s2, %s311
        %p313 = scmp.lt.s32.totalorder %s29, 3
        %s314 = scalar_select %p313, %s29, 3
        %s315 = smul.addr %s314, 4
        %s316 = smul.addr %s315, 4
        %s317 = scalar_lea.vmem %s3, %s316
        %p318 = scmp.lt.s32.totalorder %s29, 3
        %s319 = scalar_select %p318, %s29, 3
        %s320 = smul.addr %s319, 8
        %s321 = smul.addr %s320, 4
        %s322 = scalar_lea.vmem %s4, %s321
        %s323 = smul.u32 2, %s28
        %p324 = scmp.lt.s32.totalorder %s29, 3
        %s325 = scalar_select %p324, %s29, 3
        %p326 = scmp.lt.s32.totalorder %s323, 1
        %s327 = scalar_select %p326, %s323, 1
        %s328 = smul.addr %s325, 2
        %s329 = sadd.s32 %s327, %s328
        %s330 = smul.addr %s329, 8
        %s331 = scalar_lea.vmem %s5, %s330
        %s332 = smul.u32 2, %s28
        %s333 = smul.u32 2, %s28
        %p335 = scmp.eq.s32.totalorder %s29, 0
        // Predicated region
        $region41: #{mixtral_decoder_layer.7} parent=39 // pred_check
          %p336 = pneg %p335
        $region42: #{mixtral_decoder_layer.7} parent=39 // pred_check_branch
          %338 = sbr.rel (%p336) target = $region44
        $region43: #{mixtral_decoder_layer.7} parent=39 // pred_region
          %vm339 = vcmask 261120
          %340 = vst.msk [vmem:[#allocation4] sm:$0xff] %vm339, 0.0
          %341 = vst.msk [vmem:[#allocation4 + $0x8] sm:$0xff] %vm339, 0.0
        $region44: #{mixtral_decoder_layer.7} parent=39 // pred_fallthru
          _
        %s342 = sld [smem:[#allocation3 + %s29]]
        %p343 = scmp.gt.s32.totalorder %s342, 0
        // Predicated region
        $region45: #{mixtral_decoder_layer.7} parent=39 // pred_check
          %p344 = pneg %p343
        $region46: #{mixtral_decoder_layer.7} parent=39 // pred_check_branch
          %346 = sbr.rel (%p344) target = $region48
        $region47: #{mixtral_decoder_layer.7} parent=39 // pred_region
          %v347 = vld [vmem:[%s306] sm:$0xf]
          %v348 = vld [vmem:[%s306 + $0x4] sm:$0xf]
          %v349 = vld [vmem:[%s312] sm:$0xf]
          %v350 = vld [vmem:[%s312 + $0x4] sm:$0xf]
          %v351 = vld [vmem:[%s312 + $0x8] sm:$0xf]
          %v352 = vld [vmem:[%s312 + $0xc] sm:$0xf]
          %v355 = vunpack.c.l.b16 %v347
          %v356 = vunpack.c.l.b16 %v348
          %v357 = vpack.c.b16 %v356, %v355
          %v362 = vunpack.c.l.b16 %v349
          %v363 = vunpack.c.l.b16 %v350
          %v364 = vunpack.c.l.b16 %v351
          %v365 = vunpack.c.l.b16 %v352
          %v366 = vpack.c.b16 %v363, %v362
          %v367 = vpack.c.b16 %v365, %v364
          %vm370 = vcmask 261120
          %v372 = vsel %vm370, %v357, 0
          %374 = vmatprep.subr.bf16.mxu0 0
          %375 = vmatpush1.bf16.msra.mxu0 %v366
          %376 = vmatprep.subr.bf16.mxu0 0
          %377 = vmatpush1.bf16.msra.mxu0 %v367
          %378 = vmatprep.subr.bf16.mxu0 0
          %379 = vmatpush1.bf16.msra.mxu0 0
          %380 = vmatprep.subr.bf16.mxu0 0
          %381 = vmatpush1.bf16.msra.mxu0 0
          %382 = vmatprep.subr.bf16.mxu0 0
          %383 = vmatpush1.bf16.msra.mxu0 0
          %384 = vmatprep.subr.bf16.mxu0 0
          %385 = vmatpush1.bf16.msra.mxu0 0
          %386 = vmatprep.subr.bf16.mxu0 0
          %387 = vmatpush1.bf16.msra.mxu0 0
          %388 = vmatprep.subr.bf16.mxu0 0
          %389 = vmatpush1.bf16.msra.mxu0 0
          %390 = vmatprep.subr.bf16.mxu0 0
          %391 = vmatpush1.bf16.msra.mxu0 0
          %392 = vmatprep.subr.bf16.mxu0 0
          %393 = vmatpush1.bf16.msra.mxu0 0
          %394 = vmatprep.subr.bf16.mxu0 0
          %395 = vmatpush1.bf16.msra.mxu0 0
          %396 = vmatprep.subr.bf16.mxu0 0
          %397 = vmatpush1.bf16.msra.mxu0 0
          %398 = vmatprep.subr.bf16.mxu0 0
          %399 = vmatpush1.bf16.msra.mxu0 0
          %400 = vmatprep.subr.bf16.mxu0 0
          %401 = vmatpush1.bf16.msra.mxu0 0
          %402 = vmatprep.subr.bf16.mxu0 0
          %403 = vmatpush1.bf16.msra.mxu0 0
          %404 = vmatprep.subr.bf16.mxu0 0
          %405 = vmatpush1.bf16.msra.mxu0 0
          %406 = vmatprep.mubr.bf16.mxu0 0
          %407 = vmatmul.mubr.bf16.gmra.mrb[0].mxu0 %v372
          %v408 = vpop.f32.mrb[0].mxu0
          %v409 = vadd.f32 0.0, %v408
          %v410 = vpop.f32.mrb[0].mxu0
          %v411 = vpop.f32.mrb[0].mxu0
          %v412 = vadd.f32 0.0, %v411
          %v413 = vpop.f32.mrb[0].mxu0
          %414 = vdwg.mxu0
          %v415 = vxor.u32 %v409, 2147483648
          %v416 = vxor.u32 %v412, 2147483648
          %v417 = vmul.f32 %v415, 1.442695
          %v418 = vpow.pop %v417
          %v419 = vmul.f32 %v416, 1.442695
          %v420 = vpow.pop %v419
          %v421 = vadd.f32 %v418, 1.0
          %v422 = vadd.f32 %v420, 1.0
          %v423 = vrcp.pop %v421
          %v424 = vmul.f32 1.0, %v423
          %v425 = vrcp.pop %v422
          %v426 = vmul.f32 1.0, %v425
          %v427 = vmul.f32 %v409, %v424
          %v428 = vmul.f32 %v412, %v426
          %v429 = vld [vmem:[%s317] sm:$0xf]
          %v430 = vld [vmem:[%s317 + $0x4] sm:$0xf]
          %v431 = vld [vmem:[%s317 + $0x8] sm:$0xf]
          %v432 = vld [vmem:[%s317 + $0xc] sm:$0xf]
          %v437 = vunpack.c.l.b16 %v429
          %v438 = vunpack.c.l.b16 %v430
          %v439 = vunpack.c.l.b16 %v431
          %v440 = vunpack.c.l.b16 %v432
          %v441 = vpack.c.b16 %v438, %v437
          %v442 = vpack.c.b16 %v440, %v439
          %445 = vmatprep.subr.bf16.mxu0 0
          %446 = vmatpush1.bf16.msra.mxu0 %v441
          %447 = vmatprep.subr.bf16.mxu0 0
          %448 = vmatpush1.bf16.msra.mxu0 %v442
          %449 = vmatprep.subr.bf16.mxu0 0
          %450 = vmatpush1.bf16.msra.mxu0 0
          %451 = vmatprep.subr.bf16.mxu0 0
          %452 = vmatpush1.bf16.msra.mxu0 0
          %453 = vmatprep.subr.bf16.mxu0 0
          %454 = vmatpush1.bf16.msra.mxu0 0
          %455 = vmatprep.subr.bf16.mxu0 0
          %456 = vmatpush1.bf16.msra.mxu0 0
          %457 = vmatprep.subr.bf16.mxu0 0
          %458 = vmatpush1.bf16.msra.mxu0 0
          %459 = vmatprep.subr.bf16.mxu0 0
          %460 = vmatpush1.bf16.msra.mxu0 0
          %461 = vmatprep.subr.bf16.mxu0 0
          %462 = vmatpush1.bf16.msra.mxu0 0
          %463 = vmatprep.subr.bf16.mxu0 0
          %464 = vmatpush1.bf16.msra.mxu0 0
          %465 = vmatprep.subr.bf16.mxu0 0
          %466 = vmatpush1.bf16.msra.mxu0 0
          %467 = vmatprep.subr.bf16.mxu0 0
          %468 = vmatpush1.bf16.msra.mxu0 0
          %469 = vmatprep.subr.bf16.mxu0 0
          %470 = vmatpush1.bf16.msra.mxu0 0
          %471 = vmatprep.subr.bf16.mxu0 0
          %472 = vmatpush1.bf16.msra.mxu0 0
          %473 = vmatprep.subr.bf16.mxu0 0
          %474 = vmatpush1.bf16.msra.mxu0 0
          %475 = vmatprep.subr.bf16.mxu0 0
          %476 = vmatpush1.bf16.msra.mxu0 0
          %477 = vmatprep.mubr.bf16.mxu0 0
          %478 = vmatmul.mubr.bf16.gmra.mrb[0].mxu0 %v372
          %v479 = vpop.f32.mrb[0].mxu0
          %v480 = vadd.f32 0.0, %v479
          %v481 = vpop.f32.mrb[0].mxu0
          %v482 = vpop.f32.mrb[0].mxu0
          %v483 = vadd.f32 0.0, %v482
          %v484 = vpop.f32.mrb[0].mxu0
          %485 = vdwg.mxu0
          %v486 = vmul.f32 %v427, %v480
          %v487 = vmul.f32 %v428, %v483
          %v488 = vpack.c.bf16 %v487, %v486
          %v489 = vld [vmem:[%s322] sm:$0xf]
          %v490 = vld [vmem:[%s322 + $0x4] sm:$0xf]
          %v491 = vld [vmem:[%s322 + $0x8] sm:$0xf]
          %v492 = vld [vmem:[%s322 + $0xc] sm:$0xf]
          %v493 = vld [vmem:[%s322 + $0x10] sm:$0xf]
          %v494 = vld [vmem:[%s322 + $0x14] sm:$0xf]
          %v495 = vld [vmem:[%s322 + $0x18] sm:$0xf]
          %v496 = vld [vmem:[%s322 + $0x1c] sm:$0xf]
          %v505 = vunpack.c.l.b16 %v489
          %v506 = vunpack.c.l.b16 %v490
          %v507 = vunpack.c.l.b16 %v491
          %v508 = vunpack.c.l.b16 %v492
          %v509 = vunpack.c.l.b16 %v493
          %v510 = vunpack.c.l.b16 %v494
          %v511 = vunpack.c.l.b16 %v495
          %v512 = vunpack.c.l.b16 %v496
          %v513 = vpack.c.b16 %v506, %v505
          %v514 = vpack.c.b16 %v508, %v507
          %v515 = vpack.c.b16 %v510, %v509
          %v516 = vpack.c.b16 %v512, %v511
          %vm521 = vcmask 523264
          %v523 = vsel %vm521, %v488, 0
          %525 = vmatprep.subr.bf16.mxu0 0
          %526 = vmatpush1.bf16.msra.mxu0 %v513
          %527 = vmatprep.subr.bf16.mxu0 0
          %528 = vmatpush1.bf16.msra.mxu0 %v514
          %529 = vmatprep.subr.bf16.mxu0 0
          %530 = vmatpush1.bf16.msra.mxu0 %v515
          %531 = vmatprep.subr.bf16.mxu0 0
          %532 = vmatpush1.bf16.msra.mxu0 %v516
          %533 = vmatprep.subr.bf16.mxu0 0
          %534 = vmatpush1.bf16.msra.mxu0 0
          %535 = vmatprep.subr.bf16.mxu0 0
          %536 = vmatpush1.bf16.msra.mxu0 0
          %537 = vmatprep.subr.bf16.mxu0 0
          %538 = vmatpush1.bf16.msra.mxu0 0
          %539 = vmatprep.subr.bf16.mxu0 0
          %540 = vmatpush1.bf16.msra.mxu0 0
          %541 = vmatprep.subr.bf16.mxu0 0
          %542 = vmatpush1.bf16.msra.mxu0 0
          %543 = vmatprep.subr.bf16.mxu0 0
          %544 = vmatpush1.bf16.msra.mxu0 0
          %545 = vmatprep.subr.bf16.mxu0 0
          %546 = vmatpush1.bf16.msra.mxu0 0
          %547 = vmatprep.subr.bf16.mxu0 0
          %548 = vmatpush1.bf16.msra.mxu0 0
          %549 = vmatprep.subr.bf16.mxu0 0
          %550 = vmatpush1.bf16.msra.mxu0 0
          %551 = vmatprep.subr.bf16.mxu0 0
          %552 = vmatpush1.bf16.msra.mxu0 0
          %553 = vmatprep.subr.bf16.mxu0 0
          %554 = vmatpush1.bf16.msra.mxu0 0
          %555 = vmatprep.subr.bf16.mxu0 0
          %556 = vmatpush1.bf16.msra.mxu0 0
          %557 = vmatprep.mubr.bf16.mxu0 0
          %558 = vmatmul.mubr.bf16.gmra.mrb[0].mxu0 %v523
          %v559 = vpop.f32.mrb[0].mxu0
          %v560 = vadd.f32 0.0, %v559
          %v561 = vpop.f32.mrb[0].mxu0
          %v562 = vpop.f32.mrb[0].mxu0
          %v563 = vadd.f32 0.0, %v562
          %v564 = vpop.f32.mrb[0].mxu0
          %565 = vdwg.mxu0
          %v566 = vld [vmem:[#allocation4] sm:$0xff]
          %v567 = vld [vmem:[#allocation4 + $0x8] sm:$0xff]
          %v568 = vld [vmem:[%s331] sm:$0xff]
          %v569 = vld [vmem:[%s331 + $0x8] sm:$0xff]
          %571 = vset.pattern.permute.xlu0 0
          %572 = vperm.xlu0 %571, %v568
          %v573 = vpop.permute.xlu0 %572
          %576 = vset.pattern.permute.xlu0 0
          %577 = vperm.xlu0 %576, %v569
          %v578 = vpop.permute.xlu0 %577
          %v580 = vmul.f32 %v560, %v573
          %v581 = vmul.f32 %v563, %v578
          %v582 = vadd.f32 %v566, %v580
          %v583 = vadd.f32 %v567, %v581
          %584 = vst.msk [vmem:[#allocation4] sm:$0xff] %vm370, %v582
          %585 = vst.msk [vmem:[#allocation4 + $0x8] sm:$0xff] %vm370, %v583
        $region48: #{mixtral_decoder_layer.7} parent=39 // pred_fallthru
          _
        // Predicated region
        $region49: #{mixtral_decoder_layer.7} parent=39 // pred_check
          %p586 = pneg %p186
        $region50: #{mixtral_decoder_layer.7} parent=39 // pred_check_branch
          %588 = sbr.rel (%p586) target = $region52
        $region51: #{mixtral_decoder_layer.7} parent=39 // pred_region
          %s589 = smul.u32 2, %s28
          %s591 = ssub.s32 256, 256
          %592 = vsyncadd [#allocation5], %s591
          %s593 = smul.addr %s589, 128
          %s594 = scalar_lea.hbm %s6, %s593
          %s595 = sshll.u32 [#allocation4], 4
          %s596 = int_to_ptr.vmem [resolvable:$true] %s595
          %601 = dma.vmem_to_hbm [thread:$0]  %s596, 256, %s594, [#allocation5], 128, 128, 8
        $region52: #{mixtral_decoder_layer.7} parent=39 // pred_fallthru
          _
        // Predicated region
        $region53: #{mixtral_decoder_layer.7} parent=39 // pred_check
          %p602 = pneg %p186
        $region54: #{mixtral_decoder_layer.7} parent=39 // pred_check_branch
          %604 = sbr.rel (%p602) target = $region56
        $region55: #{mixtral_decoder_layer.7} parent=39 // pred_region
          %605 = dma.done [#allocation5], 256
        $region56: #{mixtral_decoder_layer.7} parent=39 // pred_fallthru
          _
      $region40: #{mixtral_decoder_layer.7} parent=5 // pred_fallthru
        _
      %p606 = scmp.le.s32.totalorder 2, %s19
      // Predicated region
      $region57: #{mixtral_decoder_layer.7} parent=5 // pred_check
        %p607 = pneg %p606
      $region58: #{mixtral_decoder_layer.7} parent=5 // pred_check_branch
        %609 = sbr.rel (%p607) target = $region60
      $region59: #{mixtral_decoder_layer.7} parent=5 // pred_region
        %s610 = ssub.s32 %s19, 2
      $region60: #{mixtral_decoder_layer.7} parent=5 // pred_fallthru
        _
    $region6: #{mixtral_decoder_layer.7} parent=1 // loop_footer
      %s23 = sadd.s32 1, %s19
    $region7: #{mixtral_decoder_layer.7} parent=1 // loop_footer_branch
      %18 = sbr.rel target = $region3
    $region8: #{mixtral_decoder_layer.7} parent=1 // loop_exit
      _
    %611 = vsyncpa [#allocation5], 1
    %s612 = scalar_lea.sflag [#allocation5], 1
    %613 = vsyncpa %s612, 1

</llo_original>
